<compile_context>
chip_gen: v7x
topology: tpu7x:2x2x1
jax: 0.10.0
libtpu: 0.0.40
codegen_flags: <defaults>
</compile_context>

<pallas_src>
import jax
import jax.numpy as jnp
from jax import lax
from jax.experimental import pallas as pl
from jax.experimental.pallas import tpu as pltpu


# ---------------------------------------------------------------------------
# Fused kernel: conv1+relu+pool1+conv2+relu+pool2+fc1+fc2+fc3 for BB images.
# Activations live in a tall 2-D layout (BB*H sublanes, C*W lanes); the 4
# "junk" rows per image at conv boundaries are never selected by the pools.
# ---------------------------------------------------------------------------
def _lenet_kernel(x_ref, b1_ref, c1_ref, sh1_ref, sw1_ref,
                  b2_ref, c2_ref, sh2_ref, sw2_ref,
                  g_ref, v1_ref, d1_ref, w2_ref, d2_ref, w3_ref, d3_ref,
                  o_ref):
    f32 = jnp.float32
    BB = x_ref.shape[0] // 32          # images in this grid step (static)
    M1 = BB * 32 - 4                   # conv1 rows (4 junk rows per image)
    M2 = BB * 14 - 4                   # conv2 rows

    def mm(a, b):
        return jnp.dot(a, b, preferred_element_type=f32)

    # conv1 (3->6, k=5): 5 row-shifted matmuls against banded weights.
    # Two independent partial accumulators break the serial pop->add chain.
    acc1a = mm(x_ref[pl.ds(0, M1), :], b1_ref[0])
    acc1b = mm(x_ref[pl.ds(1, M1), :], b1_ref[1])
    acc1a = acc1a + mm(x_ref[pl.ds(2, M1), :], b1_ref[2])
    acc1b = acc1b + mm(x_ref[pl.ds(3, M1), :], b1_ref[3])
    acc1a = acc1a + mm(x_ref[pl.ds(4, M1), :], b1_ref[4])
    y1 = jnp.maximum(acc1a + acc1b + c1_ref[...], 0.0)        # (M1, 168)

    # maxpool1 2x2/2 -> (BB*14, 84): 4 one-hot selection matmuls + VPU maxes.
    rmax1 = jnp.maximum(mm(sh1_ref[0], y1), mm(sh1_ref[1], y1))
    p1 = jnp.maximum(mm(rmax1, sw1_ref[0]), mm(rmax1, sw1_ref[1]))

    # conv2 (6->16, k=5) + bias + ReLU : (M2, 160)
    acc2a = mm(p1[0:M2, :], b2_ref[0])
    acc2b = mm(p1[1:1 + M2, :], b2_ref[1])
    acc2a = acc2a + mm(p1[2:2 + M2, :], b2_ref[2])
    acc2b = acc2b + mm(p1[3:3 + M2, :], b2_ref[3])
    acc2a = acc2a + mm(p1[4:4 + M2, :], b2_ref[4])
    y2 = jnp.maximum(acc2a + acc2b + c2_ref[...], 0.0)

    # maxpool2 -> (BB*5, 80)
    rmax2 = jnp.maximum(mm(sh2_ref[0], y2), mm(sh2_ref[1], y2))
    p2 = jnp.maximum(mm(rmax2, sw2_ref[0]), mm(rmax2, sw2_ref[1]))

    # fc1 (400->120, lane-padded to 128): batch is the M dimension.
    # g_ref is a one-hot permutation so q[r*BB + b] = pooled row r of image b.
    q = mm(g_ref[...], p2)                                     # (5*BB, 80)
    ha = mm(q[0 * BB:1 * BB, :], v1_ref[0])
    hb = mm(q[1 * BB:2 * BB, :], v1_ref[1])
    ha = ha + mm(q[2 * BB:3 * BB, :], v1_ref[2])
    hb = hb + mm(q[3 * BB:4 * BB, :], v1_ref[3])
    ha = ha + mm(q[4 * BB:5 * BB, :], v1_ref[4])
    h = jnp.maximum(ha + hb + d1_ref[...], 0.0)                # (BB, 128)

    # fc2 + ReLU, fc3 + ReLU (reference module applies relu to fc3's output).
    h = jnp.maximum(mm(h, w2_ref[...]) + d2_ref[...], 0.0)
    h = jnp.maximum(mm(h, w3_ref[...]) + d3_ref[...], 0.0)
    o_ref[...] = h.astype(o_ref.dtype)                         # (BB, 128) unmasked store


# ---------------------------------------------------------------------------
# One-time weight / selector re-layout (outside the hot path)
# ---------------------------------------------------------------------------
def _conv_band_matrices(w, width):
    """Banded matrices B s.t. conv(x) = sum_i x_rows[i:i+OH, :] @ B[i].

    Activation layout is (H, C*width); output layout is (OH, OC*OW).
    B[i][c*width + w', oc*OW + ow] = w[oc, c, i, w' - ow] for 0 <= w'-ow < KW.
    """
    oc_n, c_n, kh, kw = w.shape
    ow_n = width - kw + 1
    d = jnp.arange(width)[:, None] - jnp.arange(ow_n)[None, :]
    valid = (d >= 0) & (d < kw)
    dcl = jnp.clip(d, 0, kw - 1)
    mats = []
    for i in range(kh):
        wi = w[:, :, i, :]                                      # (OC, C, KW)
        t = wi[:, :, dcl]                                       # (OC, C, width, OW)
        t = jnp.where(valid[None, None, :, :], t, 0.0)
        t = t.transpose(1, 2, 0, 3).reshape(c_n * width, oc_n * ow_n)
        mats.append(t)
    return jnp.stack(mats).astype(jnp.float32)                  # (KH, C*width, OC*OW)


def _row_pool_selectors(bb, in_rows_per_img, out_rows_per_img, src_rows):
    """(2, bb*out_rows, src_rows) one-hot: picks rows in_rows*b + 2r + d."""
    out_idx = jnp.arange(bb * out_rows_per_img)
    b = out_idx // out_rows_per_img
    r = out_idx % out_rows_per_img
    cols = jnp.arange(src_rows)
    mats = [(cols[None, :] == (in_rows_per_img * b + 2 * r + d)[:, None]
             ).astype(jnp.float32) for d in (0, 1)]
    return jnp.stack(mats)


def _col_pool_selectors(channels, in_w):
    """(2, channels*in_w, channels*in_w//2) one-hot: picks lanes c*in_w+2w+d."""
    out_w = in_w // 2
    rows = jnp.arange(channels * in_w)
    out_idx = jnp.arange(channels * out_w)
    c = out_idx // out_w
    w = out_idx % out_w
    mats = [(rows[:, None] == (in_w * c + 2 * w + d)[None, :]
             ).astype(jnp.float32) for d in (0, 1)]
    return jnp.stack(mats)


def _fc1_gather(bb):
    """(5*bb, 5*bb) permutation: output row r*bb + b selects input row 5*b + r."""
    rows = jnp.arange(5 * bb)
    r = rows // bb
    b = rows % bb
    cols = jnp.arange(5 * bb)
    return (cols[None, :] == (5 * b + r)[:, None]).astype(jnp.float32)


def prepare_params(params, block_batch=8):
    """Re-layout PyTorch-style parameters once for the fused kernel."""
    bb = int(block_batch)
    assert bb % 8 == 0, "block_batch must be a multiple of 8"
    f32 = jnp.float32
    m1 = bb * 32 - 4
    m2 = bb * 14 - 4
    return dict(
        b1=_conv_band_matrices(params["conv1_w"], 32),                 # (5, 96, 168)
        c1=jnp.repeat(params["conv1_b"], 28)[None, :].astype(f32),     # (1, 168)
        sh1=_row_pool_selectors(bb, 32, 14, m1),                       # (2, bb*14, m1)
        sw1=_col_pool_selectors(6, 28),                                # (2, 168, 84)
        b2=_conv_band_matrices(params["conv2_w"], 14),                 # (5, 84, 160)
        c2=jnp.repeat(params["conv2_b"], 10)[None, :].astype(f32),     # (1, 160)
        sh2=_row_pool_selectors(bb, 14, 5, m2),                        # (2, bb*5, m2)
        sw2=_col_pool_selectors(16, 10),                               # (2, 160, 80)
        g=_fc1_gather(bb),                                             # (5*bb, 5*bb)
        # fc1 weight (120, 400), PyTorch index c*25 + r*5 + w -> (r, c*5+w, out[pad 128])
        v1=jnp.pad(params["fc1_w"].reshape(120, 16, 5, 5)
                   .transpose(2, 1, 3, 0).reshape(5, 80, 120),
                   ((0, 0), (0, 0), (0, 8))).astype(f32),              # (5, 80, 128)
        d1=jnp.pad(params["fc1_b"], (0, 8))[None, :].astype(f32),      # (1, 128)
        w2=jnp.pad(params["fc2_w"].T, ((0, 8), (0, 44))).astype(f32),  # (128, 128)
        d2=jnp.pad(params["fc2_b"], (0, 44))[None, :].astype(f32),
        w3=jnp.pad(params["fc3_w"].T, ((0, 44), (0, 118))).astype(f32),# (128, 128)
        d3=jnp.pad(params["fc3_b"], (0, 118))[None, :].astype(f32),
    )


_WEIGHT_ORDER = ("b1", "c1", "sh1", "sw1", "b2", "c2", "sh2", "sw2",
                 "g", "v1", "d1", "w2", "d2", "w3", "d3")


# ---------------------------------------------------------------------------
# Forward pass: single fused pallas_call, grid over batch blocks.
# ---------------------------------------------------------------------------
def net_forward(x, prep):
    B = x.shape[0]
    bb = prep["sh1"].shape[1] // 14          # images per grid step (static)
    G = -(-B // bb)
    Bp = G * bb
    m1 = bb * 32 - 4
    m2 = bb * 14 - 4

    # NCHW -> (B, H, C*W) -> tall (Bp*32, 96): the only host-side shuffle.
    xr = x.transpose(0, 2, 1, 3).reshape(B, 32, 3 * 32).astype(jnp.float32)
    if Bp != B:
        xr = jnp.pad(xr, ((0, Bp - B), (0, 0), (0, 0)))
    x_tall = xr.reshape(Bp * 32, 96)

    weights = [prep[k] for k in _WEIGHT_ORDER]

    def const_spec(a):
        return pl.BlockSpec(a.shape, lambda g, _nd=a.ndim: (0,) * _nd)

    in_specs = [pl.BlockSpec((bb * 32, 96), lambda g: (g, 0))]
    in_specs += [const_spec(a) for a in weights]

    # Honest scheduler hint for the blocked kernel.
    macs = (5 * m1 * 96 * 168
            + 2 * bb * 14 * m1 * 168 + 2 * bb * 14 * 168 * 84
            + 5 * m2 * 84 * 160
            + 2 * bb * 5 * m2 * 160 + 2 * bb * 5 * 160 * 80
            + (5 * bb) * (5 * bb) * 80 + 5 * bb * 80 * 128
            + 2 * bb * 128 * 128)
    weight_bytes = sum(int(a.size) * 4 for a in weights)
    cost = pl.CostEstimate(flops=2 * macs * G, transcendentals=0,
                           bytes_accessed=weight_bytes + Bp * (32 * 96 + 128) * 4)

    out = pl.pallas_call(
        _lenet_kernel,
        out_shape=jax.ShapeDtypeStruct((Bp, 128), jnp.float32),
        grid_spec=pltpu.PrefetchScalarGridSpec(
            num_scalar_prefetch=0,
            grid=(G,),
            in_specs=in_specs,
            out_specs=pl.BlockSpec((bb, 128), lambda g: (g, 0)),
        ),
        compiler_params=pltpu.CompilerParams(
            dimension_semantics=("parallel",),
            vmem_limit_bytes=32 * 1024 * 1024),
        cost_estimate=cost,
    )(x_tall, *weights)
    return out[:B, :10]


# ---------------------------------------------------------------------------
# Parameter init (deterministic synthetic weights) and pure-JAX reference
# ---------------------------------------------------------------------------
def init_params(key):
    ks = jax.random.split(key, 10)

    def w(k, shape, scale):
        return jax.random.normal(k, shape, jnp.float32) * scale

    return {
        "conv1_w": w(ks[0], (6, 3, 5, 5), 0.1),
        "conv1_b": w(ks[1], (6,), 0.1),
        "conv2_w": w(ks[2], (16, 6, 5, 5), 0.1),
        "conv2_b": w(ks[3], (16,), 0.1),
        "fc1_w":   w(ks[4], (120, 400), 0.05),   # PyTorch Linear: (out, in)
        "fc1_b":   w(ks[5], (120,), 0.05),
        "fc2_w":   w(ks[6], (84, 120), 0.05),
        "fc2_b":   w(ks[7], (84,), 0.05),
        "fc3_w":   w(ks[8], (10, 84), 0.05),
        "fc3_b":   w(ks[9], (10,), 0.05),
    }


def reference_forward(x, params):
    dn = ("NCHW", "OIHW", "NCHW")
    hp = lax.Precision.HIGHEST
    y = lax.conv_general_dilated(x, params["conv1_w"], (1, 1), "VALID",
                                 dimension_numbers=dn, precision=hp)
    y = jax.nn.relu(y + params["conv1_b"][None, :, None, None])
    y = lax.reduce_window(y, -jnp.inf, lax.max, (1, 1, 2, 2), (1, 1, 2, 2), "VALID")
    y = lax.conv_general_dilated(y, params["conv2_w"], (1, 1), "VALID",
                                 dimension_numbers=dn, precision=hp)
    y = jax.nn.relu(y + params["conv2_b"][None, :, None, None])
    y = lax.reduce_window(y, -jnp.inf, lax.max, (1, 1, 2, 2), (1, 1, 2, 2), "VALID")
    f = y.reshape(x.shape[0], -1)
    f = jax.nn.relu(jnp.dot(f, params["fc1_w"].T, precision=hp) + params["fc1_b"])
    f = jax.nn.relu(jnp.dot(f, params["fc2_w"].T, precision=hp) + params["fc2_b"])
    f = jax.nn.relu(jnp.dot(f, params["fc3_w"].T, precision=hp) + params["fc3_b"])
    return f


if __name__ == "__main__":
    key = jax.random.PRNGKey(0)
    k_x, k_p = jax.random.split(key)
    # LeNet's FC sizing (16*5*5) implies a 3x32x32 input; small batch of 2.
    x = jax.random.normal(k_x, (2, 3, 32, 32), dtype=jnp.float32)
    params = init_params(k_p)
    prep = prepare_params(params, block_batch=8)   # one-time weight re-layout

    fwd = jax.jit(net_forward)
    out = fwd(x, prep)
    jax.block_until_ready(out)
    assert out.shape == (2, 10)

    ref = reference_forward(x, params)
    err = float(jnp.max(jnp.abs(out - ref)))
    assert err < 1e-2, f"mismatch vs reference: max abs err {err}"
    print("KERNEL_OK")
</pallas_src>

<mosaic_0001>
module attributes {stable_mosaic.version = 11 : i64} {
  func.func @_lenet_kernel(%arg0: i32, %arg1: memref<256x96xf32, #tpu.memory_space<vmem>>, %arg2: memref<5x96x168xf32, #tpu.memory_space<vmem>>, %arg3: memref<1x168xf32, #tpu.memory_space<vmem>>, %arg4: memref<2x112x252xf32, #tpu.memory_space<vmem>>, %arg5: memref<2x168x84xf32, #tpu.memory_space<vmem>>, %arg6: memref<5x84x160xf32, #tpu.memory_space<vmem>>, %arg7: memref<1x160xf32, #tpu.memory_space<vmem>>, %arg8: memref<2x40x108xf32, #tpu.memory_space<vmem>>, %arg9: memref<2x160x80xf32, #tpu.memory_space<vmem>>, %arg10: memref<40x40xf32, #tpu.memory_space<vmem>>, %arg11: memref<5x80x128xf32, #tpu.memory_space<vmem>>, %arg12: memref<1x128xf32, #tpu.memory_space<vmem>>, %arg13: memref<128x128xf32, #tpu.memory_space<vmem>>, %arg14: memref<1x128xf32, #tpu.memory_space<vmem>>, %arg15: memref<128x128xf32, #tpu.memory_space<vmem>>, %arg16: memref<1x128xf32, #tpu.memory_space<vmem>>, %arg17: memref<8x128xf32, #tpu.memory_space<vmem>>) attributes {dimension_semantics = [#tpu.dimension_semantics<parallel>], iteration_bounds = array<i64: 1>, scalar_prefetch = 0 : i64, scratch_operands = 0 : i64, tpu.core_type = #tpu.core_type<tc>, window_params = [{transform_indices = @transform_0, window_bounds = array<i64: 256, 96>}, {pipeline_mode = #tpu.pipeline_mode<synchronous>, transform_indices = @transform_1, window_bounds = array<i64: 5, 96, 168>}, {pipeline_mode = #tpu.pipeline_mode<synchronous>, transform_indices = @transform_2, window_bounds = array<i64: 1, 168>}, {pipeline_mode = #tpu.pipeline_mode<synchronous>, transform_indices = @transform_3, window_bounds = array<i64: 2, 112, 252>}, {pipeline_mode = #tpu.pipeline_mode<synchronous>, transform_indices = @transform_4, window_bounds = array<i64: 2, 168, 84>}, {pipeline_mode = #tpu.pipeline_mode<synchronous>, transform_indices = @transform_5, window_bounds = array<i64: 5, 84, 160>}, {pipeline_mode = #tpu.pipeline_mode<synchronous>, transform_indices = @transform_6, window_bounds = array<i64: 1, 160>}, {pipeline_mode = #tpu.pipeline_mode<synchronous>, transform_indices = @transform_7, window_bounds = array<i64: 2, 40, 108>}, {pipeline_mode = #tpu.pipeline_mode<synchronous>, transform_indices = @transform_8, window_bounds = array<i64: 2, 160, 80>}, {pipeline_mode = #tpu.pipeline_mode<synchronous>, transform_indices = @transform_9, window_bounds = array<i64: 40, 40>}, {pipeline_mode = #tpu.pipeline_mode<synchronous>, transform_indices = @transform_10, window_bounds = array<i64: 5, 80, 128>}, {pipeline_mode = #tpu.pipeline_mode<synchronous>, transform_indices = @transform_11, window_bounds = array<i64: 1, 128>}, {pipeline_mode = #tpu.pipeline_mode<synchronous>, transform_indices = @transform_12, window_bounds = array<i64: 128, 128>}, {pipeline_mode = #tpu.pipeline_mode<synchronous>, transform_indices = @transform_13, window_bounds = array<i64: 1, 128>}, {pipeline_mode = #tpu.pipeline_mode<synchronous>, transform_indices = @transform_14, window_bounds = array<i64: 128, 128>}, {pipeline_mode = #tpu.pipeline_mode<synchronous>, transform_indices = @transform_15, window_bounds = array<i64: 1, 128>}, {transform_indices = @transform_16, window_bounds = array<i64: 8, 128>}]} {
    %c0 = arith.constant 0 : index
    %c0_0 = arith.constant 0 : index
    %0 = vector.load %arg1[%c0, %c0_0] : memref<256x96xf32, #tpu.memory_space<vmem>>, vector<252x96xf32>
    %c0_1 = arith.constant 0 : index
    %c0_2 = arith.constant 0 : index
    %c0_3 = arith.constant 0 : index
    %1 = vector.load %arg2[%c0_1, %c0_2, %c0_3] : memref<5x96x168xf32, #tpu.memory_space<vmem>>, vector<1x96x168xf32>
    %2 = vector.shape_cast %1 : vector<1x96x168xf32> to vector<96x168xf32>
    %cst = arith.constant dense<0.000000e+00> : vector<252x168xf32>
    %3 = tpu.matmul %0, %2, %cst {dimension_numbers = #tpu.dot_dimension_numbers<[1], [0], [0], [1], [0, 0, 1, 1], [], []>} : vector<252x96xf32>, vector<96x168xf32>, vector<252x168xf32> -> vector<252x168xf32>
    %c1 = arith.constant 1 : index
    %c0_4 = arith.constant 0 : index
    %4 = vector.load %arg1[%c1, %c0_4] : memref<256x96xf32, #tpu.memory_space<vmem>>, vector<252x96xf32>
    %c1_5 = arith.constant 1 : index
    %c0_6 = arith.constant 0 : index
    %c0_7 = arith.constant 0 : index
    %5 = vector.load %arg2[%c1_5, %c0_6, %c0_7] : memref<5x96x168xf32, #tpu.memory_space<vmem>>, vector<1x96x168xf32>
    %6 = vector.shape_cast %5 : vector<1x96x168xf32> to vector<96x168xf32>
    %cst_8 = arith.constant dense<0.000000e+00> : vector<252x168xf32>
    %7 = tpu.matmul %4, %6, %cst_8 {dimension_numbers = #tpu.dot_dimension_numbers<[1], [0], [0], [1], [0, 0, 1, 1], [], []>} : vector<252x96xf32>, vector<96x168xf32>, vector<252x168xf32> -> vector<252x168xf32>
    %c2 = arith.constant 2 : index
    %c0_9 = arith.constant 0 : index
    %8 = vector.load %arg1[%c2, %c0_9] : memref<256x96xf32, #tpu.memory_space<vmem>>, vector<252x96xf32>
    %c2_10 = arith.constant 2 : index
    %c0_11 = arith.constant 0 : index
    %c0_12 = arith.constant 0 : index
    %9 = vector.load %arg2[%c2_10, %c0_11, %c0_12] : memref<5x96x168xf32, #tpu.memory_space<vmem>>, vector<1x96x168xf32>
    %10 = vector.shape_cast %9 : vector<1x96x168xf32> to vector<96x168xf32>
    %cst_13 = arith.constant dense<0.000000e+00> : vector<252x168xf32>
    %11 = tpu.matmul %8, %10, %cst_13 {dimension_numbers = #tpu.dot_dimension_numbers<[1], [0], [0], [1], [0, 0, 1, 1], [], []>} : vector<252x96xf32>, vector<96x168xf32>, vector<252x168xf32> -> vector<252x168xf32>
    %12 = arith.addf %3, %11 : vector<252x168xf32>
    %c3 = arith.constant 3 : index
    %c0_14 = arith.constant 0 : index
    %13 = vector.load %arg1[%c3, %c0_14] : memref<256x96xf32, #tpu.memory_space<vmem>>, vector<252x96xf32>
    %c3_15 = arith.constant 3 : index
    %c0_16 = arith.constant 0 : index
    %c0_17 = arith.constant 0 : index
    %14 = vector.load %arg2[%c3_15, %c0_16, %c0_17] : memref<5x96x168xf32, #tpu.memory_space<vmem>>, vector<1x96x168xf32>
    %15 = vector.shape_cast %14 : vector<1x96x168xf32> to vector<96x168xf32>
    %cst_18 = arith.constant dense<0.000000e+00> : vector<252x168xf32>
    %16 = tpu.matmul %13, %15, %cst_18 {dimension_numbers = #tpu.dot_dimension_numbers<[1], [0], [0], [1], [0, 0, 1, 1], [], []>} : vector<252x96xf32>, vector<96x168xf32>, vector<252x168xf32> -> vector<252x168xf32>
    %17 = arith.addf %7, %16 : vector<252x168xf32>
    %c4 = arith.constant 4 : index
    %c0_19 = arith.constant 0 : index
    %18 = vector.load %arg1[%c4, %c0_19] : memref<256x96xf32, #tpu.memory_space<vmem>>, vector<252x96xf32>
    %c4_20 = arith.constant 4 : index
    %c0_21 = arith.constant 0 : index
    %c0_22 = arith.constant 0 : index
    %19 = vector.load %arg2[%c4_20, %c0_21, %c0_22] : memref<5x96x168xf32, #tpu.memory_space<vmem>>, vector<1x96x168xf32>
    %20 = vector.shape_cast %19 : vector<1x96x168xf32> to vector<96x168xf32>
    %cst_23 = arith.constant dense<0.000000e+00> : vector<252x168xf32>
    %21 = tpu.matmul %18, %20, %cst_23 {dimension_numbers = #tpu.dot_dimension_numbers<[1], [0], [0], [1], [0, 0, 1, 1], [], []>} : vector<252x96xf32>, vector<96x168xf32>, vector<252x168xf32> -> vector<252x168xf32>
    %22 = arith.addf %12, %21 : vector<252x168xf32>
    %23 = arith.addf %22, %17 : vector<252x168xf32>
    %c0_24 = arith.constant 0 : index
    %c0_25 = arith.constant 0 : index
    %24 = vector.load %arg3[%c0_24, %c0_25] : memref<1x168xf32, #tpu.memory_space<vmem>>, vector<1x168xf32>
    %25 = vector.broadcast %24 : vector<1x168xf32> to vector<252x168xf32>
    %26 = arith.addf %23, %25 : vector<252x168xf32>
    %cst_26 = arith.constant 0.000000e+00 : f32
    %27 = vector.broadcast %cst_26 : f32 to vector<252x168xf32>
    %28 = arith.maximumf %26, %27 : vector<252x168xf32>
    %c0_27 = arith.constant 0 : index
    %c0_28 = arith.constant 0 : index
    %c0_29 = arith.constant 0 : index
    %29 = vector.load %arg4[%c0_27, %c0_28, %c0_29] : memref<2x112x252xf32, #tpu.memory_space<vmem>>, vector<1x112x252xf32>
    %30 = vector.shape_cast %29 : vector<1x112x252xf32> to vector<112x252xf32>
    %cst_30 = arith.constant dense<0.000000e+00> : vector<112x168xf32>
    %31 = tpu.matmul %30, %28, %cst_30 {dimension_numbers = #tpu.dot_dimension_numbers<[1], [0], [0], [1], [0, 0, 1, 1], [], []>} : vector<112x252xf32>, vector<252x168xf32>, vector<112x168xf32> -> vector<112x168xf32>
    %c1_31 = arith.constant 1 : index
    %c0_32 = arith.constant 0 : index
    %c0_33 = arith.constant 0 : index
    %32 = vector.load %arg4[%c1_31, %c0_32, %c0_33] : memref<2x112x252xf32, #tpu.memory_space<vmem>>, vector<1x112x252xf32>
    %33 = vector.shape_cast %32 : vector<1x112x252xf32> to vector<112x252xf32>
    %cst_34 = arith.constant dense<0.000000e+00> : vector<112x168xf32>
    %34 = tpu.matmul %33, %28, %cst_34 {dimension_numbers = #tpu.dot_dimension_numbers<[1], [0], [0], [1], [0, 0, 1, 1], [], []>} : vector<112x252xf32>, vector<252x168xf32>, vector<112x168xf32> -> vector<112x168xf32>
    %35 = arith.maximumf %31, %34 : vector<112x168xf32>
    %c0_35 = arith.constant 0 : index
    %c0_36 = arith.constant 0 : index
    %c0_37 = arith.constant 0 : index
    %36 = vector.load %arg5[%c0_35, %c0_36, %c0_37] : memref<2x168x84xf32, #tpu.memory_space<vmem>>, vector<1x168x84xf32>
    %37 = vector.shape_cast %36 : vector<1x168x84xf32> to vector<168x84xf32>
    %cst_38 = arith.constant dense<0.000000e+00> : vector<112x84xf32>
    %38 = tpu.matmul %35, %37, %cst_38 {dimension_numbers = #tpu.dot_dimension_numbers<[1], [0], [0], [1], [0, 0, 1, 1], [], []>} : vector<112x168xf32>, vector<168x84xf32>, vector<112x84xf32> -> vector<112x84xf32>
    %c1_39 = arith.constant 1 : index
    %c0_40 = arith.constant 0 : index
    %c0_41 = arith.constant 0 : index
    %39 = vector.load %arg5[%c1_39, %c0_40, %c0_41] : memref<2x168x84xf32, #tpu.memory_space<vmem>>, vector<1x168x84xf32>
    %40 = vector.shape_cast %39 : vector<1x168x84xf32> to vector<168x84xf32>
    %cst_42 = arith.constant dense<0.000000e+00> : vector<112x84xf32>
    %41 = tpu.matmul %35, %40, %cst_42 {dimension_numbers = #tpu.dot_dimension_numbers<[1], [0], [0], [1], [0, 0, 1, 1], [], []>} : vector<112x168xf32>, vector<168x84xf32>, vector<112x84xf32> -> vector<112x84xf32>
    %42 = arith.maximumf %38, %41 : vector<112x84xf32>
    %43 = vector.extract_strided_slice %42 {offsets = [0, 0], sizes = [108, 84], strides = [1, 1]} : vector<112x84xf32> to vector<108x84xf32>
    %c0_43 = arith.constant 0 : index
    %c0_44 = arith.constant 0 : index
    %c0_45 = arith.constant 0 : index
    %44 = vector.load %arg6[%c0_43, %c0_44, %c0_45] : memref<5x84x160xf32, #tpu.memory_space<vmem>>, vector<1x84x160xf32>
    %45 = vector.shape_cast %44 : vector<1x84x160xf32> to vector<84x160xf32>
    %cst_46 = arith.constant dense<0.000000e+00> : vector<108x160xf32>
    %46 = tpu.matmul %43, %45, %cst_46 {dimension_numbers = #tpu.dot_dimension_numbers<[1], [0], [0], [1], [0, 0, 1, 1], [], []>} : vector<108x84xf32>, vector<84x160xf32>, vector<108x160xf32> -> vector<108x160xf32>
    %47 = vector.extract_strided_slice %42 {offsets = [1, 0], sizes = [108, 84], strides = [1, 1]} : vector<112x84xf32> to vector<108x84xf32>
    %c1_47 = arith.constant 1 : index
    %c0_48 = arith.constant 0 : index
    %c0_49 = arith.constant 0 : index
    %48 = vector.load %arg6[%c1_47, %c0_48, %c0_49] : memref<5x84x160xf32, #tpu.memory_space<vmem>>, vector<1x84x160xf32>
    %49 = vector.shape_cast %48 : vector<1x84x160xf32> to vector<84x160xf32>
    %cst_50 = arith.constant dense<0.000000e+00> : vector<108x160xf32>
    %50 = tpu.matmul %47, %49, %cst_50 {dimension_numbers = #tpu.dot_dimension_numbers<[1], [0], [0], [1], [0, 0, 1, 1], [], []>} : vector<108x84xf32>, vector<84x160xf32>, vector<108x160xf32> -> vector<108x160xf32>
    %51 = vector.extract_strided_slice %42 {offsets = [2, 0], sizes = [108, 84], strides = [1, 1]} : vector<112x84xf32> to vector<108x84xf32>
    %c2_51 = arith.constant 2 : index
    %c0_52 = arith.constant 0 : index
    %c0_53 = arith.constant 0 : index
    %52 = vector.load %arg6[%c2_51, %c0_52, %c0_53] : memref<5x84x160xf32, #tpu.memory_space<vmem>>, vector<1x84x160xf32>
    %53 = vector.shape_cast %52 : vector<1x84x160xf32> to vector<84x160xf32>
    %cst_54 = arith.constant dense<0.000000e+00> : vector<108x160xf32>
    %54 = tpu.matmul %51, %53, %cst_54 {dimension_numbers = #tpu.dot_dimension_numbers<[1], [0], [0], [1], [0, 0, 1, 1], [], []>} : vector<108x84xf32>, vector<84x160xf32>, vector<108x160xf32> -> vector<108x160xf32>
    %55 = arith.addf %46, %54 : vector<108x160xf32>
    %56 = vector.extract_strided_slice %42 {offsets = [3, 0], sizes = [108, 84], strides = [1, 1]} : vector<112x84xf32> to vector<108x84xf32>
    %c3_55 = arith.constant 3 : index
    %c0_56 = arith.constant 0 : index
    %c0_57 = arith.constant 0 : index
    %57 = vector.load %arg6[%c3_55, %c0_56, %c0_57] : memref<5x84x160xf32, #tpu.memory_space<vmem>>, vector<1x84x160xf32>
    %58 = vector.shape_cast %57 : vector<1x84x160xf32> to vector<84x160xf32>
    %cst_58 = arith.constant dense<0.000000e+00> : vector<108x160xf32>
    %59 = tpu.matmul %56, %58, %cst_58 {dimension_numbers = #tpu.dot_dimension_numbers<[1], [0], [0], [1], [0, 0, 1, 1], [], []>} : vector<108x84xf32>, vector<84x160xf32>, vector<108x160xf32> -> vector<108x160xf32>
    %60 = arith.addf %50, %59 : vector<108x160xf32>
    %61 = vector.extract_strided_slice %42 {offsets = [4, 0], sizes = [108, 84], strides = [1, 1]} : vector<112x84xf32> to vector<108x84xf32>
    %c4_59 = arith.constant 4 : index
    %c0_60 = arith.constant 0 : index
    %c0_61 = arith.constant 0 : index
    %62 = vector.load %arg6[%c4_59, %c0_60, %c0_61] : memref<5x84x160xf32, #tpu.memory_space<vmem>>, vector<1x84x160xf32>
    %63 = vector.shape_cast %62 : vector<1x84x160xf32> to vector<84x160xf32>
    %cst_62 = arith.constant dense<0.000000e+00> : vector<108x160xf32>
    %64 = tpu.matmul %61, %63, %cst_62 {dimension_numbers = #tpu.dot_dimension_numbers<[1], [0], [0], [1], [0, 0, 1, 1], [], []>} : vector<108x84xf32>, vector<84x160xf32>, vector<108x160xf32> -> vector<108x160xf32>
    %65 = arith.addf %55, %64 : vector<108x160xf32>
    %66 = arith.addf %65, %60 : vector<108x160xf32>
    %c0_63 = arith.constant 0 : index
    %c0_64 = arith.constant 0 : index
    %67 = vector.load %arg7[%c0_63, %c0_64] : memref<1x160xf32, #tpu.memory_space<vmem>>, vector<1x160xf32>
    %68 = vector.broadcast %67 : vector<1x160xf32> to vector<108x160xf32>
    %69 = arith.addf %66, %68 : vector<108x160xf32>
    %cst_65 = arith.constant 0.000000e+00 : f32
    %70 = vector.broadcast %cst_65 : f32 to vector<108x160xf32>
    %71 = arith.maximumf %69, %70 : vector<108x160xf32>
    %c0_66 = arith.constant 0 : index
    %c0_67 = arith.constant 0 : index
    %c0_68 = arith.constant 0 : index
    %72 = vector.load %arg8[%c0_66, %c0_67, %c0_68] : memref<2x40x108xf32, #tpu.memory_space<vmem>>, vector<1x40x108xf32>
    %73 = vector.shape_cast %72 : vector<1x40x108xf32> to vector<40x108xf32>
    %cst_69 = arith.constant dense<0.000000e+00> : vector<40x160xf32>
    %74 = tpu.matmul %73, %71, %cst_69 {dimension_numbers = #tpu.dot_dimension_numbers<[1], [0], [0], [1], [0, 0, 1, 1], [], []>} : vector<40x108xf32>, vector<108x160xf32>, vector<40x160xf32> -> vector<40x160xf32>
    %c1_70 = arith.constant 1 : index
    %c0_71 = arith.constant 0 : index
    %c0_72 = arith.constant 0 : index
    %75 = vector.load %arg8[%c1_70, %c0_71, %c0_72] : memref<2x40x108xf32, #tpu.memory_space<vmem>>, vector<1x40x108xf32>
    %76 = vector.shape_cast %75 : vector<1x40x108xf32> to vector<40x108xf32>
    %cst_73 = arith.constant dense<0.000000e+00> : vector<40x160xf32>
    %77 = tpu.matmul %76, %71, %cst_73 {dimension_numbers = #tpu.dot_dimension_numbers<[1], [0], [0], [1], [0, 0, 1, 1], [], []>} : vector<40x108xf32>, vector<108x160xf32>, vector<40x160xf32> -> vector<40x160xf32>
    %78 = arith.maximumf %74, %77 : vector<40x160xf32>
    %c0_74 = arith.constant 0 : index
    %c0_75 = arith.constant 0 : index
    %c0_76 = arith.constant 0 : index
    %79 = vector.load %arg9[%c0_74, %c0_75, %c0_76] : memref<2x160x80xf32, #tpu.memory_space<vmem>>, vector<1x160x80xf32>
    %80 = vector.shape_cast %79 : vector<1x160x80xf32> to vector<160x80xf32>
    %cst_77 = arith.constant dense<0.000000e+00> : vector<40x80xf32>
    %81 = tpu.matmul %78, %80, %cst_77 {dimension_numbers = #tpu.dot_dimension_numbers<[1], [0], [0], [1], [0, 0, 1, 1], [], []>} : vector<40x160xf32>, vector<160x80xf32>, vector<40x80xf32> -> vector<40x80xf32>
    %c1_78 = arith.constant 1 : index
    %c0_79 = arith.constant 0 : index
    %c0_80 = arith.constant 0 : index
    %82 = vector.load %arg9[%c1_78, %c0_79, %c0_80] : memref<2x160x80xf32, #tpu.memory_space<vmem>>, vector<1x160x80xf32>
    %83 = vector.shape_cast %82 : vector<1x160x80xf32> to vector<160x80xf32>
    %cst_81 = arith.constant dense<0.000000e+00> : vector<40x80xf32>
    %84 = tpu.matmul %78, %83, %cst_81 {dimension_numbers = #tpu.dot_dimension_numbers<[1], [0], [0], [1], [0, 0, 1, 1], [], []>} : vector<40x160xf32>, vector<160x80xf32>, vector<40x80xf32> -> vector<40x80xf32>
    %85 = arith.maximumf %81, %84 : vector<40x80xf32>
    %c0_82 = arith.constant 0 : index
    %c0_83 = arith.constant 0 : index
    %86 = vector.load %arg10[%c0_82, %c0_83] : memref<40x40xf32, #tpu.memory_space<vmem>>, vector<40x40xf32>
    %cst_84 = arith.constant dense<0.000000e+00> : vector<40x80xf32>
    %87 = tpu.matmul %86, %85, %cst_84 {dimension_numbers = #tpu.dot_dimension_numbers<[1], [0], [0], [1], [0, 0, 1, 1], [], []>} : vector<40x40xf32>, vector<40x80xf32>, vector<40x80xf32> -> vector<40x80xf32>
    %88 = vector.extract_strided_slice %87 {offsets = [0, 0], sizes = [8, 80], strides = [1, 1]} : vector<40x80xf32> to vector<8x80xf32>
    %c0_85 = arith.constant 0 : index
    %c0_86 = arith.constant 0 : index
    %c0_87 = arith.constant 0 : index
    %89 = vector.load %arg11[%c0_85, %c0_86, %c0_87] : memref<5x80x128xf32, #tpu.memory_space<vmem>>, vector<1x80x128xf32>
    %90 = vector.shape_cast %89 : vector<1x80x128xf32> to vector<80x128xf32>
    %cst_88 = arith.constant dense<0.000000e+00> : vector<8x128xf32>
    %91 = tpu.matmul %88, %90, %cst_88 {dimension_numbers = #tpu.dot_dimension_numbers<[1], [0], [0], [1], [0, 0, 1, 1], [], []>} : vector<8x80xf32>, vector<80x128xf32>, vector<8x128xf32> -> vector<8x128xf32>
    %92 = vector.extract_strided_slice %87 {offsets = [8, 0], sizes = [8, 80], strides = [1, 1]} : vector<40x80xf32> to vector<8x80xf32>
    %c1_89 = arith.constant 1 : index
    %c0_90 = arith.constant 0 : index
    %c0_91 = arith.constant 0 : index
    %93 = vector.load %arg11[%c1_89, %c0_90, %c0_91] : memref<5x80x128xf32, #tpu.memory_space<vmem>>, vector<1x80x128xf32>
    %94 = vector.shape_cast %93 : vector<1x80x128xf32> to vector<80x128xf32>
    %cst_92 = arith.constant dense<0.000000e+00> : vector<8x128xf32>
    %95 = tpu.matmul %92, %94, %cst_92 {dimension_numbers = #tpu.dot_dimension_numbers<[1], [0], [0], [1], [0, 0, 1, 1], [], []>} : vector<8x80xf32>, vector<80x128xf32>, vector<8x128xf32> -> vector<8x128xf32>
    %96 = vector.extract_strided_slice %87 {offsets = [16, 0], sizes = [8, 80], strides = [1, 1]} : vector<40x80xf32> to vector<8x80xf32>
    %c2_93 = arith.constant 2 : index
    %c0_94 = arith.constant 0 : index
    %c0_95 = arith.constant 0 : index
    %97 = vector.load %arg11[%c2_93, %c0_94, %c0_95] : memref<5x80x128xf32, #tpu.memory_space<vmem>>, vector<1x80x128xf32>
    %98 = vector.shape_cast %97 : vector<1x80x128xf32> to vector<80x128xf32>
    %cst_96 = arith.constant dense<0.000000e+00> : vector<8x128xf32>
    %99 = tpu.matmul %96, %98, %cst_96 {dimension_numbers = #tpu.dot_dimension_numbers<[1], [0], [0], [1], [0, 0, 1, 1], [], []>} : vector<8x80xf32>, vector<80x128xf32>, vector<8x128xf32> -> vector<8x128xf32>
    %100 = arith.addf %91, %99 : vector<8x128xf32>
    %101 = vector.extract_strided_slice %87 {offsets = [24, 0], sizes = [8, 80], strides = [1, 1]} : vector<40x80xf32> to vector<8x80xf32>
    %c3_97 = arith.constant 3 : index
    %c0_98 = arith.constant 0 : index
    %c0_99 = arith.constant 0 : index
    %102 = vector.load %arg11[%c3_97, %c0_98, %c0_99] : memref<5x80x128xf32, #tpu.memory_space<vmem>>, vector<1x80x128xf32>
    %103 = vector.shape_cast %102 : vector<1x80x128xf32> to vector<80x128xf32>
    %cst_100 = arith.constant dense<0.000000e+00> : vector<8x128xf32>
    %104 = tpu.matmul %101, %103, %cst_100 {dimension_numbers = #tpu.dot_dimension_numbers<[1], [0], [0], [1], [0, 0, 1, 1], [], []>} : vector<8x80xf32>, vector<80x128xf32>, vector<8x128xf32> -> vector<8x128xf32>
    %105 = arith.addf %95, %104 : vector<8x128xf32>
    %106 = vector.extract_strided_slice %87 {offsets = [32, 0], sizes = [8, 80], strides = [1, 1]} : vector<40x80xf32> to vector<8x80xf32>
    %c4_101 = arith.constant 4 : index
    %c0_102 = arith.constant 0 : index
    %c0_103 = arith.constant 0 : index
    %107 = vector.load %arg11[%c4_101, %c0_102, %c0_103] : memref<5x80x128xf32, #tpu.memory_space<vmem>>, vector<1x80x128xf32>
    %108 = vector.shape_cast %107 : vector<1x80x128xf32> to vector<80x128xf32>
    %cst_104 = arith.constant dense<0.000000e+00> : vector<8x128xf32>
    %109 = tpu.matmul %106, %108, %cst_104 {dimension_numbers = #tpu.dot_dimension_numbers<[1], [0], [0], [1], [0, 0, 1, 1], [], []>} : vector<8x80xf32>, vector<80x128xf32>, vector<8x128xf32> -> vector<8x128xf32>
    %110 = arith.addf %100, %109 : vector<8x128xf32>
    %111 = arith.addf %110, %105 : vector<8x128xf32>
    %c0_105 = arith.constant 0 : index
    %c0_106 = arith.constant 0 : index
    %112 = vector.load %arg12[%c0_105, %c0_106] : memref<1x128xf32, #tpu.memory_space<vmem>>, vector<1x128xf32>
    %113 = vector.broadcast %112 : vector<1x128xf32> to vector<8x128xf32>
    %114 = arith.addf %111, %113 : vector<8x128xf32>
    %cst_107 = arith.constant 0.000000e+00 : f32
    %115 = vector.broadcast %cst_107 : f32 to vector<8x128xf32>
    %116 = arith.maximumf %114, %115 : vector<8x128xf32>
    %c0_108 = arith.constant 0 : index
    %c0_109 = arith.constant 0 : index
    %117 = vector.load %arg13[%c0_108, %c0_109] : memref<128x128xf32, #tpu.memory_space<vmem>>, vector<128x128xf32>
    %cst_110 = arith.constant dense<0.000000e+00> : vector<8x128xf32>
    %118 = tpu.matmul %116, %117, %cst_110 {dimension_numbers = #tpu.dot_dimension_numbers<[1], [0], [0], [1], [0, 0, 1, 1], [], []>} : vector<8x128xf32>, vector<128x128xf32>, vector<8x128xf32> -> vector<8x128xf32>
    %c0_111 = arith.constant 0 : index
    %c0_112 = arith.constant 0 : index
    %119 = vector.load %arg14[%c0_111, %c0_112] : memref<1x128xf32, #tpu.memory_space<vmem>>, vector<1x128xf32>
    %120 = vector.broadcast %119 : vector<1x128xf32> to vector<8x128xf32>
    %121 = arith.addf %118, %120 : vector<8x128xf32>
    %cst_113 = arith.constant 0.000000e+00 : f32
    %122 = vector.broadcast %cst_113 : f32 to vector<8x128xf32>
    %123 = arith.maximumf %121, %122 : vector<8x128xf32>
    %c0_114 = arith.constant 0 : index
    %c0_115 = arith.constant 0 : index
    %124 = vector.load %arg15[%c0_114, %c0_115] : memref<128x128xf32, #tpu.memory_space<vmem>>, vector<128x128xf32>
    %cst_116 = arith.constant dense<0.000000e+00> : vector<8x128xf32>
    %125 = tpu.matmul %123, %124, %cst_116 {dimension_numbers = #tpu.dot_dimension_numbers<[1], [0], [0], [1], [0, 0, 1, 1], [], []>} : vector<8x128xf32>, vector<128x128xf32>, vector<8x128xf32> -> vector<8x128xf32>
    %c0_117 = arith.constant 0 : index
    %c0_118 = arith.constant 0 : index
    %126 = vector.load %arg16[%c0_117, %c0_118] : memref<1x128xf32, #tpu.memory_space<vmem>>, vector<1x128xf32>
    %127 = vector.broadcast %126 : vector<1x128xf32> to vector<8x128xf32>
    %128 = arith.addf %125, %127 : vector<8x128xf32>
    %cst_119 = arith.constant 0.000000e+00 : f32
    %129 = vector.broadcast %cst_119 : f32 to vector<8x128xf32>
    %130 = arith.maximumf %128, %129 : vector<8x128xf32>
    %c0_120 = arith.constant 0 : index
    %c0_121 = arith.constant 0 : index
    %131 = vector.load %arg17[%c0_120, %c0_121] : memref<8x128xf32, #tpu.memory_space<vmem>>, vector<8x128xf32>
    tpu.vector_store %arg17[%c0_120, %c0_121], %130 {strides = array<i32>} : memref<8x128xf32, #tpu.memory_space<vmem>>, vector<8x128xf32>,
    return
  }
  func.func @transform_0(%arg0: i32) -> (i32, i32) {
    %c0_i32 = arith.constant 0 : i32
    %c0_i32_0 = arith.constant 0 : i32
    return %arg0, %c0_i32 : i32, i32
  }
  func.func @transform_1(%arg0: i32) -> (i32, i32, i32) {
    %c0_i32 = arith.constant 0 : i32
    %c0_i32_0 = arith.constant 0 : i32
    %c0_i32_1 = arith.constant 0 : i32
    %c0_i32_2 = arith.constant 0 : i32
    return %c0_i32, %c0_i32_0, %c0_i32_1 : i32, i32, i32
  }
  func.func @transform_2(%arg0: i32) -> (i32, i32) {
    %c0_i32 = arith.constant 0 : i32
    %c0_i32_0 = arith.constant 0 : i32
    %c0_i32_1 = arith.constant 0 : i32
    return %c0_i32, %c0_i32_0 : i32, i32
  }
  func.func @transform_3(%arg0: i32) -> (i32, i32, i32) {
    %c0_i32 = arith.constant 0 : i32
    %c0_i32_0 = arith.constant 0 : i32
    %c0_i32_1 = arith.constant 0 : i32
    %c0_i32_2 = arith.constant 0 : i32
    return %c0_i32, %c0_i32_0, %c0_i32_1 : i32, i32, i32
  }
  func.func @transform_4(%arg0: i32) -> (i32, i32, i32) {
    %c0_i32 = arith.constant 0 : i32
    %c0_i32_0 = arith.constant 0 : i32
    %c0_i32_1 = arith.constant 0 : i32
    %c0_i32_2 = arith.constant 0 : i32
    return %c0_i32, %c0_i32_0, %c0_i32_1 : i32, i32, i32
  }
  func.func @transform_5(%arg0: i32) -> (i32, i32, i32) {
    %c0_i32 = arith.constant 0 : i32
    %c0_i32_0 = arith.constant 0 : i32
    %c0_i32_1 = arith.constant 0 : i32
    %c0_i32_2 = arith.constant 0 : i32
    return %c0_i32, %c0_i32_0, %c0_i32_1 : i32, i32, i32
  }
  func.func @transform_6(%arg0: i32) -> (i32, i32) {
    %c0_i32 = arith.constant 0 : i32
    %c0_i32_0 = arith.constant 0 : i32
    %c0_i32_1 = arith.constant 0 : i32
    return %c0_i32, %c0_i32_0 : i32, i32
  }
  func.func @transform_7(%arg0: i32) -> (i32, i32, i32) {
    %c0_i32 = arith.constant 0 : i32
    %c0_i32_0 = arith.constant 0 : i32
    %c0_i32_1 = arith.constant 0 : i32
    %c0_i32_2 = arith.constant 0 : i32
    return %c0_i32, %c0_i32_0, %c0_i32_1 : i32, i32, i32
  }
  func.func @transform_8(%arg0: i32) -> (i32, i32, i32) {
    %c0_i32 = arith.constant 0 : i32
    %c0_i32_0 = arith.constant 0 : i32
    %c0_i32_1 = arith.constant 0 : i32
    %c0_i32_2 = arith.constant 0 : i32
    return %c0_i32, %c0_i32_0, %c0_i32_1 : i32, i32, i32
  }
  func.func @transform_9(%arg0: i32) -> (i32, i32) {
    %c0_i32 = arith.constant 0 : i32
    %c0_i32_0 = arith.constant 0 : i32
    %c0_i32_1 = arith.constant 0 : i32
    return %c0_i32, %c0_i32_0 : i32, i32
  }
  func.func @transform_10(%arg0: i32) -> (i32, i32, i32) {
    %c0_i32 = arith.constant 0 : i32
    %c0_i32_0 = arith.constant 0 : i32
    %c0_i32_1 = arith.constant 0 : i32
    %c0_i32_2 = arith.constant 0 : i32
    return %c0_i32, %c0_i32_0, %c0_i32_1 : i32, i32, i32
  }
  func.func @transform_11(%arg0: i32) -> (i32, i32) {
    %c0_i32 = arith.constant 0 : i32
    %c0_i32_0 = arith.constant 0 : i32
    %c0_i32_1 = arith.constant 0 : i32
    return %c0_i32, %c0_i32_0 : i32, i32
  }
  func.func @transform_12(%arg0: i32) -> (i32, i32) {
    %c0_i32 = arith.constant 0 : i32
    %c0_i32_0 = arith.constant 0 : i32
    %c0_i32_1 = arith.constant 0 : i32
    return %c0_i32, %c0_i32_0 : i32, i32
  }
  func.func @transform_13(%arg0: i32) -> (i32, i32) {
    %c0_i32 = arith.constant 0 : i32
    %c0_i32_0 = arith.constant 0 : i32
    %c0_i32_1 = arith.constant 0 : i32
    return %c0_i32, %c0_i32_0 : i32, i32
  }
  func.func @transform_14(%arg0: i32) -> (i32, i32) {
    %c0_i32 = arith.constant 0 : i32
    %c0_i32_0 = arith.constant 0 : i32
    %c0_i32_1 = arith.constant 0 : i32
    return %c0_i32, %c0_i32_0 : i32, i32
  }
  func.func @transform_15(%arg0: i32) -> (i32, i32) {
    %c0_i32 = arith.constant 0 : i32
    %c0_i32_0 = arith.constant 0 : i32
    %c0_i32_1 = arith.constant 0 : i32
    return %c0_i32, %c0_i32_0 : i32, i32
  }
  func.func @transform_16(%arg0: i32) -> (i32, i32) {
    %c0_i32 = arith.constant 0 : i32
    %c0_i32_0 = arith.constant 0 : i32
    return %arg0, %c0_i32 : i32, i32
  }
}

</mosaic_0001>

<llo_original>
// kernel: net_forward.1
$region0: #{net_forward.1}
  #allocation0 [shape = 'u32[]', space=smem, size = 0x4, offset = 0x4, fixed_abs, tag = 'smem constant byte address 0x4 - core index']
  #allocation1 [shape = 'u32[144,128]{1,0:T(1,128)}', space=vmem, size = 0x12000, scoped, tag = 'internal scratch']
  %s0 = inlined_call_operand.vmem [shape: f32[256,96], index: 0, kind: input, shape index: {}]
  %s1 = inlined_call_operand.vmem [shape: f32[5,96,168], index: 1, kind: input, shape index: {}]
  %s2 = inlined_call_operand.vmem [shape: f32[1,168], index: 2, kind: input, shape index: {}]
  %s3 = inlined_call_operand.vmem [shape: f32[2,112,252], index: 3, kind: input, shape index: {}]
  %s4 = inlined_call_operand.vmem [shape: f32[2,168,84], index: 4, kind: input, shape index: {}]
  %s5 = inlined_call_operand.vmem [shape: f32[5,84,160], index: 5, kind: input, shape index: {}]
  %s6 = inlined_call_operand.vmem [shape: f32[1,160], index: 6, kind: input, shape index: {}]
  %s7 = inlined_call_operand.vmem [shape: f32[2,40,108], index: 7, kind: input, shape index: {}]
  %s8 = inlined_call_operand.vmem [shape: f32[2,160,80], index: 8, kind: input, shape index: {}]
  %s9 = inlined_call_operand.vmem [shape: f32[40,40], index: 9, kind: input, shape index: {}]
  %s10 = inlined_call_operand.vmem [shape: f32[5,80,128], index: 10, kind: input, shape index: {}]
  %s11 = inlined_call_operand.vmem [shape: f32[1,128], index: 11, kind: input, shape index: {}]
  %s12 = inlined_call_operand.vmem [shape: f32[128,128], index: 12, kind: input, shape index: {}]
  %s13 = inlined_call_operand.vmem [shape: f32[1,128], index: 13, kind: input, shape index: {}]
  %s14 = inlined_call_operand.vmem [shape: f32[128,128], index: 14, kind: input, shape index: {}]
  %s15 = inlined_call_operand.vmem [shape: f32[1,128], index: 15, kind: input, shape index: {}]
  %s16 = inlined_call_operand.vmem [shape: f32[8,128], index: 16, kind: output, shape index: {}]
  %s17 = sld [smem:[#allocation0]]
  $region74: #{net_forward.1} parent=0
    _
  %s19 = ssub.s32 1, %s17
  %s20 = scalar_select 0, %s19, %s17
  // Predicated region
  $region2: #{net_forward.1} parent=0 // pred_check
    _
  $region3: #{net_forward.1} parent=0 // pred_check_branch
    %22 = sbr.rel (0) target = $region5
  $region4: #{net_forward.1} parent=0 // pred_region
    _
  $region5: #{net_forward.1} parent=0 // pred_fallthru
    _
  // Predicated region
  $region6: #{net_forward.1} parent=0 // pred_check
    _
  $region7: #{net_forward.1} parent=0 // pred_check_branch
    %24 = sbr.rel (0) target = $region9
  $region8: #{net_forward.1} parent=0 // pred_region
    _
  $region9: #{net_forward.1} parent=0 // pred_fallthru
    _
  // Predicated region
  $region10: #{net_forward.1} parent=0 // pred_check
    _
  $region11: #{net_forward.1} parent=0 // pred_check_branch
    %26 = sbr.rel (0) target = $region13
  $region12: #{net_forward.1} parent=0 // pred_region
    _
  $region13: #{net_forward.1} parent=0 // pred_fallthru
    _
  // Predicated region
  $region14: #{net_forward.1} parent=0 // pred_check
    _
  $region15: #{net_forward.1} parent=0 // pred_check_branch
    %28 = sbr.rel (0) target = $region17
  $region16: #{net_forward.1} parent=0 // pred_region
    _
  $region17: #{net_forward.1} parent=0 // pred_fallthru
    _
  // Predicated region
  $region18: #{net_forward.1} parent=0 // pred_check
    _
  $region19: #{net_forward.1} parent=0 // pred_check_branch
    %30 = sbr.rel (0) target = $region21
  $region20: #{net_forward.1} parent=0 // pred_region
    _
  $region21: #{net_forward.1} parent=0 // pred_fallthru
    _
  // Predicated region
  $region22: #{net_forward.1} parent=0 // pred_check
    _
  $region23: #{net_forward.1} parent=0 // pred_check_branch
    %32 = sbr.rel (0) target = $region25
  $region24: #{net_forward.1} parent=0 // pred_region
    _
  $region25: #{net_forward.1} parent=0 // pred_fallthru
    _
  // Predicated region
  $region26: #{net_forward.1} parent=0 // pred_check
    _
  $region27: #{net_forward.1} parent=0 // pred_check_branch
    %34 = sbr.rel (0) target = $region29
  $region28: #{net_forward.1} parent=0 // pred_region
    _
  $region29: #{net_forward.1} parent=0 // pred_fallthru
    _
  // Predicated region
  $region30: #{net_forward.1} parent=0 // pred_check
    _
  $region31: #{net_forward.1} parent=0 // pred_check_branch
    %36 = sbr.rel (0) target = $region33
  $region32: #{net_forward.1} parent=0 // pred_region
    _
  $region33: #{net_forward.1} parent=0 // pred_fallthru
    _
  // Predicated region
  $region34: #{net_forward.1} parent=0 // pred_check
    _
  $region35: #{net_forward.1} parent=0 // pred_check_branch
    %38 = sbr.rel (0) target = $region37
  $region36: #{net_forward.1} parent=0 // pred_region
    _
  $region37: #{net_forward.1} parent=0 // pred_fallthru
    _
  // Predicated region
  $region38: #{net_forward.1} parent=0 // pred_check
    _
  $region39: #{net_forward.1} parent=0 // pred_check_branch
    %40 = sbr.rel (0) target = $region41
  $region40: #{net_forward.1} parent=0 // pred_region
    _
  $region41: #{net_forward.1} parent=0 // pred_fallthru
    _
  // Predicated region
  $region42: #{net_forward.1} parent=0 // pred_check
    _
  $region43: #{net_forward.1} parent=0 // pred_check_branch
    %42 = sbr.rel (0) target = $region45
  $region44: #{net_forward.1} parent=0 // pred_region
    _
  $region45: #{net_forward.1} parent=0 // pred_fallthru
    _
  // Predicated region
  $region46: #{net_forward.1} parent=0 // pred_check
    _
  $region47: #{net_forward.1} parent=0 // pred_check_branch
    %44 = sbr.rel (0) target = $region49
  $region48: #{net_forward.1} parent=0 // pred_region
    _
  $region49: #{net_forward.1} parent=0 // pred_fallthru
    _
  // Predicated region
  $region50: #{net_forward.1} parent=0 // pred_check
    _
  $region51: #{net_forward.1} parent=0 // pred_check_branch
    %46 = sbr.rel (0) target = $region53
  $region52: #{net_forward.1} parent=0 // pred_region
    _
  $region53: #{net_forward.1} parent=0 // pred_fallthru
    _
  // Predicated region
  $region54: #{net_forward.1} parent=0 // pred_check
    _
  $region55: #{net_forward.1} parent=0 // pred_check_branch
    %48 = sbr.rel (0) target = $region57
  $region56: #{net_forward.1} parent=0 // pred_region
    _
  $region57: #{net_forward.1} parent=0 // pred_fallthru
    _
  // Predicated region
  $region58: #{net_forward.1} parent=0 // pred_check
    _
  $region59: #{net_forward.1} parent=0 // pred_check_branch
    %50 = sbr.rel (0) target = $region61
  $region60: #{net_forward.1} parent=0 // pred_region
    _
  $region61: #{net_forward.1} parent=0 // pred_fallthru
    _
  // Predicated region
  $region62: #{net_forward.1} parent=0 // pred_check
    _
  $region63: #{net_forward.1} parent=0 // pred_check_branch
    %52 = sbr.rel (0) target = $region65
  $region64: #{net_forward.1} parent=0 // pred_region
    _
  $region65: #{net_forward.1} parent=0 // pred_fallthru
    _
  %v53 = vld [vmem:[%s0] sm:$0xff]
  %v54 = vld [vmem:[%s0 + $0x8] sm:$0xff]
  %v55 = vld [vmem:[%s0 + $0x10] sm:$0xff]
  %v56 = vld [vmem:[%s0 + $0x18] sm:$0xff]
  %v57 = vld [vmem:[%s0 + $0x20] sm:$0xff]
  %v58 = vld [vmem:[%s0 + $0x28] sm:$0xff]
  %v59 = vld [vmem:[%s0 + $0x30] sm:$0xff]
  %v60 = vld [vmem:[%s0 + $0x38] sm:$0xff]
  %v61 = vld [vmem:[%s0 + $0x40] sm:$0xff]
  %v62 = vld [vmem:[%s0 + $0x48] sm:$0xff]
  %v63 = vld [vmem:[%s0 + $0x50] sm:$0xff]
  %v64 = vld [vmem:[%s0 + $0x58] sm:$0xff]
  %v65 = vld [vmem:[%s0 + $0x60] sm:$0xff]
  %v66 = vld [vmem:[%s0 + $0x68] sm:$0xff]
  %v67 = vld [vmem:[%s0 + $0x70] sm:$0xff]
  %v68 = vld [vmem:[%s0 + $0x78] sm:$0xff]
  %v69 = vld [vmem:[%s0 + $0x80] sm:$0xff]
  %v70 = vld [vmem:[%s0 + $0x88] sm:$0xff]
  %v71 = vld [vmem:[%s0 + $0x90] sm:$0xff]
  %v72 = vld [vmem:[%s0 + $0x98] sm:$0xff]
  %v73 = vld [vmem:[%s0 + $0xa0] sm:$0xff]
  %v74 = vld [vmem:[%s0 + $0xa8] sm:$0xff]
  %v75 = vld [vmem:[%s0 + $0xb0] sm:$0xff]
  %v76 = vld [vmem:[%s0 + $0xb8] sm:$0xff]
  %v77 = vld [vmem:[%s0 + $0xc0] sm:$0xff]
  %v78 = vld [vmem:[%s0 + $0xc8] sm:$0xff]
  %v79 = vld [vmem:[%s0 + $0xd0] sm:$0xff]
  %v80 = vld [vmem:[%s0 + $0xd8] sm:$0xff]
  %v81 = vld [vmem:[%s0 + $0xe0] sm:$0xff]
  %v82 = vld [vmem:[%s0 + $0xe8] sm:$0xff]
  %v83 = vld [vmem:[%s0 + $0xf0] sm:$0xff]
  %v84 = vld [vmem:[%s0 + $0xf8] sm:$0xf]
  %v85 = vld [vmem:[%s1] sm:$0xff]
  %v86 = vld [vmem:[%s1 + $0x8] sm:$0xff]
  %v87 = vld [vmem:[%s1 + $0x10] sm:$0xff]
  %v88 = vld [vmem:[%s1 + $0x18] sm:$0xff]
  %v89 = vld [vmem:[%s1 + $0x20] sm:$0xff]
  %v90 = vld [vmem:[%s1 + $0x28] sm:$0xff]
  %v91 = vld [vmem:[%s1 + $0x30] sm:$0xff]
  %v92 = vld [vmem:[%s1 + $0x38] sm:$0xff]
  %v93 = vld [vmem:[%s1 + $0x40] sm:$0xff]
  %v94 = vld [vmem:[%s1 + $0x48] sm:$0xff]
  %v95 = vld [vmem:[%s1 + $0x50] sm:$0xff]
  %v96 = vld [vmem:[%s1 + $0x58] sm:$0xff]
  %v97 = vld [vmem:[%s1 + $0x60] sm:$0xff]
  %v98 = vld [vmem:[%s1 + $0x68] sm:$0xff]
  %v99 = vld [vmem:[%s1 + $0x70] sm:$0xff]
  %v100 = vld [vmem:[%s1 + $0x78] sm:$0xff]
  %v101 = vld [vmem:[%s1 + $0x80] sm:$0xff]
  %v102 = vld [vmem:[%s1 + $0x88] sm:$0xff]
  %v103 = vld [vmem:[%s1 + $0x90] sm:$0xff]
  %v104 = vld [vmem:[%s1 + $0x98] sm:$0xff]
  %v105 = vld [vmem:[%s1 + $0xa0] sm:$0xff]
  %v106 = vld [vmem:[%s1 + $0xa8] sm:$0xff]
  %v107 = vld [vmem:[%s1 + $0xb0] sm:$0xff]
  %v108 = vld [vmem:[%s1 + $0xb8] sm:$0xff]
  %v109 = vld [vmem:[%s0 + $0x1] sm:$0xff]
  %v110 = vld [vmem:[%s0 + $0x9] sm:$0xff]
  %v111 = vld [vmem:[%s0 + $0x11] sm:$0xff]
  %v112 = vld [vmem:[%s0 + $0x19] sm:$0xff]
  %v113 = vld [vmem:[%s0 + $0x21] sm:$0xff]
  %v114 = vld [vmem:[%s0 + $0x29] sm:$0xff]
  %v115 = vld [vmem:[%s0 + $0x31] sm:$0xff]
  %v116 = vld [vmem:[%s0 + $0x39] sm:$0xff]
  %v117 = vld [vmem:[%s0 + $0x41] sm:$0xff]
  %v118 = vld [vmem:[%s0 + $0x49] sm:$0xff]
  %v119 = vld [vmem:[%s0 + $0x51] sm:$0xff]
  %v120 = vld [vmem:[%s0 + $0x59] sm:$0xff]
  %v121 = vld [vmem:[%s0 + $0x61] sm:$0xff]
  %v122 = vld [vmem:[%s0 + $0x69] sm:$0xff]
  %v123 = vld [vmem:[%s0 + $0x71] sm:$0xff]
  %v124 = vld [vmem:[%s0 + $0x79] sm:$0xff]
  %v125 = vld [vmem:[%s0 + $0x81] sm:$0xff]
  %v126 = vld [vmem:[%s0 + $0x89] sm:$0xff]
  %v127 = vld [vmem:[%s0 + $0x91] sm:$0xff]
  %v128 = vld [vmem:[%s0 + $0x99] sm:$0xff]
  %v129 = vld [vmem:[%s0 + $0xa1] sm:$0xff]
  %v130 = vld [vmem:[%s0 + $0xa9] sm:$0xff]
  %v131 = vld [vmem:[%s0 + $0xb1] sm:$0xff]
  %v132 = vld [vmem:[%s0 + $0xb9] sm:$0xff]
  %v133 = vld [vmem:[%s0 + $0xc1] sm:$0xff]
  %v134 = vld [vmem:[%s0 + $0xc9] sm:$0xff]
  %v135 = vld [vmem:[%s0 + $0xd1] sm:$0xff]
  %v136 = vld [vmem:[%s0 + $0xd9] sm:$0xff]
  %v137 = vld [vmem:[%s0 + $0xe1] sm:$0xff]
  %v138 = vld [vmem:[%s0 + $0xe9] sm:$0xff]
  %v139 = vld [vmem:[%s0 + $0xf1] sm:$0xff]
  %v140 = vld [vmem:[%s0 + $0xf9] sm:$0xf]
  %s141 = scalar_lea.vmem %s1, 192
  %v142 = vld [vmem:[%s141] sm:$0xff]
  %v143 = vld [vmem:[%s141 + $0x8] sm:$0xff]
  %v144 = vld [vmem:[%s141 + $0x10] sm:$0xff]
  %v145 = vld [vmem:[%s141 + $0x18] sm:$0xff]
  %v146 = vld [vmem:[%s141 + $0x20] sm:$0xff]
  %v147 = vld [vmem:[%s141 + $0x28] sm:$0xff]
  %v148 = vld [vmem:[%s141 + $0x30] sm:$0xff]
  %v149 = vld [vmem:[%s141 + $0x38] sm:$0xff]
  %v150 = vld [vmem:[%s141 + $0x40] sm:$0xff]
  %v151 = vld [vmem:[%s141 + $0x48] sm:$0xff]
  %v152 = vld [vmem:[%s141 + $0x50] sm:$0xff]
  %v153 = vld [vmem:[%s141 + $0x58] sm:$0xff]
  %v154 = vld [vmem:[%s141 + $0x60] sm:$0xff]
  %v155 = vld [vmem:[%s141 + $0x68] sm:$0xff]
  %v156 = vld [vmem:[%s141 + $0x70] sm:$0xff]
  %v157 = vld [vmem:[%s141 + $0x78] sm:$0xff]
  %v158 = vld [vmem:[%s141 + $0x80] sm:$0xff]
  %v159 = vld [vmem:[%s141 + $0x88] sm:$0xff]
  %v160 = vld [vmem:[%s141 + $0x90] sm:$0xff]
  %v161 = vld [vmem:[%s141 + $0x98] sm:$0xff]
  %v162 = vld [vmem:[%s141 + $0xa0] sm:$0xff]
  %v163 = vld [vmem:[%s141 + $0xa8] sm:$0xff]
  %v164 = vld [vmem:[%s141 + $0xb0] sm:$0xff]
  %v165 = vld [vmem:[%s141 + $0xb8] sm:$0xff]
  %v166 = vld [vmem:[%s0 + $0x2] sm:$0xff]
  %v167 = vld [vmem:[%s0 + $0xa] sm:$0xff]
  %v168 = vld [vmem:[%s0 + $0x12] sm:$0xff]
  %v169 = vld [vmem:[%s0 + $0x1a] sm:$0xff]
  %v170 = vld [vmem:[%s0 + $0x22] sm:$0xff]
  %v171 = vld [vmem:[%s0 + $0x2a] sm:$0xff]
  %v172 = vld [vmem:[%s0 + $0x32] sm:$0xff]
  %v173 = vld [vmem:[%s0 + $0x3a] sm:$0xff]
  %v174 = vld [vmem:[%s0 + $0x42] sm:$0xff]
  %v175 = vld [vmem:[%s0 + $0x4a] sm:$0xff]
  %v176 = vld [vmem:[%s0 + $0x52] sm:$0xff]
  %v177 = vld [vmem:[%s0 + $0x5a] sm:$0xff]
  %v178 = vld [vmem:[%s0 + $0x62] sm:$0xff]
  %v179 = vld [vmem:[%s0 + $0x6a] sm:$0xff]
  %v180 = vld [vmem:[%s0 + $0x72] sm:$0xff]
  %v181 = vld [vmem:[%s0 + $0x7a] sm:$0xff]
  %v182 = vld [vmem:[%s0 + $0x82] sm:$0xff]
  %v183 = vld [vmem:[%s0 + $0x8a] sm:$0xff]
  %v184 = vld [vmem:[%s0 + $0x92] sm:$0xff]
  %v185 = vld [vmem:[%s0 + $0x9a] sm:$0xff]
  %v186 = vld [vmem:[%s0 + $0xa2] sm:$0xff]
  %v187 = vld [vmem:[%s0 + $0xaa] sm:$0xff]
  %v188 = vld [vmem:[%s0 + $0xb2] sm:$0xff]
  %v189 = vld [vmem:[%s0 + $0xba] sm:$0xff]
  %v190 = vld [vmem:[%s0 + $0xc2] sm:$0xff]
  %v191 = vld [vmem:[%s0 + $0xca] sm:$0xff]
  %v192 = vld [vmem:[%s0 + $0xd2] sm:$0xff]
  %v193 = vld [vmem:[%s0 + $0xda] sm:$0xff]
  %v194 = vld [vmem:[%s0 + $0xe2] sm:$0xff]
  %v195 = vld [vmem:[%s0 + $0xea] sm:$0xff]
  %v196 = vld [vmem:[%s0 + $0xf2] sm:$0xff]
  %v197 = vld [vmem:[%s0 + $0xfa] sm:$0xf]
  %s198 = scalar_lea.vmem %s1, 384
  %v199 = vld [vmem:[%s198] sm:$0xff]
  %v200 = vld [vmem:[%s198 + $0x8] sm:$0xff]
  %v201 = vld [vmem:[%s198 + $0x10] sm:$0xff]
  %v202 = vld [vmem:[%s198 + $0x18] sm:$0xff]
  %v203 = vld [vmem:[%s198 + $0x20] sm:$0xff]
  %v204 = vld [vmem:[%s198 + $0x28] sm:$0xff]
  %v205 = vld [vmem:[%s198 + $0x30] sm:$0xff]
  %v206 = vld [vmem:[%s198 + $0x38] sm:$0xff]
  %v207 = vld [vmem:[%s198 + $0x40] sm:$0xff]
  %v208 = vld [vmem:[%s198 + $0x48] sm:$0xff]
  %v209 = vld [vmem:[%s198 + $0x50] sm:$0xff]
  %v210 = vld [vmem:[%s198 + $0x58] sm:$0xff]
  %v211 = vld [vmem:[%s198 + $0x60] sm:$0xff]
  %v212 = vld [vmem:[%s198 + $0x68] sm:$0xff]
  %v213 = vld [vmem:[%s198 + $0x70] sm:$0xff]
  %v214 = vld [vmem:[%s198 + $0x78] sm:$0xff]
  %v215 = vld [vmem:[%s198 + $0x80] sm:$0xff]
  %v216 = vld [vmem:[%s198 + $0x88] sm:$0xff]
  %v217 = vld [vmem:[%s198 + $0x90] sm:$0xff]
  %v218 = vld [vmem:[%s198 + $0x98] sm:$0xff]
  %v219 = vld [vmem:[%s198 + $0xa0] sm:$0xff]
  %v220 = vld [vmem:[%s198 + $0xa8] sm:$0xff]
  %v221 = vld [vmem:[%s198 + $0xb0] sm:$0xff]
  %v222 = vld [vmem:[%s198 + $0xb8] sm:$0xff]
  %vm223 = vcmask 785408
  %v225 = vsel %vm223, %v166, 0
  %v228 = vsel %vm223, %v167, 0
  %v231 = vsel %vm223, %v168, 0
  %v234 = vsel %vm223, %v169, 0
  %v237 = vsel %vm223, %v170, 0
  %v240 = vsel %vm223, %v171, 0
  %v243 = vsel %vm223, %v172, 0
  %v246 = vsel %vm223, %v173, 0
  %v249 = vsel %vm223, %v174, 0
  %v252 = vsel %vm223, %v175, 0
  %v255 = vsel %vm223, %v176, 0
  %v258 = vsel %vm223, %v177, 0
  %v261 = vsel %vm223, %v178, 0
  %v264 = vsel %vm223, %v179, 0
  %v267 = vsel %vm223, %v180, 0
  %v270 = vsel %vm223, %v181, 0
  %v273 = vsel %vm223, %v182, 0
  %v276 = vsel %vm223, %v183, 0
  %v279 = vsel %vm223, %v184, 0
  %v282 = vsel %vm223, %v185, 0
  %v285 = vsel %vm223, %v186, 0
  %v288 = vsel %vm223, %v187, 0
  %v291 = vsel %vm223, %v188, 0
  %v294 = vsel %vm223, %v189, 0
  %v297 = vsel %vm223, %v190, 0
  %v300 = vsel %vm223, %v191, 0
  %v303 = vsel %vm223, %v192, 0
  %v306 = vsel %vm223, %v193, 0
  %v309 = vsel %vm223, %v194, 0
  %v312 = vsel %vm223, %v195, 0
  %v315 = vsel %vm223, %v196, 0
  %v318 = vsel %vm223, %v197, 0
  %320 = vmatprep.subr.mxu0 %v200
  %321 = vmatpush1.msra.mxu0 %v199
  %322 = vmatprep.subr.mxu0 %v202
  %323 = vmatpush1.msra.mxu0 %v201
  %324 = vmatprep.subr.mxu0 %v204
  %325 = vmatpush1.msra.mxu0 %v203
  %326 = vmatprep.subr.mxu0 %v206
  %327 = vmatpush1.msra.mxu0 %v205
  %328 = vmatprep.subr.mxu0 %v208
  %329 = vmatpush1.msra.mxu0 %v207
  %330 = vmatprep.subr.mxu0 %v210
  %331 = vmatpush1.msra.mxu0 %v209
  %332 = vmatprep.subr.mxu0 %v212
  %333 = vmatpush1.msra.mxu0 %v211
  %334 = vmatprep.subr.mxu0 %v214
  %335 = vmatpush1.msra.mxu0 %v213
  %336 = vmatprep.subr.mxu0 %v216
  %337 = vmatpush1.msra.mxu0 %v215
  %338 = vmatprep.subr.mxu0 %v218
  %339 = vmatpush1.msra.mxu0 %v217
  %340 = vmatprep.subr.mxu0 %v220
  %341 = vmatpush1.msra.mxu0 %v219
  %342 = vmatprep.subr.mxu0 %v222
  %343 = vmatpush1.msra.mxu0 %v221
  %344 = vmatprep.subr.mxu0 0.0
  %345 = vmatpush1.msra.mxu0 0.0
  %346 = vmatprep.subr.mxu0 0.0
  %347 = vmatpush1.msra.mxu0 0.0
  %348 = vmatprep.subr.mxu0 0.0
  %349 = vmatpush1.msra.mxu0 0.0
  %350 = vmatprep.subr.mxu0 0.0
  %351 = vmatpush1.msra.mxu0 0.0
  %352 = vmatprep.subr.mxu0 0.0
  %353 = vmatpush1.msra.mxu0 0.0
  %354 = vmatprep.subr.mxu0 0.0
  %355 = vmatpush1.msra.mxu0 0.0
  %356 = vmatprep.subr.mxu0 0.0
  %357 = vmatpush1.msra.mxu0 0.0
  %358 = vmatprep.subr.mxu0 0.0
  %359 = vmatpush1.msra.mxu0 0.0
  %360 = vmatprep.subr.mxu0 0.0
  %361 = vmatpush1.msra.mxu0 0.0
  %362 = vmatprep.subr.mxu0 0.0
  %363 = vmatpush1.msra.mxu0 0.0
  %364 = vmatprep.subr.mxu0 0.0
  %365 = vmatpush1.msra.mxu0 0.0
  %366 = vmatprep.subr.mxu0 0.0
  %367 = vmatpush1.msra.mxu0 0.0
  %368 = vmatprep.subr.mxu0 0.0
  %369 = vmatpush1.msra.mxu0 0.0
  %370 = vmatprep.subr.mxu0 0.0
  %371 = vmatpush1.msra.mxu0 0.0
  %372 = vmatprep.subr.mxu0 0.0
  %373 = vmatpush1.msra.mxu0 0.0
  %374 = vmatprep.subr.mxu0 0.0
  %375 = vmatpush1.msra.mxu0 0.0
  %376 = vmatprep.subr.mxu0 0.0
  %377 = vmatpush1.msra.mxu0 0.0
  %378 = vmatprep.subr.mxu0 0.0
  %379 = vmatpush1.msra.mxu0 0.0
  %380 = vmatprep.subr.mxu0 0.0
  %381 = vmatpush1.msra.mxu0 0.0
  %382 = vmatprep.subr.mxu0 0.0
  %383 = vmatpush1.msra.mxu0 0.0
  %384 = vmatprep.mubr.f32.mxu0 0.0
  %385 = vmatmul.mubr.f32.gmra.mrb[0].mxu0 %v225
  %v386 = vpop.f32.mrb[0].mxu0
  %v387 = vadd.f32 0.0, %v386
  %v388 = vpop.f32.mrb[0].mxu0
  %v389 = vadd.f32 0.0, %v388
  %390 = vmatprep.mubr.f32.mxu0 0.0
  %391 = vmatmul.mubr.f32.gmra.mrb[0].mxu0 %v228
  %v392 = vpop.f32.mrb[0].mxu0
  %v393 = vadd.f32 0.0, %v392
  %v394 = vpop.f32.mrb[0].mxu0
  %v395 = vadd.f32 0.0, %v394
  %396 = vmatprep.mubr.f32.mxu0 0.0
  %397 = vmatmul.mubr.f32.gmra.mrb[0].mxu0 %v231
  %v398 = vpop.f32.mrb[0].mxu0
  %v399 = vadd.f32 0.0, %v398
  %v400 = vpop.f32.mrb[0].mxu0
  %v401 = vadd.f32 0.0, %v400
  %402 = vmatprep.mubr.f32.mxu0 0.0
  %403 = vmatmul.mubr.f32.gmra.mrb[0].mxu0 %v234
  %v404 = vpop.f32.mrb[0].mxu0
  %v405 = vadd.f32 0.0, %v404
  %v406 = vpop.f32.mrb[0].mxu0
  %v407 = vadd.f32 0.0, %v406
  %408 = vmatprep.mubr.f32.mxu0 0.0
  %409 = vmatmul.mubr.f32.gmra.mrb[0].mxu0 %v237
  %v410 = vpop.f32.mrb[0].mxu0
  %v411 = vadd.f32 0.0, %v410
  %v412 = vpop.f32.mrb[0].mxu0
  %v413 = vadd.f32 0.0, %v412
  %414 = vmatprep.mubr.f32.mxu0 0.0
  %415 = vmatmul.mubr.f32.gmra.mrb[0].mxu0 %v240
  %v416 = vpop.f32.mrb[0].mxu0
  %v417 = vadd.f32 0.0, %v416
  %v418 = vpop.f32.mrb[0].mxu0
  %v419 = vadd.f32 0.0, %v418
  %420 = vmatprep.mubr.f32.mxu0 0.0
  %421 = vmatmul.mubr.f32.gmra.mrb[0].mxu0 %v243
  %v422 = vpop.f32.mrb[0].mxu0
  %v423 = vadd.f32 0.0, %v422
  %v424 = vpop.f32.mrb[0].mxu0
  %v425 = vadd.f32 0.0, %v424
  %426 = vmatprep.mubr.f32.mxu0 0.0
  %427 = vmatmul.mubr.f32.gmra.mrb[0].mxu0 %v246
  %v428 = vpop.f32.mrb[0].mxu0
  %v429 = vadd.f32 0.0, %v428
  %v430 = vpop.f32.mrb[0].mxu0
  %v431 = vadd.f32 0.0, %v430
  %432 = vmatprep.mubr.f32.mxu0 0.0
  %433 = vmatmul.mubr.f32.gmra.mrb[0].mxu0 %v249
  %v434 = vpop.f32.mrb[0].mxu0
  %v435 = vadd.f32 0.0, %v434
  %v436 = vpop.f32.mrb[0].mxu0
  %v437 = vadd.f32 0.0, %v436
  %438 = vmatprep.mubr.f32.mxu0 0.0
  %439 = vmatmul.mubr.f32.gmra.mrb[0].mxu0 %v252
  %v440 = vpop.f32.mrb[0].mxu0
  %v441 = vadd.f32 0.0, %v440
  %v442 = vpop.f32.mrb[0].mxu0
  %v443 = vadd.f32 0.0, %v442
  %444 = vmatprep.mubr.f32.mxu0 0.0
  %445 = vmatmul.mubr.f32.gmra.mrb[0].mxu0 %v255
  %v446 = vpop.f32.mrb[0].mxu0
  %v447 = vadd.f32 0.0, %v446
  %v448 = vpop.f32.mrb[0].mxu0
  %v449 = vadd.f32 0.0, %v448
  %450 = vmatprep.mubr.f32.mxu0 0.0
  %451 = vmatmul.mubr.f32.gmra.mrb[0].mxu0 %v258
  %v452 = vpop.f32.mrb[0].mxu0
  %v453 = vadd.f32 0.0, %v452
  %v454 = vpop.f32.mrb[0].mxu0
  %v455 = vadd.f32 0.0, %v454
  %456 = vmatprep.mubr.f32.mxu0 0.0
  %457 = vmatmul.mubr.f32.gmra.mrb[0].mxu0 %v261
  %v458 = vpop.f32.mrb[0].mxu0
  %v459 = vadd.f32 0.0, %v458
  %v460 = vpop.f32.mrb[0].mxu0
  %v461 = vadd.f32 0.0, %v460
  %462 = vmatprep.mubr.f32.mxu0 0.0
  %463 = vmatmul.mubr.f32.gmra.mrb[0].mxu0 %v264
  %v464 = vpop.f32.mrb[0].mxu0
  %v465 = vadd.f32 0.0, %v464
  %v466 = vpop.f32.mrb[0].mxu0
  %v467 = vadd.f32 0.0, %v466
  %468 = vmatprep.mubr.f32.mxu0 0.0
  %469 = vmatmul.mubr.f32.gmra.mrb[0].mxu0 %v267
  %v470 = vpop.f32.mrb[0].mxu0
  %v471 = vadd.f32 0.0, %v470
  %v472 = vpop.f32.mrb[0].mxu0
  %v473 = vadd.f32 0.0, %v472
  %474 = vmatprep.mubr.f32.mxu0 0.0
  %475 = vmatmul.mubr.f32.gmra.mrb[0].mxu0 %v270
  %v476 = vpop.f32.mrb[0].mxu0
  %v477 = vadd.f32 0.0, %v476
  %v478 = vpop.f32.mrb[0].mxu0
  %v479 = vadd.f32 0.0, %v478
  %480 = vmatprep.mubr.f32.mxu0 0.0
  %481 = vmatmul.mubr.f32.gmra.mrb[0].mxu0 %v273
  %v482 = vpop.f32.mrb[0].mxu0
  %v483 = vadd.f32 0.0, %v482
  %v484 = vpop.f32.mrb[0].mxu0
  %v485 = vadd.f32 0.0, %v484
  %486 = vmatprep.mubr.f32.mxu0 0.0
  %487 = vmatmul.mubr.f32.gmra.mrb[0].mxu0 %v276
  %v488 = vpop.f32.mrb[0].mxu0
  %v489 = vadd.f32 0.0, %v488
  %v490 = vpop.f32.mrb[0].mxu0
  %v491 = vadd.f32 0.0, %v490
  %492 = vmatprep.mubr.f32.mxu0 0.0
  %493 = vmatmul.mubr.f32.gmra.mrb[0].mxu0 %v279
  %v494 = vpop.f32.mrb[0].mxu0
  %v495 = vadd.f32 0.0, %v494
  %v496 = vpop.f32.mrb[0].mxu0
  %v497 = vadd.f32 0.0, %v496
  %498 = vmatprep.mubr.f32.mxu0 0.0
  %499 = vmatmul.mubr.f32.gmra.mrb[0].mxu0 %v282
  %v500 = vpop.f32.mrb[0].mxu0
  %v501 = vadd.f32 0.0, %v500
  %v502 = vpop.f32.mrb[0].mxu0
  %v503 = vadd.f32 0.0, %v502
  %504 = vmatprep.mubr.f32.mxu0 0.0
  %505 = vmatmul.mubr.f32.gmra.mrb[0].mxu0 %v285
  %v506 = vpop.f32.mrb[0].mxu0
  %v507 = vadd.f32 0.0, %v506
  %v508 = vpop.f32.mrb[0].mxu0
  %v509 = vadd.f32 0.0, %v508
  %510 = vmatprep.mubr.f32.mxu0 0.0
  %511 = vmatmul.mubr.f32.gmra.mrb[0].mxu0 %v288
  %v512 = vpop.f32.mrb[0].mxu0
  %v513 = vadd.f32 0.0, %v512
  %v514 = vpop.f32.mrb[0].mxu0
  %v515 = vadd.f32 0.0, %v514
  %516 = vmatprep.mubr.f32.mxu0 0.0
  %517 = vmatmul.mubr.f32.gmra.mrb[0].mxu0 %v291
  %v518 = vpop.f32.mrb[0].mxu0
  %v519 = vadd.f32 0.0, %v518
  %v520 = vpop.f32.mrb[0].mxu0
  %v521 = vadd.f32 0.0, %v520
  %522 = vmatprep.mubr.f32.mxu0 0.0
  %523 = vmatmul.mubr.f32.gmra.mrb[0].mxu0 %v294
  %v524 = vpop.f32.mrb[0].mxu0
  %v525 = vadd.f32 0.0, %v524
  %v526 = vpop.f32.mrb[0].mxu0
  %v527 = vadd.f32 0.0, %v526
  %528 = vmatprep.mubr.f32.mxu0 0.0
  %529 = vmatmul.mubr.f32.gmra.mrb[0].mxu0 %v297
  %v530 = vpop.f32.mrb[0].mxu0
  %v531 = vadd.f32 0.0, %v530
  %v532 = vpop.f32.mrb[0].mxu0
  %v533 = vadd.f32 0.0, %v532
  %534 = vmatprep.mubr.f32.mxu0 0.0
  %535 = vmatmul.mubr.f32.gmra.mrb[0].mxu0 %v300
  %v536 = vpop.f32.mrb[0].mxu0
  %v537 = vadd.f32 0.0, %v536
  %v538 = vpop.f32.mrb[0].mxu0
  %v539 = vadd.f32 0.0, %v538
  %540 = vmatprep.mubr.f32.mxu0 0.0
  %541 = vmatmul.mubr.f32.gmra.mrb[0].mxu0 %v303
  %v542 = vpop.f32.mrb[0].mxu0
  %v543 = vadd.f32 0.0, %v542
  %v544 = vpop.f32.mrb[0].mxu0
  %v545 = vadd.f32 0.0, %v544
  %546 = vmatprep.mubr.f32.mxu0 0.0
  %547 = vmatmul.mubr.f32.gmra.mrb[0].mxu0 %v306
  %v548 = vpop.f32.mrb[0].mxu0
  %v549 = vadd.f32 0.0, %v548
  %v550 = vpop.f32.mrb[0].mxu0
  %v551 = vadd.f32 0.0, %v550
  %552 = vmatprep.mubr.f32.mxu0 0.0
  %553 = vmatmul.mubr.f32.gmra.mrb[0].mxu0 %v309
  %v554 = vpop.f32.mrb[0].mxu0
  %v555 = vadd.f32 0.0, %v554
  %v556 = vpop.f32.mrb[0].mxu0
  %v557 = vadd.f32 0.0, %v556
  %558 = vmatprep.mubr.f32.mxu0 0.0
  %559 = vmatmul.mubr.f32.gmra.mrb[0].mxu0 %v312
  %v560 = vpop.f32.mrb[0].mxu0
  %v561 = vadd.f32 0.0, %v560
  %v562 = vpop.f32.mrb[0].mxu0
  %v563 = vadd.f32 0.0, %v562
  %564 = vmatprep.mubr.f32.mxu0 0.0
  %565 = vmatmul.mubr.f32.gmra.mrb[0].mxu0 %v315
  %v566 = vpop.f32.mrb[0].mxu0
  %v567 = vadd.f32 0.0, %v566
  %v568 = vpop.f32.mrb[0].mxu0
  %v569 = vadd.f32 0.0, %v568
  %570 = vmatprep.mubr.f32.mxu0 0.0
  %571 = vmatmul.mubr.f32.gmra.mrb[0].mxu0 %v318
  %v572 = vpop.f32.mrb[0].mxu0
  %v573 = vadd.f32 0.0, %v572
  %v574 = vpop.f32.mrb[0].mxu0
  %v575 = vadd.f32 0.0, %v574
  %576 = vdwg.mxu0
  %v578 = vsel %vm223, %v53, 0
  %v581 = vsel %vm223, %v54, 0
  %v584 = vsel %vm223, %v55, 0
  %v587 = vsel %vm223, %v56, 0
  %v590 = vsel %vm223, %v57, 0
  %v593 = vsel %vm223, %v58, 0
  %v596 = vsel %vm223, %v59, 0
  %v599 = vsel %vm223, %v60, 0
  %v602 = vsel %vm223, %v61, 0
  %v605 = vsel %vm223, %v62, 0
  %v608 = vsel %vm223, %v63, 0
  %v611 = vsel %vm223, %v64, 0
  %v614 = vsel %vm223, %v65, 0
  %v617 = vsel %vm223, %v66, 0
  %v620 = vsel %vm223, %v67, 0
  %v623 = vsel %vm223, %v68, 0
  %v626 = vsel %vm223, %v69, 0
  %v629 = vsel %vm223, %v70, 0
  %v632 = vsel %vm223, %v71, 0
  %v635 = vsel %vm223, %v72, 0
  %v638 = vsel %vm223, %v73, 0
  %v641 = vsel %vm223, %v74, 0
  %v644 = vsel %vm223, %v75, 0
  %v647 = vsel %vm223, %v76, 0
  %v650 = vsel %vm223, %v77, 0
  %v653 = vsel %vm223, %v78, 0
  %v656 = vsel %vm223, %v79, 0
  %v659 = vsel %vm223, %v80, 0
  %v662 = vsel %vm223, %v81, 0
  %v665 = vsel %vm223, %v82, 0
  %v668 = vsel %vm223, %v83, 0
  %v671 = vsel %vm223, %v84, 0
  %673 = vmatprep.subr.mxu0 %v86
  %674 = vmatpush1.msra.mxu0 %v85
  %675 = vmatprep.subr.mxu0 %v88
  %676 = vmatpush1.msra.mxu0 %v87
  %677 = vmatprep.subr.mxu0 %v90
  %678 = vmatpush1.msra.mxu0 %v89
  %679 = vmatprep.subr.mxu0 %v92
  %680 = vmatpush1.msra.mxu0 %v91
  %681 = vmatprep.subr.mxu0 %v94
  %682 = vmatpush1.msra.mxu0 %v93
  %683 = vmatprep.subr.mxu0 %v96
  %684 = vmatpush1.msra.mxu0 %v95
  %685 = vmatprep.subr.mxu0 %v98
  %686 = vmatpush1.msra.mxu0 %v97
  %687 = vmatprep.subr.mxu0 %v100
  %688 = vmatpush1.msra.mxu0 %v99
  %689 = vmatprep.subr.mxu0 %v102
  %690 = vmatpush1.msra.mxu0 %v101
  %691 = vmatprep.subr.mxu0 %v104
  %692 = vmatpush1.msra.mxu0 %v103
  %693 = vmatprep.subr.mxu0 %v106
  %694 = vmatpush1.msra.mxu0 %v105
  %695 = vmatprep.subr.mxu0 %v108
  %696 = vmatpush1.msra.mxu0 %v107
  %697 = vmatprep.subr.mxu0 0.0
  %698 = vmatpush1.msra.mxu0 0.0
  %699 = vmatprep.subr.mxu0 0.0
  %700 = vmatpush1.msra.mxu0 0.0
  %701 = vmatprep.subr.mxu0 0.0
  %702 = vmatpush1.msra.mxu0 0.0
  %703 = vmatprep.subr.mxu0 0.0
  %704 = vmatpush1.msra.mxu0 0.0
  %705 = vmatprep.subr.mxu0 0.0
  %706 = vmatpush1.msra.mxu0 0.0
  %707 = vmatprep.subr.mxu0 0.0
  %708 = vmatpush1.msra.mxu0 0.0
  %709 = vmatprep.subr.mxu0 0.0
  %710 = vmatpush1.msra.mxu0 0.0
  %711 = vmatprep.subr.mxu0 0.0
  %712 = vmatpush1.msra.mxu0 0.0
  %713 = vmatprep.subr.mxu0 0.0
  %714 = vmatpush1.msra.mxu0 0.0
  %715 = vmatprep.subr.mxu0 0.0
  %716 = vmatpush1.msra.mxu0 0.0
  %717 = vmatprep.subr.mxu0 0.0
  %718 = vmatpush1.msra.mxu0 0.0
  %719 = vmatprep.subr.mxu0 0.0
  %720 = vmatpush1.msra.mxu0 0.0
  %721 = vmatprep.subr.mxu0 0.0
  %722 = vmatpush1.msra.mxu0 0.0
  %723 = vmatprep.subr.mxu0 0.0
  %724 = vmatpush1.msra.mxu0 0.0
  %725 = vmatprep.subr.mxu0 0.0
  %726 = vmatpush1.msra.mxu0 0.0
  %727 = vmatprep.subr.mxu0 0.0
  %728 = vmatpush1.msra.mxu0 0.0
  %729 = vmatprep.subr.mxu0 0.0
  %730 = vmatpush1.msra.mxu0 0.0
  %731 = vmatprep.subr.mxu0 0.0
  %732 = vmatpush1.msra.mxu0 0.0
  %733 = vmatprep.subr.mxu0 0.0
  %734 = vmatpush1.msra.mxu0 0.0
  %735 = vmatprep.subr.mxu0 0.0
  %736 = vmatpush1.msra.mxu0 0.0
  %737 = vmatprep.mubr.f32.mxu0 0.0
  %738 = vmatmul.mubr.f32.gmra.mrb[0].mxu0 %v578
  %v739 = vpop.f32.mrb[0].mxu0
  %v740 = vadd.f32 %v387, %v739
  %v741 = vpop.f32.mrb[0].mxu0
  %v742 = vadd.f32 %v389, %v741
  %743 = vmatprep.mubr.f32.mxu0 0.0
  %744 = vmatmul.mubr.f32.gmra.mrb[0].mxu0 %v581
  %v745 = vpop.f32.mrb[0].mxu0
  %v746 = vadd.f32 %v393, %v745
  %v747 = vpop.f32.mrb[0].mxu0
  %v748 = vadd.f32 %v395, %v747
  %749 = vmatprep.mubr.f32.mxu0 0.0
  %750 = vmatmul.mubr.f32.gmra.mrb[0].mxu0 %v584
  %v751 = vpop.f32.mrb[0].mxu0
  %v752 = vadd.f32 %v399, %v751
  %v753 = vpop.f32.mrb[0].mxu0
  %v754 = vadd.f32 %v401, %v753
  %755 = vmatprep.mubr.f32.mxu0 0.0
  %756 = vmatmul.mubr.f32.gmra.mrb[0].mxu0 %v587
  %v757 = vpop.f32.mrb[0].mxu0
  %v758 = vadd.f32 %v405, %v757
  %v759 = vpop.f32.mrb[0].mxu0
  %v760 = vadd.f32 %v407, %v759
  %761 = vmatprep.mubr.f32.mxu0 0.0
  %762 = vmatmul.mubr.f32.gmra.mrb[0].mxu0 %v590
  %v763 = vpop.f32.mrb[0].mxu0
  %v764 = vadd.f32 %v411, %v763
  %v765 = vpop.f32.mrb[0].mxu0
  %v766 = vadd.f32 %v413, %v765
  %767 = vmatprep.mubr.f32.mxu0 0.0
  %768 = vmatmul.mubr.f32.gmra.mrb[0].mxu0 %v593
  %v769 = vpop.f32.mrb[0].mxu0
  %v770 = vadd.f32 %v417, %v769
  %v771 = vpop.f32.mrb[0].mxu0
  %v772 = vadd.f32 %v419, %v771
  %773 = vmatprep.mubr.f32.mxu0 0.0
  %774 = vmatmul.mubr.f32.gmra.mrb[0].mxu0 %v596
  %v775 = vpop.f32.mrb[0].mxu0
  %v776 = vadd.f32 %v423, %v775
  %v777 = vpop.f32.mrb[0].mxu0
  %v778 = vadd.f32 %v425, %v777
  %779 = vmatprep.mubr.f32.mxu0 0.0
  %780 = vmatmul.mubr.f32.gmra.mrb[0].mxu0 %v599
  %v781 = vpop.f32.mrb[0].mxu0
  %v782 = vadd.f32 %v429, %v781
  %v783 = vpop.f32.mrb[0].mxu0
  %v784 = vadd.f32 %v431, %v783
  %785 = vmatprep.mubr.f32.mxu0 0.0
  %786 = vmatmul.mubr.f32.gmra.mrb[0].mxu0 %v602
  %v787 = vpop.f32.mrb[0].mxu0
  %v788 = vadd.f32 %v435, %v787
  %v789 = vpop.f32.mrb[0].mxu0
  %v790 = vadd.f32 %v437, %v789
  %791 = vmatprep.mubr.f32.mxu0 0.0
  %792 = vmatmul.mubr.f32.gmra.mrb[0].mxu0 %v605
  %v793 = vpop.f32.mrb[0].mxu0
  %v794 = vadd.f32 %v441, %v793
  %v795 = vpop.f32.mrb[0].mxu0
  %v796 = vadd.f32 %v443, %v795
  %797 = vmatprep.mubr.f32.mxu0 0.0
  %798 = vmatmul.mubr.f32.gmra.mrb[0].mxu0 %v608
  %v799 = vpop.f32.mrb[0].mxu0
  %v800 = vadd.f32 %v447, %v799
  %v801 = vpop.f32.mrb[0].mxu0
  %v802 = vadd.f32 %v449, %v801
  %803 = vmatprep.mubr.f32.mxu0 0.0
  %804 = vmatmul.mubr.f32.gmra.mrb[0].mxu0 %v611
  %v805 = vpop.f32.mrb[0].mxu0
  %v806 = vadd.f32 %v453, %v805
  %v807 = vpop.f32.mrb[0].mxu0
  %v808 = vadd.f32 %v455, %v807
  %809 = vmatprep.mubr.f32.mxu0 0.0
  %810 = vmatmul.mubr.f32.gmra.mrb[0].mxu0 %v614
  %v811 = vpop.f32.mrb[0].mxu0
  %v812 = vadd.f32 %v459, %v811
  %v813 = vpop.f32.mrb[0].mxu0
  %v814 = vadd.f32 %v461, %v813
  %815 = vmatprep.mubr.f32.mxu0 0.0
  %816 = vmatmul.mubr.f32.gmra.mrb[0].mxu0 %v617
  %v817 = vpop.f32.mrb[0].mxu0
  %v818 = vadd.f32 %v465, %v817
  %v819 = vpop.f32.mrb[0].mxu0
  %v820 = vadd.f32 %v467, %v819
  %821 = vmatprep.mubr.f32.mxu0 0.0
  %822 = vmatmul.mubr.f32.gmra.mrb[0].mxu0 %v620
  %v823 = vpop.f32.mrb[0].mxu0
  %v824 = vadd.f32 %v471, %v823
  %v825 = vpop.f32.mrb[0].mxu0
  %v826 = vadd.f32 %v473, %v825
  %827 = vmatprep.mubr.f32.mxu0 0.0
  %828 = vmatmul.mubr.f32.gmra.mrb[0].mxu0 %v623
  %v829 = vpop.f32.mrb[0].mxu0
  %v830 = vadd.f32 %v477, %v829
  %v831 = vpop.f32.mrb[0].mxu0
  %v832 = vadd.f32 %v479, %v831
  %833 = vmatprep.mubr.f32.mxu0 0.0
  %834 = vmatmul.mubr.f32.gmra.mrb[0].mxu0 %v626
  %v835 = vpop.f32.mrb[0].mxu0
  %v836 = vadd.f32 %v483, %v835
  %v837 = vpop.f32.mrb[0].mxu0
  %v838 = vadd.f32 %v485, %v837
  %839 = vmatprep.mubr.f32.mxu0 0.0
  %840 = vmatmul.mubr.f32.gmra.mrb[0].mxu0 %v629
  %v841 = vpop.f32.mrb[0].mxu0
  %v842 = vadd.f32 %v489, %v841
  %v843 = vpop.f32.mrb[0].mxu0
  %v844 = vadd.f32 %v491, %v843
  %845 = vmatprep.mubr.f32.mxu0 0.0
  %846 = vmatmul.mubr.f32.gmra.mrb[0].mxu0 %v632
  %v847 = vpop.f32.mrb[0].mxu0
  %v848 = vadd.f32 %v495, %v847
  %v849 = vpop.f32.mrb[0].mxu0
  %v850 = vadd.f32 %v497, %v849
  %851 = vmatprep.mubr.f32.mxu0 0.0
  %852 = vmatmul.mubr.f32.gmra.mrb[0].mxu0 %v635
  %v853 = vpop.f32.mrb[0].mxu0
  %v854 = vadd.f32 %v501, %v853
  %v855 = vpop.f32.mrb[0].mxu0
  %v856 = vadd.f32 %v503, %v855
  %857 = vmatprep.mubr.f32.mxu0 0.0
  %858 = vmatmul.mubr.f32.gmra.mrb[0].mxu0 %v638
  %v859 = vpop.f32.mrb[0].mxu0
  %v860 = vadd.f32 %v507, %v859
  %v861 = vpop.f32.mrb[0].mxu0
  %v862 = vadd.f32 %v509, %v861
  %863 = vmatprep.mubr.f32.mxu0 0.0
  %864 = vmatmul.mubr.f32.gmra.mrb[0].mxu0 %v641
  %v865 = vpop.f32.mrb[0].mxu0
  %v866 = vadd.f32 %v513, %v865
  %v867 = vpop.f32.mrb[0].mxu0
  %v868 = vadd.f32 %v515, %v867
  %869 = vmatprep.mubr.f32.mxu0 0.0
  %870 = vmatmul.mubr.f32.gmra.mrb[0].mxu0 %v644
  %v871 = vpop.f32.mrb[0].mxu0
  %v872 = vadd.f32 %v519, %v871
  %v873 = vpop.f32.mrb[0].mxu0
  %v874 = vadd.f32 %v521, %v873
  %875 = vmatprep.mubr.f32.mxu0 0.0
  %876 = vmatmul.mubr.f32.gmra.mrb[0].mxu0 %v647
  %v877 = vpop.f32.mrb[0].mxu0
  %v878 = vadd.f32 %v525, %v877
  %v879 = vpop.f32.mrb[0].mxu0
  %v880 = vadd.f32 %v527, %v879
  %881 = vmatprep.mubr.f32.mxu0 0.0
  %882 = vmatmul.mubr.f32.gmra.mrb[0].mxu0 %v650
  %v883 = vpop.f32.mrb[0].mxu0
  %v884 = vadd.f32 %v531, %v883
  %v885 = vpop.f32.mrb[0].mxu0
  %v886 = vadd.f32 %v533, %v885
  %887 = vmatprep.mubr.f32.mxu0 0.0
  %888 = vmatmul.mubr.f32.gmra.mrb[0].mxu0 %v653
  %v889 = vpop.f32.mrb[0].mxu0
  %v890 = vadd.f32 %v537, %v889
  %v891 = vpop.f32.mrb[0].mxu0
  %v892 = vadd.f32 %v539, %v891
  %893 = vmatprep.mubr.f32.mxu0 0.0
  %894 = vmatmul.mubr.f32.gmra.mrb[0].mxu0 %v656
  %v895 = vpop.f32.mrb[0].mxu0
  %v896 = vadd.f32 %v543, %v895
  %v897 = vpop.f32.mrb[0].mxu0
  %v898 = vadd.f32 %v545, %v897
  %899 = vmatprep.mubr.f32.mxu0 0.0
  %900 = vmatmul.mubr.f32.gmra.mrb[0].mxu0 %v659
  %v901 = vpop.f32.mrb[0].mxu0
  %v902 = vadd.f32 %v549, %v901
  %v903 = vpop.f32.mrb[0].mxu0
  %v904 = vadd.f32 %v551, %v903
  %905 = vmatprep.mubr.f32.mxu0 0.0
  %906 = vmatmul.mubr.f32.gmra.mrb[0].mxu0 %v662
  %v907 = vpop.f32.mrb[0].mxu0
  %v908 = vadd.f32 %v555, %v907
  %v909 = vpop.f32.mrb[0].mxu0
  %v910 = vadd.f32 %v557, %v909
  %911 = vmatprep.mubr.f32.mxu0 0.0
  %912 = vmatmul.mubr.f32.gmra.mrb[0].mxu0 %v665
  %v913 = vpop.f32.mrb[0].mxu0
  %v914 = vadd.f32 %v561, %v913
  %v915 = vpop.f32.mrb[0].mxu0
  %v916 = vadd.f32 %v563, %v915
  %917 = vmatprep.mubr.f32.mxu0 0.0
  %918 = vmatmul.mubr.f32.gmra.mrb[0].mxu0 %v668
  %v919 = vpop.f32.mrb[0].mxu0
  %v920 = vadd.f32 %v567, %v919
  %v921 = vpop.f32.mrb[0].mxu0
  %v922 = vadd.f32 %v569, %v921
  %923 = vmatprep.mubr.f32.mxu0 0.0
  %924 = vmatmul.mubr.f32.gmra.mrb[0].mxu0 %v671
  %v925 = vpop.f32.mrb[0].mxu0
  %v926 = vadd.f32 %v573, %v925
  %v927 = vpop.f32.mrb[0].mxu0
  %v928 = vadd.f32 %v575, %v927
  %929 = vdwg.mxu0
  %v930 = vld [vmem:[%s0 + $0x3] sm:$0xff]
  %v931 = vld [vmem:[%s0 + $0xb] sm:$0xff]
  %v932 = vld [vmem:[%s0 + $0x13] sm:$0xff]
  %v933 = vld [vmem:[%s0 + $0x1b] sm:$0xff]
  %v934 = vld [vmem:[%s0 + $0x23] sm:$0xff]
  %v935 = vld [vmem:[%s0 + $0x2b] sm:$0xff]
  %v936 = vld [vmem:[%s0 + $0x33] sm:$0xff]
  %v937 = vld [vmem:[%s0 + $0x3b] sm:$0xff]
  %v938 = vld [vmem:[%s0 + $0x43] sm:$0xff]
  %v939 = vld [vmem:[%s0 + $0x4b] sm:$0xff]
  %v940 = vld [vmem:[%s0 + $0x53] sm:$0xff]
  %v941 = vld [vmem:[%s0 + $0x5b] sm:$0xff]
  %v942 = vld [vmem:[%s0 + $0x63] sm:$0xff]
  %v943 = vld [vmem:[%s0 + $0x6b] sm:$0xff]
  %v944 = vld [vmem:[%s0 + $0x73] sm:$0xff]
  %v945 = vld [vmem:[%s0 + $0x7b] sm:$0xff]
  %v946 = vld [vmem:[%s0 + $0x83] sm:$0xff]
  %v947 = vld [vmem:[%s0 + $0x8b] sm:$0xff]
  %v948 = vld [vmem:[%s0 + $0x93] sm:$0xff]
  %v949 = vld [vmem:[%s0 + $0x9b] sm:$0xff]
  %v950 = vld [vmem:[%s0 + $0xa3] sm:$0xff]
  %v951 = vld [vmem:[%s0 + $0xab] sm:$0xff]
  %v952 = vld [vmem:[%s0 + $0xb3] sm:$0xff]
  %v953 = vld [vmem:[%s0 + $0xbb] sm:$0xff]
  %v954 = vld [vmem:[%s0 + $0xc3] sm:$0xff]
  %v955 = vld [vmem:[%s0 + $0xcb] sm:$0xff]
  %v956 = vld [vmem:[%s0 + $0xd3] sm:$0xff]
  %v957 = vld [vmem:[%s0 + $0xdb] sm:$0xff]
  %v958 = vld [vmem:[%s0 + $0xe3] sm:$0xff]
  %v959 = vld [vmem:[%s0 + $0xeb] sm:$0xff]
  %v960 = vld [vmem:[%s0 + $0xf3] sm:$0xff]
  %v961 = vld [vmem:[%s0 + $0xfb] sm:$0xf]
  %s962 = scalar_lea.vmem %s1, 576
  %v963 = vld [vmem:[%s962] sm:$0xff]
  %v964 = vld [vmem:[%s962 + $0x8] sm:$0xff]
  %v965 = vld [vmem:[%s962 + $0x10] sm:$0xff]
  %v966 = vld [vmem:[%s962 + $0x18] sm:$0xff]
  %v967 = vld [vmem:[%s962 + $0x20] sm:$0xff]
  %v968 = vld [vmem:[%s962 + $0x28] sm:$0xff]
  %v969 = vld [vmem:[%s962 + $0x30] sm:$0xff]
  %v970 = vld [vmem:[%s962 + $0x38] sm:$0xff]
  %v971 = vld [vmem:[%s962 + $0x40] sm:$0xff]
  %v972 = vld [vmem:[%s962 + $0x48] sm:$0xff]
  %v973 = vld [vmem:[%s962 + $0x50] sm:$0xff]
  %v974 = vld [vmem:[%s962 + $0x58] sm:$0xff]
  %v975 = vld [vmem:[%s962 + $0x60] sm:$0xff]
  %v976 = vld [vmem:[%s962 + $0x68] sm:$0xff]
  %v977 = vld [vmem:[%s962 + $0x70] sm:$0xff]
  %v978 = vld [vmem:[%s962 + $0x78] sm:$0xff]
  %v979 = vld [vmem:[%s962 + $0x80] sm:$0xff]
  %v980 = vld [vmem:[%s962 + $0x88] sm:$0xff]
  %v981 = vld [vmem:[%s962 + $0x90] sm:$0xff]
  %v982 = vld [vmem:[%s962 + $0x98] sm:$0xff]
  %v983 = vld [vmem:[%s962 + $0xa0] sm:$0xff]
  %v984 = vld [vmem:[%s962 + $0xa8] sm:$0xff]
  %v985 = vld [vmem:[%s962 + $0xb0] sm:$0xff]
  %v986 = vld [vmem:[%s962 + $0xb8] sm:$0xff]
  %v988 = vsel %vm223, %v930, 0
  %v991 = vsel %vm223, %v931, 0
  %v994 = vsel %vm223, %v932, 0
  %v997 = vsel %vm223, %v933, 0
  %v1000 = vsel %vm223, %v934, 0
  %v1003 = vsel %vm223, %v935, 0
  %v1006 = vsel %vm223, %v936, 0
  %v1009 = vsel %vm223, %v937, 0
  %v1012 = vsel %vm223, %v938, 0
  %v1015 = vsel %vm223, %v939, 0
  %v1018 = vsel %vm223, %v940, 0
  %v1021 = vsel %vm223, %v941, 0
  %v1024 = vsel %vm223, %v942, 0
  %v1027 = vsel %vm223, %v943, 0
  %v1030 = vsel %vm223, %v944, 0
  %v1033 = vsel %vm223, %v945, 0
  %v1036 = vsel %vm223, %v946, 0
  %v1039 = vsel %vm223, %v947, 0
  %v1042 = vsel %vm223, %v948, 0
  %v1045 = vsel %vm223, %v949, 0
  %v1048 = vsel %vm223, %v950, 0
  %v1051 = vsel %vm223, %v951, 0
  %v1054 = vsel %vm223, %v952, 0
  %v1057 = vsel %vm223, %v953, 0
  %v1060 = vsel %vm223, %v954, 0
  %v1063 = vsel %vm223, %v955, 0
  %v1066 = vsel %vm223, %v956, 0
  %v1069 = vsel %vm223, %v957, 0
  %v1072 = vsel %vm223, %v958, 0
  %v1075 = vsel %vm223, %v959, 0
  %v1078 = vsel %vm223, %v960, 0
  %v1081 = vsel %vm223, %v961, 0
  %1083 = vmatprep.subr.mxu0 %v964
  %1084 = vmatpush1.msra.mxu0 %v963
  %1085 = vmatprep.subr.mxu0 %v966
  %1086 = vmatpush1.msra.mxu0 %v965
  %1087 = vmatprep.subr.mxu0 %v968
  %1088 = vmatpush1.msra.mxu0 %v967
  %1089 = vmatprep.subr.mxu0 %v970
  %1090 = vmatpush1.msra.mxu0 %v969
  %1091 = vmatprep.subr.mxu0 %v972
  %1092 = vmatpush1.msra.mxu0 %v971
  %1093 = vmatprep.subr.mxu0 %v974
  %1094 = vmatpush1.msra.mxu0 %v973
  %1095 = vmatprep.subr.mxu0 %v976
  %1096 = vmatpush1.msra.mxu0 %v975
  %1097 = vmatprep.subr.mxu0 %v978
  %1098 = vmatpush1.msra.mxu0 %v977
  %1099 = vmatprep.subr.mxu0 %v980
  %1100 = vmatpush1.msra.mxu0 %v979
  %1101 = vmatprep.subr.mxu0 %v982
  %1102 = vmatpush1.msra.mxu0 %v981
  %1103 = vmatprep.subr.mxu0 %v984
  %1104 = vmatpush1.msra.mxu0 %v983
  %1105 = vmatprep.subr.mxu0 %v986
  %1106 = vmatpush1.msra.mxu0 %v985
  %1107 = vmatprep.subr.mxu0 0.0
  %1108 = vmatpush1.msra.mxu0 0.0
  %1109 = vmatprep.subr.mxu0 0.0
  %1110 = vmatpush1.msra.mxu0 0.0
  %1111 = vmatprep.subr.mxu0 0.0
  %1112 = vmatpush1.msra.mxu0 0.0
  %1113 = vmatprep.subr.mxu0 0.0
  %1114 = vmatpush1.msra.mxu0 0.0
  %1115 = vmatprep.subr.mxu0 0.0
  %1116 = vmatpush1.msra.mxu0 0.0
  %1117 = vmatprep.subr.mxu0 0.0
  %1118 = vmatpush1.msra.mxu0 0.0
  %1119 = vmatprep.subr.mxu0 0.0
  %1120 = vmatpush1.msra.mxu0 0.0
  %1121 = vmatprep.subr.mxu0 0.0
  %1122 = vmatpush1.msra.mxu0 0.0
  %1123 = vmatprep.subr.mxu0 0.0
  %1124 = vmatpush1.msra.mxu0 0.0
  %1125 = vmatprep.subr.mxu0 0.0
  %1126 = vmatpush1.msra.mxu0 0.0
  %1127 = vmatprep.subr.mxu0 0.0
  %1128 = vmatpush1.msra.mxu0 0.0
  %1129 = vmatprep.subr.mxu0 0.0
  %1130 = vmatpush1.msra.mxu0 0.0
  %1131 = vmatprep.subr.mxu0 0.0
  %1132 = vmatpush1.msra.mxu0 0.0
  %1133 = vmatprep.subr.mxu0 0.0
  %1134 = vmatpush1.msra.mxu0 0.0
  %1135 = vmatprep.subr.mxu0 0.0
  %1136 = vmatpush1.msra.mxu0 0.0
  %1137 = vmatprep.subr.mxu0 0.0
  %1138 = vmatpush1.msra.mxu0 0.0
  %1139 = vmatprep.subr.mxu0 0.0
  %1140 = vmatpush1.msra.mxu0 0.0
  %1141 = vmatprep.subr.mxu0 0.0
  %1142 = vmatpush1.msra.mxu0 0.0
  %1143 = vmatprep.subr.mxu0 0.0
  %1144 = vmatpush1.msra.mxu0 0.0
  %1145 = vmatprep.subr.mxu0 0.0
  %1146 = vmatpush1.msra.mxu0 0.0
  %1147 = vmatprep.mubr.f32.mxu0 0.0
  %1148 = vmatmul.mubr.f32.gmra.mrb[0].mxu0 %v988
  %v1149 = vpop.f32.mrb[0].mxu0
  %v1150 = vadd.f32 0.0, %v1149
  %v1151 = vpop.f32.mrb[0].mxu0
  %v1152 = vadd.f32 0.0, %v1151
  %1153 = vmatprep.mubr.f32.mxu0 0.0
  %1154 = vmatmul.mubr.f32.gmra.mrb[0].mxu0 %v991
  %v1155 = vpop.f32.mrb[0].mxu0
  %v1156 = vadd.f32 0.0, %v1155
  %v1157 = vpop.f32.mrb[0].mxu0
  %v1158 = vadd.f32 0.0, %v1157
  %1159 = vmatprep.mubr.f32.mxu0 0.0
  %1160 = vmatmul.mubr.f32.gmra.mrb[0].mxu0 %v994
  %v1161 = vpop.f32.mrb[0].mxu0
  %v1162 = vadd.f32 0.0, %v1161
  %v1163 = vpop.f32.mrb[0].mxu0
  %v1164 = vadd.f32 0.0, %v1163
  %1165 = vmatprep.mubr.f32.mxu0 0.0
  %1166 = vmatmul.mubr.f32.gmra.mrb[0].mxu0 %v997
  %v1167 = vpop.f32.mrb[0].mxu0
  %v1168 = vadd.f32 0.0, %v1167
  %v1169 = vpop.f32.mrb[0].mxu0
  %v1170 = vadd.f32 0.0, %v1169
  %1171 = vmatprep.mubr.f32.mxu0 0.0
  %1172 = vmatmul.mubr.f32.gmra.mrb[0].mxu0 %v1000
  %v1173 = vpop.f32.mrb[0].mxu0
  %v1174 = vadd.f32 0.0, %v1173
  %v1175 = vpop.f32.mrb[0].mxu0
  %v1176 = vadd.f32 0.0, %v1175
  %1177 = vmatprep.mubr.f32.mxu0 0.0
  %1178 = vmatmul.mubr.f32.gmra.mrb[0].mxu0 %v1003
  %v1179 = vpop.f32.mrb[0].mxu0
  %v1180 = vadd.f32 0.0, %v1179
  %v1181 = vpop.f32.mrb[0].mxu0
  %v1182 = vadd.f32 0.0, %v1181
  %1183 = vmatprep.mubr.f32.mxu0 0.0
  %1184 = vmatmul.mubr.f32.gmra.mrb[0].mxu0 %v1006
  %v1185 = vpop.f32.mrb[0].mxu0
  %v1186 = vadd.f32 0.0, %v1185
  %v1187 = vpop.f32.mrb[0].mxu0
  %v1188 = vadd.f32 0.0, %v1187
  %1189 = vmatprep.mubr.f32.mxu0 0.0
  %1190 = vmatmul.mubr.f32.gmra.mrb[0].mxu0 %v1009
  %v1191 = vpop.f32.mrb[0].mxu0
  %v1192 = vadd.f32 0.0, %v1191
  %v1193 = vpop.f32.mrb[0].mxu0
  %v1194 = vadd.f32 0.0, %v1193
  %1195 = vmatprep.mubr.f32.mxu0 0.0
  %1196 = vmatmul.mubr.f32.gmra.mrb[0].mxu0 %v1012
  %v1197 = vpop.f32.mrb[0].mxu0
  %v1198 = vadd.f32 0.0, %v1197
  %v1199 = vpop.f32.mrb[0].mxu0
  %v1200 = vadd.f32 0.0, %v1199
  %1201 = vmatprep.mubr.f32.mxu0 0.0
  %1202 = vmatmul.mubr.f32.gmra.mrb[0].mxu0 %v1015
  %v1203 = vpop.f32.mrb[0].mxu0
  %v1204 = vadd.f32 0.0, %v1203
  %v1205 = vpop.f32.mrb[0].mxu0
  %v1206 = vadd.f32 0.0, %v1205
  %1207 = vmatprep.mubr.f32.mxu0 0.0
  %1208 = vmatmul.mubr.f32.gmra.mrb[0].mxu0 %v1018
  %v1209 = vpop.f32.mrb[0].mxu0
  %v1210 = vadd.f32 0.0, %v1209
  %v1211 = vpop.f32.mrb[0].mxu0
  %v1212 = vadd.f32 0.0, %v1211
  %1213 = vmatprep.mubr.f32.mxu0 0.0
  %1214 = vmatmul.mubr.f32.gmra.mrb[0].mxu0 %v1021
  %v1215 = vpop.f32.mrb[0].mxu0
  %v1216 = vadd.f32 0.0, %v1215
  %v1217 = vpop.f32.mrb[0].mxu0
  %v1218 = vadd.f32 0.0, %v1217
  %1219 = vmatprep.mubr.f32.mxu0 0.0
  %1220 = vmatmul.mubr.f32.gmra.mrb[0].mxu0 %v1024
  %v1221 = vpop.f32.mrb[0].mxu0
  %v1222 = vadd.f32 0.0, %v1221
  %v1223 = vpop.f32.mrb[0].mxu0
  %v1224 = vadd.f32 0.0, %v1223
  %1225 = vmatprep.mubr.f32.mxu0 0.0
  %1226 = vmatmul.mubr.f32.gmra.mrb[0].mxu0 %v1027
  %v1227 = vpop.f32.mrb[0].mxu0
  %v1228 = vadd.f32 0.0, %v1227
  %v1229 = vpop.f32.mrb[0].mxu0
  %v1230 = vadd.f32 0.0, %v1229
  %1231 = vmatprep.mubr.f32.mxu0 0.0
  %1232 = vmatmul.mubr.f32.gmra.mrb[0].mxu0 %v1030
  %v1233 = vpop.f32.mrb[0].mxu0
  %v1234 = vadd.f32 0.0, %v1233
  %v1235 = vpop.f32.mrb[0].mxu0
  %v1236 = vadd.f32 0.0, %v1235
  %1237 = vmatprep.mubr.f32.mxu0 0.0
  %1238 = vmatmul.mubr.f32.gmra.mrb[0].mxu0 %v1033
  %v1239 = vpop.f32.mrb[0].mxu0
  %v1240 = vadd.f32 0.0, %v1239
  %v1241 = vpop.f32.mrb[0].mxu0
  %v1242 = vadd.f32 0.0, %v1241
  %1243 = vmatprep.mubr.f32.mxu0 0.0
  %1244 = vmatmul.mubr.f32.gmra.mrb[0].mxu0 %v1036
  %v1245 = vpop.f32.mrb[0].mxu0
  %v1246 = vadd.f32 0.0, %v1245
  %v1247 = vpop.f32.mrb[0].mxu0
  %v1248 = vadd.f32 0.0, %v1247
  %1249 = vmatprep.mubr.f32.mxu0 0.0
  %1250 = vmatmul.mubr.f32.gmra.mrb[0].mxu0 %v1039
  %v1251 = vpop.f32.mrb[0].mxu0
  %v1252 = vadd.f32 0.0, %v1251
  %v1253 = vpop.f32.mrb[0].mxu0
  %v1254 = vadd.f32 0.0, %v1253
  %1255 = vmatprep.mubr.f32.mxu0 0.0
  %1256 = vmatmul.mubr.f32.gmra.mrb[0].mxu0 %v1042
  %v1257 = vpop.f32.mrb[0].mxu0
  %v1258 = vadd.f32 0.0, %v1257
  %v1259 = vpop.f32.mrb[0].mxu0
  %v1260 = vadd.f32 0.0, %v1259
  %1261 = vmatprep.mubr.f32.mxu0 0.0
  %1262 = vmatmul.mubr.f32.gmra.mrb[0].mxu0 %v1045
  %v1263 = vpop.f32.mrb[0].mxu0
  %v1264 = vadd.f32 0.0, %v1263
  %v1265 = vpop.f32.mrb[0].mxu0
  %v1266 = vadd.f32 0.0, %v1265
  %1267 = vmatprep.mubr.f32.mxu0 0.0
  %1268 = vmatmul.mubr.f32.gmra.mrb[0].mxu0 %v1048
  %v1269 = vpop.f32.mrb[0].mxu0
  %v1270 = vadd.f32 0.0, %v1269
  %v1271 = vpop.f32.mrb[0].mxu0
  %v1272 = vadd.f32 0.0, %v1271
  %1273 = vmatprep.mubr.f32.mxu0 0.0
  %1274 = vmatmul.mubr.f32.gmra.mrb[0].mxu0 %v1051
  %v1275 = vpop.f32.mrb[0].mxu0
  %v1276 = vadd.f32 0.0, %v1275
  %v1277 = vpop.f32.mrb[0].mxu0
  %v1278 = vadd.f32 0.0, %v1277
  %1279 = vmatprep.mubr.f32.mxu0 0.0
  %1280 = vmatmul.mubr.f32.gmra.mrb[0].mxu0 %v1054
  %v1281 = vpop.f32.mrb[0].mxu0
  %v1282 = vadd.f32 0.0, %v1281
  %v1283 = vpop.f32.mrb[0].mxu0
  %v1284 = vadd.f32 0.0, %v1283
  %1285 = vmatprep.mubr.f32.mxu0 0.0
  %1286 = vmatmul.mubr.f32.gmra.mrb[0].mxu0 %v1057
  %v1287 = vpop.f32.mrb[0].mxu0
  %v1288 = vadd.f32 0.0, %v1287
  %v1289 = vpop.f32.mrb[0].mxu0
  %v1290 = vadd.f32 0.0, %v1289
  %1291 = vmatprep.mubr.f32.mxu0 0.0
  %1292 = vmatmul.mubr.f32.gmra.mrb[0].mxu0 %v1060
  %v1293 = vpop.f32.mrb[0].mxu0
  %v1294 = vadd.f32 0.0, %v1293
  %v1295 = vpop.f32.mrb[0].mxu0
  %v1296 = vadd.f32 0.0, %v1295
  %1297 = vmatprep.mubr.f32.mxu0 0.0
  %1298 = vmatmul.mubr.f32.gmra.mrb[0].mxu0 %v1063
  %v1299 = vpop.f32.mrb[0].mxu0
  %v1300 = vadd.f32 0.0, %v1299
  %v1301 = vpop.f32.mrb[0].mxu0
  %v1302 = vadd.f32 0.0, %v1301
  %1303 = vmatprep.mubr.f32.mxu0 0.0
  %1304 = vmatmul.mubr.f32.gmra.mrb[0].mxu0 %v1066
  %v1305 = vpop.f32.mrb[0].mxu0
  %v1306 = vadd.f32 0.0, %v1305
  %v1307 = vpop.f32.mrb[0].mxu0
  %v1308 = vadd.f32 0.0, %v1307
  %1309 = vmatprep.mubr.f32.mxu0 0.0
  %1310 = vmatmul.mubr.f32.gmra.mrb[0].mxu0 %v1069
  %v1311 = vpop.f32.mrb[0].mxu0
  %v1312 = vadd.f32 0.0, %v1311
  %v1313 = vpop.f32.mrb[0].mxu0
  %v1314 = vadd.f32 0.0, %v1313
  %1315 = vmatprep.mubr.f32.mxu0 0.0
  %1316 = vmatmul.mubr.f32.gmra.mrb[0].mxu0 %v1072
  %v1317 = vpop.f32.mrb[0].mxu0
  %v1318 = vadd.f32 0.0, %v1317
  %v1319 = vpop.f32.mrb[0].mxu0
  %v1320 = vadd.f32 0.0, %v1319
  %1321 = vmatprep.mubr.f32.mxu0 0.0
  %1322 = vmatmul.mubr.f32.gmra.mrb[0].mxu0 %v1075
  %v1323 = vpop.f32.mrb[0].mxu0
  %v1324 = vadd.f32 0.0, %v1323
  %v1325 = vpop.f32.mrb[0].mxu0
  %v1326 = vadd.f32 0.0, %v1325
  %1327 = vmatprep.mubr.f32.mxu0 0.0
  %1328 = vmatmul.mubr.f32.gmra.mrb[0].mxu0 %v1078
  %v1329 = vpop.f32.mrb[0].mxu0
  %v1330 = vadd.f32 0.0, %v1329
  %v1331 = vpop.f32.mrb[0].mxu0
  %v1332 = vadd.f32 0.0, %v1331
  %1333 = vmatprep.mubr.f32.mxu0 0.0
  %1334 = vmatmul.mubr.f32.gmra.mrb[0].mxu0 %v1081
  %v1335 = vpop.f32.mrb[0].mxu0
  %v1336 = vadd.f32 0.0, %v1335
  %v1337 = vpop.f32.mrb[0].mxu0
  %v1338 = vadd.f32 0.0, %v1337
  %1339 = vdwg.mxu0
  %v1341 = vsel %vm223, %v109, 0
  %v1344 = vsel %vm223, %v110, 0
  %v1347 = vsel %vm223, %v111, 0
  %v1350 = vsel %vm223, %v112, 0
  %v1353 = vsel %vm223, %v113, 0
  %v1356 = vsel %vm223, %v114, 0
  %v1359 = vsel %vm223, %v115, 0
  %v1362 = vsel %vm223, %v116, 0
  %v1365 = vsel %vm223, %v117, 0
  %v1368 = vsel %vm223, %v118, 0
  %v1371 = vsel %vm223, %v119, 0
  %v1374 = vsel %vm223, %v120, 0
  %v1377 = vsel %vm223, %v121, 0
  %v1380 = vsel %vm223, %v122, 0
  %v1383 = vsel %vm223, %v123, 0
  %v1386 = vsel %vm223, %v124, 0
  %v1389 = vsel %vm223, %v125, 0
  %v1392 = vsel %vm223, %v126, 0
  %v1395 = vsel %vm223, %v127, 0
  %v1398 = vsel %vm223, %v128, 0
  %v1401 = vsel %vm223, %v129, 0
  %v1404 = vsel %vm223, %v130, 0
  %v1407 = vsel %vm223, %v131, 0
  %v1410 = vsel %vm223, %v132, 0
  %v1413 = vsel %vm223, %v133, 0
  %v1416 = vsel %vm223, %v134, 0
  %v1419 = vsel %vm223, %v135, 0
  %v1422 = vsel %vm223, %v136, 0
  %v1425 = vsel %vm223, %v137, 0
  %v1428 = vsel %vm223, %v138, 0
  %v1431 = vsel %vm223, %v139, 0
  %v1434 = vsel %vm223, %v140, 0
  %1436 = vmatprep.subr.mxu0 %v143
  %1437 = vmatpush1.msra.mxu0 %v142
  %1438 = vmatprep.subr.mxu0 %v145
  %1439 = vmatpush1.msra.mxu0 %v144
  %1440 = vmatprep.subr.mxu0 %v147
  %1441 = vmatpush1.msra.mxu0 %v146
  %1442 = vmatprep.subr.mxu0 %v149
  %1443 = vmatpush1.msra.mxu0 %v148
  %1444 = vmatprep.subr.mxu0 %v151
  %1445 = vmatpush1.msra.mxu0 %v150
  %1446 = vmatprep.subr.mxu0 %v153
  %1447 = vmatpush1.msra.mxu0 %v152
  %1448 = vmatprep.subr.mxu0 %v155
  %1449 = vmatpush1.msra.mxu0 %v154
  %1450 = vmatprep.subr.mxu0 %v157
  %1451 = vmatpush1.msra.mxu0 %v156
  %1452 = vmatprep.subr.mxu0 %v159
  %1453 = vmatpush1.msra.mxu0 %v158
  %1454 = vmatprep.subr.mxu0 %v161
  %1455 = vmatpush1.msra.mxu0 %v160
  %1456 = vmatprep.subr.mxu0 %v163
  %1457 = vmatpush1.msra.mxu0 %v162
  %1458 = vmatprep.subr.mxu0 %v165
  %1459 = vmatpush1.msra.mxu0 %v164
  %1460 = vmatprep.subr.mxu0 0.0
  %1461 = vmatpush1.msra.mxu0 0.0
  %1462 = vmatprep.subr.mxu0 0.0
  %1463 = vmatpush1.msra.mxu0 0.0
  %1464 = vmatprep.subr.mxu0 0.0
  %1465 = vmatpush1.msra.mxu0 0.0
  %1466 = vmatprep.subr.mxu0 0.0
  %1467 = vmatpush1.msra.mxu0 0.0
  %1468 = vmatprep.subr.mxu0 0.0
  %1469 = vmatpush1.msra.mxu0 0.0
  %1470 = vmatprep.subr.mxu0 0.0
  %1471 = vmatpush1.msra.mxu0 0.0
  %1472 = vmatprep.subr.mxu0 0.0
  %1473 = vmatpush1.msra.mxu0 0.0
  %1474 = vmatprep.subr.mxu0 0.0
  %1475 = vmatpush1.msra.mxu0 0.0
  %1476 = vmatprep.subr.mxu0 0.0
  %1477 = vmatpush1.msra.mxu0 0.0
  %1478 = vmatprep.subr.mxu0 0.0
  %1479 = vmatpush1.msra.mxu0 0.0
  %1480 = vmatprep.subr.mxu0 0.0
  %1481 = vmatpush1.msra.mxu0 0.0
  %1482 = vmatprep.subr.mxu0 0.0
  %1483 = vmatpush1.msra.mxu0 0.0
  %1484 = vmatprep.subr.mxu0 0.0
  %1485 = vmatpush1.msra.mxu0 0.0
  %1486 = vmatprep.subr.mxu0 0.0
  %1487 = vmatpush1.msra.mxu0 0.0
  %1488 = vmatprep.subr.mxu0 0.0
  %1489 = vmatpush1.msra.mxu0 0.0
  %1490 = vmatprep.subr.mxu0 0.0
  %1491 = vmatpush1.msra.mxu0 0.0
  %1492 = vmatprep.subr.mxu0 0.0
  %1493 = vmatpush1.msra.mxu0 0.0
  %1494 = vmatprep.subr.mxu0 0.0
  %1495 = vmatpush1.msra.mxu0 0.0
  %1496 = vmatprep.subr.mxu0 0.0
  %1497 = vmatpush1.msra.mxu0 0.0
  %1498 = vmatprep.subr.mxu0 0.0
  %1499 = vmatpush1.msra.mxu0 0.0
  %1500 = vmatprep.mubr.f32.mxu0 0.0
  %1501 = vmatmul.mubr.f32.gmra.mrb[0].mxu0 %v1341
  %v1502 = vpop.f32.mrb[0].mxu0
  %v1503 = vadd.f32 %v1150, %v1502
  %v1504 = vpop.f32.mrb[0].mxu0
  %v1505 = vadd.f32 %v1152, %v1504
  %1506 = vmatprep.mubr.f32.mxu0 0.0
  %1507 = vmatmul.mubr.f32.gmra.mrb[0].mxu0 %v1344
  %v1508 = vpop.f32.mrb[0].mxu0
  %v1509 = vadd.f32 %v1156, %v1508
  %v1510 = vpop.f32.mrb[0].mxu0
  %v1511 = vadd.f32 %v1158, %v1510
  %1512 = vmatprep.mubr.f32.mxu0 0.0
  %1513 = vmatmul.mubr.f32.gmra.mrb[0].mxu0 %v1347
  %v1514 = vpop.f32.mrb[0].mxu0
  %v1515 = vadd.f32 %v1162, %v1514
  %v1516 = vpop.f32.mrb[0].mxu0
  %v1517 = vadd.f32 %v1164, %v1516
  %1518 = vmatprep.mubr.f32.mxu0 0.0
  %1519 = vmatmul.mubr.f32.gmra.mrb[0].mxu0 %v1350
  %v1520 = vpop.f32.mrb[0].mxu0
  %v1521 = vadd.f32 %v1168, %v1520
  %v1522 = vpop.f32.mrb[0].mxu0
  %v1523 = vadd.f32 %v1170, %v1522
  %1524 = vmatprep.mubr.f32.mxu0 0.0
  %1525 = vmatmul.mubr.f32.gmra.mrb[0].mxu0 %v1353
  %v1526 = vpop.f32.mrb[0].mxu0
  %v1527 = vadd.f32 %v1174, %v1526
  %v1528 = vpop.f32.mrb[0].mxu0
  %v1529 = vadd.f32 %v1176, %v1528
  %1530 = vmatprep.mubr.f32.mxu0 0.0
  %1531 = vmatmul.mubr.f32.gmra.mrb[0].mxu0 %v1356
  %v1532 = vpop.f32.mrb[0].mxu0
  %v1533 = vadd.f32 %v1180, %v1532
  %v1534 = vpop.f32.mrb[0].mxu0
  %v1535 = vadd.f32 %v1182, %v1534
  %1536 = vmatprep.mubr.f32.mxu0 0.0
  %1537 = vmatmul.mubr.f32.gmra.mrb[0].mxu0 %v1359
  %v1538 = vpop.f32.mrb[0].mxu0
  %v1539 = vadd.f32 %v1186, %v1538
  %v1540 = vpop.f32.mrb[0].mxu0
  %v1541 = vadd.f32 %v1188, %v1540
  %1542 = vmatprep.mubr.f32.mxu0 0.0
  %1543 = vmatmul.mubr.f32.gmra.mrb[0].mxu0 %v1362
  %v1544 = vpop.f32.mrb[0].mxu0
  %v1545 = vadd.f32 %v1192, %v1544
  %v1546 = vpop.f32.mrb[0].mxu0
  %v1547 = vadd.f32 %v1194, %v1546
  %1548 = vmatprep.mubr.f32.mxu0 0.0
  %1549 = vmatmul.mubr.f32.gmra.mrb[0].mxu0 %v1365
  %v1550 = vpop.f32.mrb[0].mxu0
  %v1551 = vadd.f32 %v1198, %v1550
  %v1552 = vpop.f32.mrb[0].mxu0
  %v1553 = vadd.f32 %v1200, %v1552
  %1554 = vmatprep.mubr.f32.mxu0 0.0
  %1555 = vmatmul.mubr.f32.gmra.mrb[0].mxu0 %v1368
  %v1556 = vpop.f32.mrb[0].mxu0
  %v1557 = vadd.f32 %v1204, %v1556
  %v1558 = vpop.f32.mrb[0].mxu0
  %v1559 = vadd.f32 %v1206, %v1558
  %1560 = vmatprep.mubr.f32.mxu0 0.0
  %1561 = vmatmul.mubr.f32.gmra.mrb[0].mxu0 %v1371
  %v1562 = vpop.f32.mrb[0].mxu0
  %v1563 = vadd.f32 %v1210, %v1562
  %v1564 = vpop.f32.mrb[0].mxu0
  %v1565 = vadd.f32 %v1212, %v1564
  %1566 = vmatprep.mubr.f32.mxu0 0.0
  %1567 = vmatmul.mubr.f32.gmra.mrb[0].mxu0 %v1374
  %v1568 = vpop.f32.mrb[0].mxu0
  %v1569 = vadd.f32 %v1216, %v1568
  %v1570 = vpop.f32.mrb[0].mxu0
  %v1571 = vadd.f32 %v1218, %v1570
  %1572 = vmatprep.mubr.f32.mxu0 0.0
  %1573 = vmatmul.mubr.f32.gmra.mrb[0].mxu0 %v1377
  %v1574 = vpop.f32.mrb[0].mxu0
  %v1575 = vadd.f32 %v1222, %v1574
  %v1576 = vpop.f32.mrb[0].mxu0
  %v1577 = vadd.f32 %v1224, %v1576
  %1578 = vmatprep.mubr.f32.mxu0 0.0
  %1579 = vmatmul.mubr.f32.gmra.mrb[0].mxu0 %v1380
  %v1580 = vpop.f32.mrb[0].mxu0
  %v1581 = vadd.f32 %v1228, %v1580
  %v1582 = vpop.f32.mrb[0].mxu0
  %v1583 = vadd.f32 %v1230, %v1582
  %1584 = vmatprep.mubr.f32.mxu0 0.0
  %1585 = vmatmul.mubr.f32.gmra.mrb[0].mxu0 %v1383
  %v1586 = vpop.f32.mrb[0].mxu0
  %v1587 = vadd.f32 %v1234, %v1586
  %v1588 = vpop.f32.mrb[0].mxu0
  %v1589 = vadd.f32 %v1236, %v1588
  %1590 = vmatprep.mubr.f32.mxu0 0.0
  %1591 = vmatmul.mubr.f32.gmra.mrb[0].mxu0 %v1386
  %v1592 = vpop.f32.mrb[0].mxu0
  %v1593 = vadd.f32 %v1240, %v1592
  %v1594 = vpop.f32.mrb[0].mxu0
  %v1595 = vadd.f32 %v1242, %v1594
  %1596 = vmatprep.mubr.f32.mxu0 0.0
  %1597 = vmatmul.mubr.f32.gmra.mrb[0].mxu0 %v1389
  %v1598 = vpop.f32.mrb[0].mxu0
  %v1599 = vadd.f32 %v1246, %v1598
  %v1600 = vpop.f32.mrb[0].mxu0
  %v1601 = vadd.f32 %v1248, %v1600
  %1602 = vmatprep.mubr.f32.mxu0 0.0
  %1603 = vmatmul.mubr.f32.gmra.mrb[0].mxu0 %v1392
  %v1604 = vpop.f32.mrb[0].mxu0
  %v1605 = vadd.f32 %v1252, %v1604
  %v1606 = vpop.f32.mrb[0].mxu0
  %v1607 = vadd.f32 %v1254, %v1606
  %1608 = vmatprep.mubr.f32.mxu0 0.0
  %1609 = vmatmul.mubr.f32.gmra.mrb[0].mxu0 %v1395
  %v1610 = vpop.f32.mrb[0].mxu0
  %v1611 = vadd.f32 %v1258, %v1610
  %v1612 = vpop.f32.mrb[0].mxu0
  %v1613 = vadd.f32 %v1260, %v1612
  %1614 = vmatprep.mubr.f32.mxu0 0.0
  %1615 = vmatmul.mubr.f32.gmra.mrb[0].mxu0 %v1398
  %v1616 = vpop.f32.mrb[0].mxu0
  %v1617 = vadd.f32 %v1264, %v1616
  %v1618 = vpop.f32.mrb[0].mxu0
  %v1619 = vadd.f32 %v1266, %v1618
  %1620 = vmatprep.mubr.f32.mxu0 0.0
  %1621 = vmatmul.mubr.f32.gmra.mrb[0].mxu0 %v1401
  %v1622 = vpop.f32.mrb[0].mxu0
  %v1623 = vadd.f32 %v1270, %v1622
  %v1624 = vpop.f32.mrb[0].mxu0
  %v1625 = vadd.f32 %v1272, %v1624
  %1626 = vmatprep.mubr.f32.mxu0 0.0
  %1627 = vmatmul.mubr.f32.gmra.mrb[0].mxu0 %v1404
  %v1628 = vpop.f32.mrb[0].mxu0
  %v1629 = vadd.f32 %v1276, %v1628
  %v1630 = vpop.f32.mrb[0].mxu0
  %v1631 = vadd.f32 %v1278, %v1630
  %1632 = vmatprep.mubr.f32.mxu0 0.0
  %1633 = vmatmul.mubr.f32.gmra.mrb[0].mxu0 %v1407
  %v1634 = vpop.f32.mrb[0].mxu0
  %v1635 = vadd.f32 %v1282, %v1634
  %v1636 = vpop.f32.mrb[0].mxu0
  %v1637 = vadd.f32 %v1284, %v1636
  %1638 = vmatprep.mubr.f32.mxu0 0.0
  %1639 = vmatmul.mubr.f32.gmra.mrb[0].mxu0 %v1410
  %v1640 = vpop.f32.mrb[0].mxu0
  %v1641 = vadd.f32 %v1288, %v1640
  %v1642 = vpop.f32.mrb[0].mxu0
  %v1643 = vadd.f32 %v1290, %v1642
  %1644 = vmatprep.mubr.f32.mxu0 0.0
  %1645 = vmatmul.mubr.f32.gmra.mrb[0].mxu0 %v1413
  %v1646 = vpop.f32.mrb[0].mxu0
  %v1647 = vadd.f32 %v1294, %v1646
  %v1648 = vpop.f32.mrb[0].mxu0
  %v1649 = vadd.f32 %v1296, %v1648
  %1650 = vmatprep.mubr.f32.mxu0 0.0
  %1651 = vmatmul.mubr.f32.gmra.mrb[0].mxu0 %v1416
  %v1652 = vpop.f32.mrb[0].mxu0
  %v1653 = vadd.f32 %v1300, %v1652
  %v1654 = vpop.f32.mrb[0].mxu0
  %v1655 = vadd.f32 %v1302, %v1654
  %1656 = vmatprep.mubr.f32.mxu0 0.0
  %1657 = vmatmul.mubr.f32.gmra.mrb[0].mxu0 %v1419
  %v1658 = vpop.f32.mrb[0].mxu0
  %v1659 = vadd.f32 %v1306, %v1658
  %v1660 = vpop.f32.mrb[0].mxu0
  %v1661 = vadd.f32 %v1308, %v1660
  %1662 = vmatprep.mubr.f32.mxu0 0.0
  %1663 = vmatmul.mubr.f32.gmra.mrb[0].mxu0 %v1422
  %v1664 = vpop.f32.mrb[0].mxu0
  %v1665 = vadd.f32 %v1312, %v1664
  %v1666 = vpop.f32.mrb[0].mxu0
  %v1667 = vadd.f32 %v1314, %v1666
  %1668 = vmatprep.mubr.f32.mxu0 0.0
  %1669 = vmatmul.mubr.f32.gmra.mrb[0].mxu0 %v1425
  %v1670 = vpop.f32.mrb[0].mxu0
  %v1671 = vadd.f32 %v1318, %v1670
  %v1672 = vpop.f32.mrb[0].mxu0
  %v1673 = vadd.f32 %v1320, %v1672
  %1674 = vmatprep.mubr.f32.mxu0 0.0
  %1675 = vmatmul.mubr.f32.gmra.mrb[0].mxu0 %v1428
  %v1676 = vpop.f32.mrb[0].mxu0
  %v1677 = vadd.f32 %v1324, %v1676
  %v1678 = vpop.f32.mrb[0].mxu0
  %v1679 = vadd.f32 %v1326, %v1678
  %1680 = vmatprep.mubr.f32.mxu0 0.0
  %1681 = vmatmul.mubr.f32.gmra.mrb[0].mxu0 %v1431
  %v1682 = vpop.f32.mrb[0].mxu0
  %v1683 = vadd.f32 %v1330, %v1682
  %v1684 = vpop.f32.mrb[0].mxu0
  %v1685 = vadd.f32 %v1332, %v1684
  %1686 = vmatprep.mubr.f32.mxu0 0.0
  %1687 = vmatmul.mubr.f32.gmra.mrb[0].mxu0 %v1434
  %v1688 = vpop.f32.mrb[0].mxu0
  %v1689 = vadd.f32 %v1336, %v1688
  %v1690 = vpop.f32.mrb[0].mxu0
  %v1691 = vadd.f32 %v1338, %v1690
  %1692 = vdwg.mxu0
  %v1693 = vld [vmem:[%s0 + $0x4] sm:$0xff]
  %v1694 = vld [vmem:[%s0 + $0xc] sm:$0xff]
  %v1695 = vld [vmem:[%s0 + $0x14] sm:$0xff]
  %v1696 = vld [vmem:[%s0 + $0x1c] sm:$0xff]
  %v1697 = vld [vmem:[%s0 + $0x24] sm:$0xff]
  %v1698 = vld [vmem:[%s0 + $0x2c] sm:$0xff]
  %v1699 = vld [vmem:[%s0 + $0x34] sm:$0xff]
  %v1700 = vld [vmem:[%s0 + $0x3c] sm:$0xff]
  %v1701 = vld [vmem:[%s0 + $0x44] sm:$0xff]
  %v1702 = vld [vmem:[%s0 + $0x4c] sm:$0xff]
  %v1703 = vld [vmem:[%s0 + $0x54] sm:$0xff]
  %v1704 = vld [vmem:[%s0 + $0x5c] sm:$0xff]
  %v1705 = vld [vmem:[%s0 + $0x64] sm:$0xff]
  %v1706 = vld [vmem:[%s0 + $0x6c] sm:$0xff]
  %v1707 = vld [vmem:[%s0 + $0x74] sm:$0xff]
  %v1708 = vld [vmem:[%s0 + $0x7c] sm:$0xff]
  %v1709 = vld [vmem:[%s0 + $0x84] sm:$0xff]
  %v1710 = vld [vmem:[%s0 + $0x8c] sm:$0xff]
  %v1711 = vld [vmem:[%s0 + $0x94] sm:$0xff]
  %v1712 = vld [vmem:[%s0 + $0x9c] sm:$0xff]
  %v1713 = vld [vmem:[%s0 + $0xa4] sm:$0xff]
  %v1714 = vld [vmem:[%s0 + $0xac] sm:$0xff]
  %v1715 = vld [vmem:[%s0 + $0xb4] sm:$0xff]
  %v1716 = vld [vmem:[%s0 + $0xbc] sm:$0xff]
  %v1717 = vld [vmem:[%s0 + $0xc4] sm:$0xff]
  %v1718 = vld [vmem:[%s0 + $0xcc] sm:$0xff]
  %v1719 = vld [vmem:[%s0 + $0xd4] sm:$0xff]
  %v1720 = vld [vmem:[%s0 + $0xdc] sm:$0xff]
  %v1721 = vld [vmem:[%s0 + $0xe4] sm:$0xff]
  %v1722 = vld [vmem:[%s0 + $0xec] sm:$0xff]
  %v1723 = vld [vmem:[%s0 + $0xf4] sm:$0xff]
  %v1724 = vld [vmem:[%s0 + $0xfc] sm:$0xf]
  %s1725 = scalar_lea.vmem %s1, 768
  %v1726 = vld [vmem:[%s1725] sm:$0xff]
  %v1727 = vld [vmem:[%s1725 + $0x8] sm:$0xff]
  %v1728 = vld [vmem:[%s1725 + $0x10] sm:$0xff]
  %v1729 = vld [vmem:[%s1725 + $0x18] sm:$0xff]
  %v1730 = vld [vmem:[%s1725 + $0x20] sm:$0xff]
  %v1731 = vld [vmem:[%s1725 + $0x28] sm:$0xff]
  %v1732 = vld [vmem:[%s1725 + $0x30] sm:$0xff]
  %v1733 = vld [vmem:[%s1725 + $0x38] sm:$0xff]
  %v1734 = vld [vmem:[%s1725 + $0x40] sm:$0xff]
  %v1735 = vld [vmem:[%s1725 + $0x48] sm:$0xff]
  %v1736 = vld [vmem:[%s1725 + $0x50] sm:$0xff]
  %v1737 = vld [vmem:[%s1725 + $0x58] sm:$0xff]
  %v1738 = vld [vmem:[%s1725 + $0x60] sm:$0xff]
  %v1739 = vld [vmem:[%s1725 + $0x68] sm:$0xff]
  %v1740 = vld [vmem:[%s1725 + $0x70] sm:$0xff]
  %v1741 = vld [vmem:[%s1725 + $0x78] sm:$0xff]
  %v1742 = vld [vmem:[%s1725 + $0x80] sm:$0xff]
  %v1743 = vld [vmem:[%s1725 + $0x88] sm:$0xff]
  %v1744 = vld [vmem:[%s1725 + $0x90] sm:$0xff]
  %v1745 = vld [vmem:[%s1725 + $0x98] sm:$0xff]
  %v1746 = vld [vmem:[%s1725 + $0xa0] sm:$0xff]
  %v1747 = vld [vmem:[%s1725 + $0xa8] sm:$0xff]
  %v1748 = vld [vmem:[%s1725 + $0xb0] sm:$0xff]
  %v1749 = vld [vmem:[%s1725 + $0xb8] sm:$0xff]
  %v1751 = vsel %vm223, %v1693, 0
  %v1754 = vsel %vm223, %v1694, 0
  %v1757 = vsel %vm223, %v1695, 0
  %v1760 = vsel %vm223, %v1696, 0
  %v1763 = vsel %vm223, %v1697, 0
  %v1766 = vsel %vm223, %v1698, 0
  %v1769 = vsel %vm223, %v1699, 0
  %v1772 = vsel %vm223, %v1700, 0
  %v1775 = vsel %vm223, %v1701, 0
  %v1778 = vsel %vm223, %v1702, 0
  %v1781 = vsel %vm223, %v1703, 0
  %v1784 = vsel %vm223, %v1704, 0
  %v1787 = vsel %vm223, %v1705, 0
  %v1790 = vsel %vm223, %v1706, 0
  %v1793 = vsel %vm223, %v1707, 0
  %v1796 = vsel %vm223, %v1708, 0
  %v1799 = vsel %vm223, %v1709, 0
  %v1802 = vsel %vm223, %v1710, 0
  %v1805 = vsel %vm223, %v1711, 0
  %v1808 = vsel %vm223, %v1712, 0
  %v1811 = vsel %vm223, %v1713, 0
  %v1814 = vsel %vm223, %v1714, 0
  %v1817 = vsel %vm223, %v1715, 0
  %v1820 = vsel %vm223, %v1716, 0
  %v1823 = vsel %vm223, %v1717, 0
  %v1826 = vsel %vm223, %v1718, 0
  %v1829 = vsel %vm223, %v1719, 0
  %v1832 = vsel %vm223, %v1720, 0
  %v1835 = vsel %vm223, %v1721, 0
  %v1838 = vsel %vm223, %v1722, 0
  %v1841 = vsel %vm223, %v1723, 0
  %v1844 = vsel %vm223, %v1724, 0
  %1846 = vmatprep.subr.mxu0 %v1727
  %1847 = vmatpush1.msra.mxu0 %v1726
  %1848 = vmatprep.subr.mxu0 %v1729
  %1849 = vmatpush1.msra.mxu0 %v1728
  %1850 = vmatprep.subr.mxu0 %v1731
  %1851 = vmatpush1.msra.mxu0 %v1730
  %1852 = vmatprep.subr.mxu0 %v1733
  %1853 = vmatpush1.msra.mxu0 %v1732
  %1854 = vmatprep.subr.mxu0 %v1735
  %1855 = vmatpush1.msra.mxu0 %v1734
  %1856 = vmatprep.subr.mxu0 %v1737
  %1857 = vmatpush1.msra.mxu0 %v1736
  %1858 = vmatprep.subr.mxu0 %v1739
  %1859 = vmatpush1.msra.mxu0 %v1738
  %1860 = vmatprep.subr.mxu0 %v1741
  %1861 = vmatpush1.msra.mxu0 %v1740
  %1862 = vmatprep.subr.mxu0 %v1743
  %1863 = vmatpush1.msra.mxu0 %v1742
  %1864 = vmatprep.subr.mxu0 %v1745
  %1865 = vmatpush1.msra.mxu0 %v1744
  %1866 = vmatprep.subr.mxu0 %v1747
  %1867 = vmatpush1.msra.mxu0 %v1746
  %1868 = vmatprep.subr.mxu0 %v1749
  %1869 = vmatpush1.msra.mxu0 %v1748
  %1870 = vmatprep.subr.mxu0 0.0
  %1871 = vmatpush1.msra.mxu0 0.0
  %1872 = vmatprep.subr.mxu0 0.0
  %1873 = vmatpush1.msra.mxu0 0.0
  %1874 = vmatprep.subr.mxu0 0.0
  %1875 = vmatpush1.msra.mxu0 0.0
  %1876 = vmatprep.subr.mxu0 0.0
  %1877 = vmatpush1.msra.mxu0 0.0
  %1878 = vmatprep.subr.mxu0 0.0
  %1879 = vmatpush1.msra.mxu0 0.0
  %1880 = vmatprep.subr.mxu0 0.0
  %1881 = vmatpush1.msra.mxu0 0.0
  %1882 = vmatprep.subr.mxu0 0.0
  %1883 = vmatpush1.msra.mxu0 0.0
  %1884 = vmatprep.subr.mxu0 0.0
  %1885 = vmatpush1.msra.mxu0 0.0
  %1886 = vmatprep.subr.mxu0 0.0
  %1887 = vmatpush1.msra.mxu0 0.0
  %1888 = vmatprep.subr.mxu0 0.0
  %1889 = vmatpush1.msra.mxu0 0.0
  %1890 = vmatprep.subr.mxu0 0.0
  %1891 = vmatpush1.msra.mxu0 0.0
  %1892 = vmatprep.subr.mxu0 0.0
  %1893 = vmatpush1.msra.mxu0 0.0
  %1894 = vmatprep.subr.mxu0 0.0
  %1895 = vmatpush1.msra.mxu0 0.0
  %1896 = vmatprep.subr.mxu0 0.0
  %1897 = vmatpush1.msra.mxu0 0.0
  %1898 = vmatprep.subr.mxu0 0.0
  %1899 = vmatpush1.msra.mxu0 0.0
  %1900 = vmatprep.subr.mxu0 0.0
  %1901 = vmatpush1.msra.mxu0 0.0
  %1902 = vmatprep.subr.mxu0 0.0
  %1903 = vmatpush1.msra.mxu0 0.0
  %1904 = vmatprep.subr.mxu0 0.0
  %1905 = vmatpush1.msra.mxu0 0.0
  %1906 = vmatprep.subr.mxu0 0.0
  %1907 = vmatpush1.msra.mxu0 0.0
  %1908 = vmatprep.subr.mxu0 0.0
  %1909 = vmatpush1.msra.mxu0 0.0
  %1910 = vmatprep.mubr.f32.mxu0 0.0
  %1911 = vmatmul.mubr.f32.gmra.mrb[0].mxu0 %v1751
  %v1912 = vpop.f32.mrb[0].mxu0
  %v1913 = vadd.f32 0.0, %v1912
  %v1914 = vpop.f32.mrb[0].mxu0
  %v1915 = vadd.f32 0.0, %v1914
  %1916 = vmatprep.mubr.f32.mxu0 0.0
  %1917 = vmatmul.mubr.f32.gmra.mrb[0].mxu0 %v1754
  %v1918 = vpop.f32.mrb[0].mxu0
  %v1919 = vadd.f32 0.0, %v1918
  %v1920 = vpop.f32.mrb[0].mxu0
  %v1921 = vadd.f32 0.0, %v1920
  %1922 = vmatprep.mubr.f32.mxu0 0.0
  %1923 = vmatmul.mubr.f32.gmra.mrb[0].mxu0 %v1757
  %v1924 = vpop.f32.mrb[0].mxu0
  %v1925 = vadd.f32 0.0, %v1924
  %v1926 = vpop.f32.mrb[0].mxu0
  %v1927 = vadd.f32 0.0, %v1926
  %1928 = vmatprep.mubr.f32.mxu0 0.0
  %1929 = vmatmul.mubr.f32.gmra.mrb[0].mxu0 %v1760
  %v1930 = vpop.f32.mrb[0].mxu0
  %v1931 = vadd.f32 0.0, %v1930
  %v1932 = vpop.f32.mrb[0].mxu0
  %v1933 = vadd.f32 0.0, %v1932
  %1934 = vmatprep.mubr.f32.mxu0 0.0
  %1935 = vmatmul.mubr.f32.gmra.mrb[0].mxu0 %v1763
  %v1936 = vpop.f32.mrb[0].mxu0
  %v1937 = vadd.f32 0.0, %v1936
  %v1938 = vpop.f32.mrb[0].mxu0
  %v1939 = vadd.f32 0.0, %v1938
  %1940 = vmatprep.mubr.f32.mxu0 0.0
  %1941 = vmatmul.mubr.f32.gmra.mrb[0].mxu0 %v1766
  %v1942 = vpop.f32.mrb[0].mxu0
  %v1943 = vadd.f32 0.0, %v1942
  %v1944 = vpop.f32.mrb[0].mxu0
  %v1945 = vadd.f32 0.0, %v1944
  %1946 = vmatprep.mubr.f32.mxu0 0.0
  %1947 = vmatmul.mubr.f32.gmra.mrb[0].mxu0 %v1769
  %v1948 = vpop.f32.mrb[0].mxu0
  %v1949 = vadd.f32 0.0, %v1948
  %v1950 = vpop.f32.mrb[0].mxu0
  %v1951 = vadd.f32 0.0, %v1950
  %1952 = vmatprep.mubr.f32.mxu0 0.0
  %1953 = vmatmul.mubr.f32.gmra.mrb[0].mxu0 %v1772
  %v1954 = vpop.f32.mrb[0].mxu0
  %v1955 = vadd.f32 0.0, %v1954
  %v1956 = vpop.f32.mrb[0].mxu0
  %v1957 = vadd.f32 0.0, %v1956
  %1958 = vmatprep.mubr.f32.mxu0 0.0
  %1959 = vmatmul.mubr.f32.gmra.mrb[0].mxu0 %v1775
  %v1960 = vpop.f32.mrb[0].mxu0
  %v1961 = vadd.f32 0.0, %v1960
  %v1962 = vpop.f32.mrb[0].mxu0
  %v1963 = vadd.f32 0.0, %v1962
  %1964 = vmatprep.mubr.f32.mxu0 0.0
  %1965 = vmatmul.mubr.f32.gmra.mrb[0].mxu0 %v1778
  %v1966 = vpop.f32.mrb[0].mxu0
  %v1967 = vadd.f32 0.0, %v1966
  %v1968 = vpop.f32.mrb[0].mxu0
  %v1969 = vadd.f32 0.0, %v1968
  %1970 = vmatprep.mubr.f32.mxu0 0.0
  %1971 = vmatmul.mubr.f32.gmra.mrb[0].mxu0 %v1781
  %v1972 = vpop.f32.mrb[0].mxu0
  %v1973 = vadd.f32 0.0, %v1972
  %v1974 = vpop.f32.mrb[0].mxu0
  %v1975 = vadd.f32 0.0, %v1974
  %1976 = vmatprep.mubr.f32.mxu0 0.0
  %1977 = vmatmul.mubr.f32.gmra.mrb[0].mxu0 %v1784
  %v1978 = vpop.f32.mrb[0].mxu0
  %v1979 = vadd.f32 0.0, %v1978
  %v1980 = vpop.f32.mrb[0].mxu0
  %v1981 = vadd.f32 0.0, %v1980
  %1982 = vmatprep.mubr.f32.mxu0 0.0
  %1983 = vmatmul.mubr.f32.gmra.mrb[0].mxu0 %v1787
  %v1984 = vpop.f32.mrb[0].mxu0
  %v1985 = vadd.f32 0.0, %v1984
  %v1986 = vpop.f32.mrb[0].mxu0
  %v1987 = vadd.f32 0.0, %v1986
  %1988 = vmatprep.mubr.f32.mxu0 0.0
  %1989 = vmatmul.mubr.f32.gmra.mrb[0].mxu0 %v1790
  %v1990 = vpop.f32.mrb[0].mxu0
  %v1991 = vadd.f32 0.0, %v1990
  %v1992 = vpop.f32.mrb[0].mxu0
  %v1993 = vadd.f32 0.0, %v1992
  %1994 = vmatprep.mubr.f32.mxu0 0.0
  %1995 = vmatmul.mubr.f32.gmra.mrb[0].mxu0 %v1793
  %v1996 = vpop.f32.mrb[0].mxu0
  %v1997 = vadd.f32 0.0, %v1996
  %v1998 = vpop.f32.mrb[0].mxu0
  %v1999 = vadd.f32 0.0, %v1998
  %2000 = vmatprep.mubr.f32.mxu0 0.0
  %2001 = vmatmul.mubr.f32.gmra.mrb[0].mxu0 %v1796
  %v2002 = vpop.f32.mrb[0].mxu0
  %v2003 = vadd.f32 0.0, %v2002
  %v2004 = vpop.f32.mrb[0].mxu0
  %v2005 = vadd.f32 0.0, %v2004
  %2006 = vmatprep.mubr.f32.mxu0 0.0
  %2007 = vmatmul.mubr.f32.gmra.mrb[0].mxu0 %v1799
  %v2008 = vpop.f32.mrb[0].mxu0
  %v2009 = vadd.f32 0.0, %v2008
  %v2010 = vpop.f32.mrb[0].mxu0
  %v2011 = vadd.f32 0.0, %v2010
  %2012 = vmatprep.mubr.f32.mxu0 0.0
  %2013 = vmatmul.mubr.f32.gmra.mrb[0].mxu0 %v1802
  %v2014 = vpop.f32.mrb[0].mxu0
  %v2015 = vadd.f32 0.0, %v2014
  %v2016 = vpop.f32.mrb[0].mxu0
  %v2017 = vadd.f32 0.0, %v2016
  %2018 = vmatprep.mubr.f32.mxu0 0.0
  %2019 = vmatmul.mubr.f32.gmra.mrb[0].mxu0 %v1805
  %v2020 = vpop.f32.mrb[0].mxu0
  %v2021 = vadd.f32 0.0, %v2020
  %v2022 = vpop.f32.mrb[0].mxu0
  %v2023 = vadd.f32 0.0, %v2022
  %2024 = vmatprep.mubr.f32.mxu0 0.0
  %2025 = vmatmul.mubr.f32.gmra.mrb[0].mxu0 %v1808
  %v2026 = vpop.f32.mrb[0].mxu0
  %v2027 = vadd.f32 0.0, %v2026
  %v2028 = vpop.f32.mrb[0].mxu0
  %v2029 = vadd.f32 0.0, %v2028
  %2030 = vmatprep.mubr.f32.mxu0 0.0
  %2031 = vmatmul.mubr.f32.gmra.mrb[0].mxu0 %v1811
  %v2032 = vpop.f32.mrb[0].mxu0
  %v2033 = vadd.f32 0.0, %v2032
  %v2034 = vpop.f32.mrb[0].mxu0
  %v2035 = vadd.f32 0.0, %v2034
  %2036 = vmatprep.mubr.f32.mxu0 0.0
  %2037 = vmatmul.mubr.f32.gmra.mrb[0].mxu0 %v1814
  %v2038 = vpop.f32.mrb[0].mxu0
  %v2039 = vadd.f32 0.0, %v2038
  %v2040 = vpop.f32.mrb[0].mxu0
  %v2041 = vadd.f32 0.0, %v2040
  %2042 = vmatprep.mubr.f32.mxu0 0.0
  %2043 = vmatmul.mubr.f32.gmra.mrb[0].mxu0 %v1817
  %v2044 = vpop.f32.mrb[0].mxu0
  %v2045 = vadd.f32 0.0, %v2044
  %v2046 = vpop.f32.mrb[0].mxu0
  %v2047 = vadd.f32 0.0, %v2046
  %2048 = vmatprep.mubr.f32.mxu0 0.0
  %2049 = vmatmul.mubr.f32.gmra.mrb[0].mxu0 %v1820
  %v2050 = vpop.f32.mrb[0].mxu0
  %v2051 = vadd.f32 0.0, %v2050
  %v2052 = vpop.f32.mrb[0].mxu0
  %v2053 = vadd.f32 0.0, %v2052
  %2054 = vmatprep.mubr.f32.mxu0 0.0
  %2055 = vmatmul.mubr.f32.gmra.mrb[0].mxu0 %v1823
  %v2056 = vpop.f32.mrb[0].mxu0
  %v2057 = vadd.f32 0.0, %v2056
  %v2058 = vpop.f32.mrb[0].mxu0
  %v2059 = vadd.f32 0.0, %v2058
  %2060 = vmatprep.mubr.f32.mxu0 0.0
  %2061 = vmatmul.mubr.f32.gmra.mrb[0].mxu0 %v1826
  %v2062 = vpop.f32.mrb[0].mxu0
  %v2063 = vadd.f32 0.0, %v2062
  %v2064 = vpop.f32.mrb[0].mxu0
  %v2065 = vadd.f32 0.0, %v2064
  %2066 = vmatprep.mubr.f32.mxu0 0.0
  %2067 = vmatmul.mubr.f32.gmra.mrb[0].mxu0 %v1829
  %v2068 = vpop.f32.mrb[0].mxu0
  %v2069 = vadd.f32 0.0, %v2068
  %v2070 = vpop.f32.mrb[0].mxu0
  %v2071 = vadd.f32 0.0, %v2070
  %2072 = vmatprep.mubr.f32.mxu0 0.0
  %2073 = vmatmul.mubr.f32.gmra.mrb[0].mxu0 %v1832
  %v2074 = vpop.f32.mrb[0].mxu0
  %v2075 = vadd.f32 0.0, %v2074
  %v2076 = vpop.f32.mrb[0].mxu0
  %v2077 = vadd.f32 0.0, %v2076
  %2078 = vmatprep.mubr.f32.mxu0 0.0
  %2079 = vmatmul.mubr.f32.gmra.mrb[0].mxu0 %v1835
  %v2080 = vpop.f32.mrb[0].mxu0
  %v2081 = vadd.f32 0.0, %v2080
  %v2082 = vpop.f32.mrb[0].mxu0
  %v2083 = vadd.f32 0.0, %v2082
  %2084 = vmatprep.mubr.f32.mxu0 0.0
  %2085 = vmatmul.mubr.f32.gmra.mrb[0].mxu0 %v1838
  %v2086 = vpop.f32.mrb[0].mxu0
  %v2087 = vadd.f32 0.0, %v2086
  %v2088 = vpop.f32.mrb[0].mxu0
  %v2089 = vadd.f32 0.0, %v2088
  %2090 = vmatprep.mubr.f32.mxu0 0.0
  %2091 = vmatmul.mubr.f32.gmra.mrb[0].mxu0 %v1841
  %v2092 = vpop.f32.mrb[0].mxu0
  %v2093 = vadd.f32 0.0, %v2092
  %v2094 = vpop.f32.mrb[0].mxu0
  %v2095 = vadd.f32 0.0, %v2094
  %2096 = vmatprep.mubr.f32.mxu0 0.0
  %2097 = vmatmul.mubr.f32.gmra.mrb[0].mxu0 %v1844
  %v2098 = vpop.f32.mrb[0].mxu0
  %v2099 = vadd.f32 0.0, %v2098
  %v2100 = vpop.f32.mrb[0].mxu0
  %v2101 = vadd.f32 0.0, %v2100
  %2102 = vdwg.mxu0
  %v2103 = vadd.f32 %v740, %v1913
  %v2104 = vadd.f32 %v742, %v1915
  %v2105 = vadd.f32 %v746, %v1919
  %v2106 = vadd.f32 %v748, %v1921
  %v2107 = vadd.f32 %v752, %v1925
  %v2108 = vadd.f32 %v754, %v1927
  %v2109 = vadd.f32 %v758, %v1931
  %v2110 = vadd.f32 %v760, %v1933
  %v2111 = vadd.f32 %v764, %v1937
  %v2112 = vadd.f32 %v766, %v1939
  %v2113 = vadd.f32 %v770, %v1943
  %v2114 = vadd.f32 %v772, %v1945
  %v2115 = vadd.f32 %v776, %v1949
  %v2116 = vadd.f32 %v778, %v1951
  %v2117 = vadd.f32 %v782, %v1955
  %v2118 = vadd.f32 %v784, %v1957
  %v2119 = vadd.f32 %v788, %v1961
  %v2120 = vadd.f32 %v790, %v1963
  %v2121 = vadd.f32 %v794, %v1967
  %v2122 = vadd.f32 %v796, %v1969
  %v2123 = vadd.f32 %v800, %v1973
  %v2124 = vadd.f32 %v802, %v1975
  %v2125 = vadd.f32 %v806, %v1979
  %v2126 = vadd.f32 %v808, %v1981
  %v2127 = vadd.f32 %v812, %v1985
  %v2128 = vadd.f32 %v814, %v1987
  %v2129 = vadd.f32 %v818, %v1991
  %v2130 = vadd.f32 %v820, %v1993
  %v2131 = vadd.f32 %v824, %v1997
  %v2132 = vadd.f32 %v826, %v1999
  %v2133 = vadd.f32 %v830, %v2003
  %v2134 = vadd.f32 %v832, %v2005
  %v2135 = vadd.f32 %v836, %v2009
  %v2136 = vadd.f32 %v838, %v2011
  %v2137 = vadd.f32 %v842, %v2015
  %v2138 = vadd.f32 %v844, %v2017
  %v2139 = vadd.f32 %v848, %v2021
  %v2140 = vadd.f32 %v850, %v2023
  %v2141 = vadd.f32 %v854, %v2027
  %v2142 = vadd.f32 %v856, %v2029
  %v2143 = vadd.f32 %v860, %v2033
  %v2144 = vadd.f32 %v862, %v2035
  %v2145 = vadd.f32 %v866, %v2039
  %v2146 = vadd.f32 %v868, %v2041
  %v2147 = vadd.f32 %v872, %v2045
  %v2148 = vadd.f32 %v874, %v2047
  %v2149 = vadd.f32 %v878, %v2051
  %v2150 = vadd.f32 %v880, %v2053
  %v2151 = vadd.f32 %v884, %v2057
  %v2152 = vadd.f32 %v886, %v2059
  %v2153 = vadd.f32 %v890, %v2063
  %v2154 = vadd.f32 %v892, %v2065
  %v2155 = vadd.f32 %v896, %v2069
  %v2156 = vadd.f32 %v898, %v2071
  %v2157 = vadd.f32 %v902, %v2075
  %v2158 = vadd.f32 %v904, %v2077
  %v2159 = vadd.f32 %v908, %v2081
  %v2160 = vadd.f32 %v910, %v2083
  %v2161 = vadd.f32 %v914, %v2087
  %v2162 = vadd.f32 %v916, %v2089
  %v2163 = vadd.f32 %v920, %v2093
  %v2164 = vadd.f32 %v922, %v2095
  %v2165 = vadd.f32 %v926, %v2099
  %v2166 = vadd.f32 %v928, %v2101
  %v2167 = vadd.f32 %v2103, %v1503
  %v2168 = vadd.f32 %v2104, %v1505
  %v2169 = vadd.f32 %v2105, %v1509
  %v2170 = vadd.f32 %v2106, %v1511
  %v2171 = vadd.f32 %v2107, %v1515
  %v2172 = vadd.f32 %v2108, %v1517
  %v2173 = vadd.f32 %v2109, %v1521
  %v2174 = vadd.f32 %v2110, %v1523
  %v2175 = vadd.f32 %v2111, %v1527
  %v2176 = vadd.f32 %v2112, %v1529
  %v2177 = vadd.f32 %v2113, %v1533
  %v2178 = vadd.f32 %v2114, %v1535
  %v2179 = vadd.f32 %v2115, %v1539
  %v2180 = vadd.f32 %v2116, %v1541
  %v2181 = vadd.f32 %v2117, %v1545
  %v2182 = vadd.f32 %v2118, %v1547
  %v2183 = vadd.f32 %v2119, %v1551
  %v2184 = vadd.f32 %v2120, %v1553
  %v2185 = vadd.f32 %v2121, %v1557
  %v2186 = vadd.f32 %v2122, %v1559
  %v2187 = vadd.f32 %v2123, %v1563
  %v2188 = vadd.f32 %v2124, %v1565
  %v2189 = vadd.f32 %v2125, %v1569
  %v2190 = vadd.f32 %v2126, %v1571
  %v2191 = vadd.f32 %v2127, %v1575
  %v2192 = vadd.f32 %v2128, %v1577
  %v2193 = vadd.f32 %v2129, %v1581
  %v2194 = vadd.f32 %v2130, %v1583
  %v2195 = vadd.f32 %v2131, %v1587
  %v2196 = vadd.f32 %v2132, %v1589
  %v2197 = vadd.f32 %v2133, %v1593
  %v2198 = vadd.f32 %v2134, %v1595
  %v2199 = vadd.f32 %v2135, %v1599
  %v2200 = vadd.f32 %v2136, %v1601
  %v2201 = vadd.f32 %v2137, %v1605
  %v2202 = vadd.f32 %v2138, %v1607
  %v2203 = vadd.f32 %v2139, %v1611
  %v2204 = vadd.f32 %v2140, %v1613
  %v2205 = vadd.f32 %v2141, %v1617
  %v2206 = vadd.f32 %v2142, %v1619
  %v2207 = vadd.f32 %v2143, %v1623
  %v2208 = vadd.f32 %v2144, %v1625
  %v2209 = vadd.f32 %v2145, %v1629
  %v2210 = vadd.f32 %v2146, %v1631
  %v2211 = vadd.f32 %v2147, %v1635
  %v2212 = vadd.f32 %v2148, %v1637
  %v2213 = vadd.f32 %v2149, %v1641
  %v2214 = vadd.f32 %v2150, %v1643
  %v2215 = vadd.f32 %v2151, %v1647
  %v2216 = vadd.f32 %v2152, %v1649
  %v2217 = vadd.f32 %v2153, %v1653
  %v2218 = vadd.f32 %v2154, %v1655
  %v2219 = vadd.f32 %v2155, %v1659
  %v2220 = vadd.f32 %v2156, %v1661
  %v2221 = vadd.f32 %v2157, %v1665
  %v2222 = vadd.f32 %v2158, %v1667
  %v2223 = vadd.f32 %v2159, %v1671
  %v2224 = vadd.f32 %v2160, %v1673
  %v2225 = vadd.f32 %v2161, %v1677
  %v2226 = vadd.f32 %v2162, %v1679
  %v2227 = vadd.f32 %v2163, %v1683
  %v2228 = vadd.f32 %v2164, %v1685
  %v2229 = vadd.f32 %v2165, %v1689
  %v2230 = vadd.f32 %v2166, %v1691
  %v2231 = vld [vmem:[%s2] sm:$0x3]
  %v2233 = vlaneseq
  %v2234 = vshrl.u32 %v2233, 7
  %v2235 = vsub.s32 0, %v2234
  %v2236 = vrot.slane %v2231, %v2235
  %v2237 = vlaneseq
  %v2238 = vshrl.u32 %v2237, 7
  %v2239 = vsub.s32 1, %v2238
  %v2240 = vrot.slane %v2231, %v2239
  %v2243 = vadd.f32 %v2167, %v2236
  %v2244 = vadd.f32 %v2168, %v2240
  %v2245 = vadd.f32 %v2169, %v2236
  %v2246 = vadd.f32 %v2170, %v2240
  %v2247 = vadd.f32 %v2171, %v2236
  %v2248 = vadd.f32 %v2172, %v2240
  %v2249 = vadd.f32 %v2173, %v2236
  %v2250 = vadd.f32 %v2174, %v2240
  %v2251 = vadd.f32 %v2175, %v2236
  %v2252 = vadd.f32 %v2176, %v2240
  %v2253 = vadd.f32 %v2177, %v2236
  %v2254 = vadd.f32 %v2178, %v2240
  %v2255 = vadd.f32 %v2179, %v2236
  %v2256 = vadd.f32 %v2180, %v2240
  %v2257 = vadd.f32 %v2181, %v2236
  %v2258 = vadd.f32 %v2182, %v2240
  %v2259 = vadd.f32 %v2183, %v2236
  %v2260 = vadd.f32 %v2184, %v2240
  %v2261 = vadd.f32 %v2185, %v2236
  %v2262 = vadd.f32 %v2186, %v2240
  %v2263 = vadd.f32 %v2187, %v2236
  %v2264 = vadd.f32 %v2188, %v2240
  %v2265 = vadd.f32 %v2189, %v2236
  %v2266 = vadd.f32 %v2190, %v2240
  %v2267 = vadd.f32 %v2191, %v2236
  %v2268 = vadd.f32 %v2192, %v2240
  %v2269 = vadd.f32 %v2193, %v2236
  %v2270 = vadd.f32 %v2194, %v2240
  %v2271 = vadd.f32 %v2195, %v2236
  %v2272 = vadd.f32 %v2196, %v2240
  %v2273 = vadd.f32 %v2197, %v2236
  %v2274 = vadd.f32 %v2198, %v2240
  %v2275 = vadd.f32 %v2199, %v2236
  %v2276 = vadd.f32 %v2200, %v2240
  %v2277 = vadd.f32 %v2201, %v2236
  %v2278 = vadd.f32 %v2202, %v2240
  %v2279 = vadd.f32 %v2203, %v2236
  %v2280 = vadd.f32 %v2204, %v2240
  %v2281 = vadd.f32 %v2205, %v2236
  %v2282 = vadd.f32 %v2206, %v2240
  %v2283 = vadd.f32 %v2207, %v2236
  %v2284 = vadd.f32 %v2208, %v2240
  %v2285 = vadd.f32 %v2209, %v2236
  %v2286 = vadd.f32 %v2210, %v2240
  %v2287 = vadd.f32 %v2211, %v2236
  %v2288 = vadd.f32 %v2212, %v2240
  %v2289 = vadd.f32 %v2213, %v2236
  %v2290 = vadd.f32 %v2214, %v2240
  %v2291 = vadd.f32 %v2215, %v2236
  %v2292 = vadd.f32 %v2216, %v2240
  %v2293 = vadd.f32 %v2217, %v2236
  %v2294 = vadd.f32 %v2218, %v2240
  %v2295 = vadd.f32 %v2219, %v2236
  %v2296 = vadd.f32 %v2220, %v2240
  %v2297 = vadd.f32 %v2221, %v2236
  %v2298 = vadd.f32 %v2222, %v2240
  %v2299 = vadd.f32 %v2223, %v2236
  %v2300 = vadd.f32 %v2224, %v2240
  %v2301 = vadd.f32 %v2225, %v2236
  %v2302 = vadd.f32 %v2226, %v2240
  %v2303 = vadd.f32 %v2227, %v2236
  %v2304 = vadd.f32 %v2228, %v2240
  %v2305 = vadd.f32 %v2229, %v2236
  %v2306 = vadd.f32 %v2230, %v2240
  %v2307 = vmax.f32 %v2243, 0.0
  %v2308 = vmax.f32 %v2244, 0.0
  %v2309 = vmax.f32 %v2245, 0.0
  %v2310 = vmax.f32 %v2246, 0.0
  %v2311 = vmax.f32 %v2247, 0.0
  %v2312 = vmax.f32 %v2248, 0.0
  %v2313 = vmax.f32 %v2249, 0.0
  %v2314 = vmax.f32 %v2250, 0.0
  %v2315 = vmax.f32 %v2251, 0.0
  %v2316 = vmax.f32 %v2252, 0.0
  %v2317 = vmax.f32 %v2253, 0.0
  %v2318 = vmax.f32 %v2254, 0.0
  %v2319 = vmax.f32 %v2255, 0.0
  %v2320 = vmax.f32 %v2256, 0.0
  %v2321 = vmax.f32 %v2257, 0.0
  %v2322 = vmax.f32 %v2258, 0.0
  %v2323 = vmax.f32 %v2259, 0.0
  %v2324 = vmax.f32 %v2260, 0.0
  %v2325 = vmax.f32 %v2261, 0.0
  %v2326 = vmax.f32 %v2262, 0.0
  %v2327 = vmax.f32 %v2263, 0.0
  %v2328 = vmax.f32 %v2264, 0.0
  %v2329 = vmax.f32 %v2265, 0.0
  %v2330 = vmax.f32 %v2266, 0.0
  %v2331 = vmax.f32 %v2267, 0.0
  %v2332 = vmax.f32 %v2268, 0.0
  %v2333 = vmax.f32 %v2269, 0.0
  %v2334 = vmax.f32 %v2270, 0.0
  %v2335 = vmax.f32 %v2271, 0.0
  %v2336 = vmax.f32 %v2272, 0.0
  %v2337 = vmax.f32 %v2273, 0.0
  %v2338 = vmax.f32 %v2274, 0.0
  %v2339 = vmax.f32 %v2275, 0.0
  %v2340 = vmax.f32 %v2276, 0.0
  %v2341 = vmax.f32 %v2277, 0.0
  %v2342 = vmax.f32 %v2278, 0.0
  %v2343 = vmax.f32 %v2279, 0.0
  %v2344 = vmax.f32 %v2280, 0.0
  %v2345 = vmax.f32 %v2281, 0.0
  %v2346 = vmax.f32 %v2282, 0.0
  %v2347 = vmax.f32 %v2283, 0.0
  %v2348 = vmax.f32 %v2284, 0.0
  %v2349 = vmax.f32 %v2285, 0.0
  %v2350 = vmax.f32 %v2286, 0.0
  %v2351 = vmax.f32 %v2287, 0.0
  %v2352 = vmax.f32 %v2288, 0.0
  %v2353 = vmax.f32 %v2289, 0.0
  %v2354 = vmax.f32 %v2290, 0.0
  %v2355 = vmax.f32 %v2291, 0.0
  %v2356 = vmax.f32 %v2292, 0.0
  %v2357 = vmax.f32 %v2293, 0.0
  %v2358 = vmax.f32 %v2294, 0.0
  %v2359 = vmax.f32 %v2295, 0.0
  %v2360 = vmax.f32 %v2296, 0.0
  %v2361 = vmax.f32 %v2297, 0.0
  %v2362 = vmax.f32 %v2298, 0.0
  %v2363 = vmax.f32 %v2299, 0.0
  %v2364 = vmax.f32 %v2300, 0.0
  %v2365 = vmax.f32 %v2301, 0.0
  %v2366 = vmax.f32 %v2302, 0.0
  %v2367 = vmax.f32 %v2303, 0.0
  %v2368 = vmax.f32 %v2304, 0.0
  %v2369 = vmax.f32 %v2305, 0.0
  %v2370 = vmax.f32 %v2306, 0.0
  %v2371 = vld [vmem:[%s3] sm:$0xff]
  %v2372 = vld [vmem:[%s3 + $0x8] sm:$0xff]
  %v2373 = vld [vmem:[%s3 + $0x10] sm:$0xff]
  %v2374 = vld [vmem:[%s3 + $0x18] sm:$0xff]
  %v2375 = vld [vmem:[%s3 + $0x20] sm:$0xff]
  %v2376 = vld [vmem:[%s3 + $0x28] sm:$0xff]
  %v2377 = vld [vmem:[%s3 + $0x30] sm:$0xff]
  %v2378 = vld [vmem:[%s3 + $0x38] sm:$0xff]
  %v2379 = vld [vmem:[%s3 + $0x40] sm:$0xff]
  %v2380 = vld [vmem:[%s3 + $0x48] sm:$0xff]
  %v2381 = vld [vmem:[%s3 + $0x50] sm:$0xff]
  %v2382 = vld [vmem:[%s3 + $0x58] sm:$0xff]
  %v2383 = vld [vmem:[%s3 + $0x60] sm:$0xff]
  %v2384 = vld [vmem:[%s3 + $0x68] sm:$0xff]
  %v2385 = vld [vmem:[%s3 + $0x70] sm:$0xff]
  %v2386 = vld [vmem:[%s3 + $0x78] sm:$0xff]
  %v2387 = vld [vmem:[%s3 + $0x80] sm:$0xff]
  %v2388 = vld [vmem:[%s3 + $0x88] sm:$0xff]
  %v2389 = vld [vmem:[%s3 + $0x90] sm:$0xff]
  %v2390 = vld [vmem:[%s3 + $0x98] sm:$0xff]
  %v2391 = vld [vmem:[%s3 + $0xa0] sm:$0xff]
  %v2392 = vld [vmem:[%s3 + $0xa8] sm:$0xff]
  %v2393 = vld [vmem:[%s3 + $0xb0] sm:$0xff]
  %v2394 = vld [vmem:[%s3 + $0xb8] sm:$0xff]
  %v2395 = vld [vmem:[%s3 + $0xc0] sm:$0xff]
  %v2396 = vld [vmem:[%s3 + $0xc8] sm:$0xff]
  %v2397 = vld [vmem:[%s3 + $0xd0] sm:$0xff]
  %v2398 = vld [vmem:[%s3 + $0xd8] sm:$0xff]
  %vm2399 = vcmask 1014784
  %v2401 = vsel %vm2399, %v2372, 0
  %v2404 = vsel %vm2399, %v2374, 0
  %v2407 = vsel %vm2399, %v2376, 0
  %v2410 = vsel %vm2399, %v2378, 0
  %v2413 = vsel %vm2399, %v2380, 0
  %v2416 = vsel %vm2399, %v2382, 0
  %v2419 = vsel %vm2399, %v2384, 0
  %v2422 = vsel %vm2399, %v2386, 0
  %v2425 = vsel %vm2399, %v2388, 0
  %v2428 = vsel %vm2399, %v2390, 0
  %v2431 = vsel %vm2399, %v2392, 0
  %v2434 = vsel %vm2399, %v2394, 0
  %v2437 = vsel %vm2399, %v2396, 0
  %v2440 = vsel %vm2399, %v2398, 0
  %vm2442 = vcmask 1043456
  %v2444 = vsel %vm2442, %v2369, 0
  %v2447 = vsel %vm2442, %v2370, 0
  %2449 = vmatprep.subr.mxu0 %v2308
  %2450 = vmatpush1.msra.mxu0 %v2307
  %2451 = vmatprep.subr.mxu0 %v2310
  %2452 = vmatpush1.msra.mxu0 %v2309
  %2453 = vmatprep.subr.mxu0 %v2312
  %2454 = vmatpush1.msra.mxu0 %v2311
  %2455 = vmatprep.subr.mxu0 %v2314
  %2456 = vmatpush1.msra.mxu0 %v2313
  %2457 = vmatprep.subr.mxu0 %v2316
  %2458 = vmatpush1.msra.mxu0 %v2315
  %2459 = vmatprep.subr.mxu0 %v2318
  %2460 = vmatpush1.msra.mxu0 %v2317
  %2461 = vmatprep.subr.mxu0 %v2320
  %2462 = vmatpush1.msra.mxu0 %v2319
  %2463 = vmatprep.subr.mxu0 %v2322
  %2464 = vmatpush1.msra.mxu0 %v2321
  %2465 = vmatprep.subr.mxu0 %v2324
  %2466 = vmatpush1.msra.mxu0 %v2323
  %2467 = vmatprep.subr.mxu0 %v2326
  %2468 = vmatpush1.msra.mxu0 %v2325
  %2469 = vmatprep.subr.mxu0 %v2328
  %2470 = vmatpush1.msra.mxu0 %v2327
  %2471 = vmatprep.subr.mxu0 %v2330
  %2472 = vmatpush1.msra.mxu0 %v2329
  %2473 = vmatprep.subr.mxu0 %v2332
  %2474 = vmatpush1.msra.mxu0 %v2331
  %2475 = vmatprep.subr.mxu0 %v2334
  %2476 = vmatpush1.msra.mxu0 %v2333
  %2477 = vmatprep.subr.mxu0 %v2336
  %2478 = vmatpush1.msra.mxu0 %v2335
  %2479 = vmatprep.subr.mxu0 %v2338
  %2480 = vmatpush1.msra.mxu0 %v2337
  %2481 = vmatprep.subr.mxu0 %v2340
  %2482 = vmatpush1.msra.mxu0 %v2339
  %2483 = vmatprep.subr.mxu0 %v2342
  %2484 = vmatpush1.msra.mxu0 %v2341
  %2485 = vmatprep.subr.mxu0 %v2344
  %2486 = vmatpush1.msra.mxu0 %v2343
  %2487 = vmatprep.subr.mxu0 %v2346
  %2488 = vmatpush1.msra.mxu0 %v2345
  %2489 = vmatprep.subr.mxu0 %v2348
  %2490 = vmatpush1.msra.mxu0 %v2347
  %2491 = vmatprep.subr.mxu0 %v2350
  %2492 = vmatpush1.msra.mxu0 %v2349
  %2493 = vmatprep.subr.mxu0 %v2352
  %2494 = vmatpush1.msra.mxu0 %v2351
  %2495 = vmatprep.subr.mxu0 %v2354
  %2496 = vmatpush1.msra.mxu0 %v2353
  %2497 = vmatprep.subr.mxu0 %v2356
  %2498 = vmatpush1.msra.mxu0 %v2355
  %2499 = vmatprep.subr.mxu0 %v2358
  %2500 = vmatpush1.msra.mxu0 %v2357
  %2501 = vmatprep.subr.mxu0 %v2360
  %2502 = vmatpush1.msra.mxu0 %v2359
  %2503 = vmatprep.subr.mxu0 %v2362
  %2504 = vmatpush1.msra.mxu0 %v2361
  %2505 = vmatprep.subr.mxu0 %v2364
  %2506 = vmatpush1.msra.mxu0 %v2363
  %2507 = vmatprep.subr.mxu0 %v2366
  %2508 = vmatpush1.msra.mxu0 %v2365
  %2509 = vmatprep.subr.mxu0 %v2368
  %2510 = vmatpush1.msra.mxu0 %v2367
  %2511 = vmatprep.subr.mxu0 %v2447
  %2512 = vmatpush1.msra.mxu0 %v2444
  %2513 = vmatprep.mubr.f32.mxu0 %v2401
  %2514 = vmatmul.mubr.f32.gmra.mrb[0].mxu0 %v2371
  %v2515 = vpop.f32.mrb[0].mxu0
  %v2516 = vadd.f32 0.0, %v2515
  %v2517 = vpop.f32.mrb[0].mxu0
  %v2518 = vadd.f32 0.0, %v2517
  %2519 = vmatprep.mubr.f32.mxu0 %v2404
  %2520 = vmatmul.mubr.f32.gmra.mrb[0].mxu0 %v2373
  %v2521 = vpop.f32.mrb[0].mxu0
  %v2522 = vadd.f32 0.0, %v2521
  %v2523 = vpop.f32.mrb[0].mxu0
  %v2524 = vadd.f32 0.0, %v2523
  %2525 = vmatprep.mubr.f32.mxu0 %v2407
  %2526 = vmatmul.mubr.f32.gmra.mrb[0].mxu0 %v2375
  %v2527 = vpop.f32.mrb[0].mxu0
  %v2528 = vadd.f32 0.0, %v2527
  %v2529 = vpop.f32.mrb[0].mxu0
  %v2530 = vadd.f32 0.0, %v2529
  %2531 = vmatprep.mubr.f32.mxu0 %v2410
  %2532 = vmatmul.mubr.f32.gmra.mrb[0].mxu0 %v2377
  %v2533 = vpop.f32.mrb[0].mxu0
  %v2534 = vadd.f32 0.0, %v2533
  %v2535 = vpop.f32.mrb[0].mxu0
  %v2536 = vadd.f32 0.0, %v2535
  %2537 = vmatprep.mubr.f32.mxu0 %v2413
  %2538 = vmatmul.mubr.f32.gmra.mrb[0].mxu0 %v2379
  %v2539 = vpop.f32.mrb[0].mxu0
  %v2540 = vadd.f32 0.0, %v2539
  %v2541 = vpop.f32.mrb[0].mxu0
  %v2542 = vadd.f32 0.0, %v2541
  %2543 = vmatprep.mubr.f32.mxu0 %v2416
  %2544 = vmatmul.mubr.f32.gmra.mrb[0].mxu0 %v2381
  %v2545 = vpop.f32.mrb[0].mxu0
  %v2546 = vadd.f32 0.0, %v2545
  %v2547 = vpop.f32.mrb[0].mxu0
  %v2548 = vadd.f32 0.0, %v2547
  %2549 = vmatprep.mubr.f32.mxu0 %v2419
  %2550 = vmatmul.mubr.f32.gmra.mrb[0].mxu0 %v2383
  %v2551 = vpop.f32.mrb[0].mxu0
  %v2552 = vadd.f32 0.0, %v2551
  %v2553 = vpop.f32.mrb[0].mxu0
  %v2554 = vadd.f32 0.0, %v2553
  %2555 = vmatprep.mubr.f32.mxu0 %v2422
  %2556 = vmatmul.mubr.f32.gmra.mrb[0].mxu0 %v2385
  %v2557 = vpop.f32.mrb[0].mxu0
  %v2558 = vadd.f32 0.0, %v2557
  %v2559 = vpop.f32.mrb[0].mxu0
  %v2560 = vadd.f32 0.0, %v2559
  %2561 = vmatprep.mubr.f32.mxu0 %v2425
  %2562 = vmatmul.mubr.f32.gmra.mrb[0].mxu0 %v2387
  %v2563 = vpop.f32.mrb[0].mxu0
  %v2564 = vadd.f32 0.0, %v2563
  %v2565 = vpop.f32.mrb[0].mxu0
  %v2566 = vadd.f32 0.0, %v2565
  %2567 = vmatprep.mubr.f32.mxu0 %v2428
  %2568 = vmatmul.mubr.f32.gmra.mrb[0].mxu0 %v2389
  %v2569 = vpop.f32.mrb[0].mxu0
  %v2570 = vadd.f32 0.0, %v2569
  %v2571 = vpop.f32.mrb[0].mxu0
  %v2572 = vadd.f32 0.0, %v2571
  %2573 = vmatprep.mubr.f32.mxu0 %v2431
  %2574 = vmatmul.mubr.f32.gmra.mrb[0].mxu0 %v2391
  %v2575 = vpop.f32.mrb[0].mxu0
  %v2576 = vadd.f32 0.0, %v2575
  %v2577 = vpop.f32.mrb[0].mxu0
  %v2578 = vadd.f32 0.0, %v2577
  %2579 = vmatprep.mubr.f32.mxu0 %v2434
  %2580 = vmatmul.mubr.f32.gmra.mrb[0].mxu0 %v2393
  %v2581 = vpop.f32.mrb[0].mxu0
  %v2582 = vadd.f32 0.0, %v2581
  %v2583 = vpop.f32.mrb[0].mxu0
  %v2584 = vadd.f32 0.0, %v2583
  %2585 = vmatprep.mubr.f32.mxu0 %v2437
  %2586 = vmatmul.mubr.f32.gmra.mrb[0].mxu0 %v2395
  %v2587 = vpop.f32.mrb[0].mxu0
  %v2588 = vadd.f32 0.0, %v2587
  %v2589 = vpop.f32.mrb[0].mxu0
  %v2590 = vadd.f32 0.0, %v2589
  %2591 = vmatprep.mubr.f32.mxu0 %v2440
  %2592 = vmatmul.mubr.f32.gmra.mrb[0].mxu0 %v2397
  %v2593 = vpop.f32.mrb[0].mxu0
  %v2594 = vadd.f32 0.0, %v2593
  %v2595 = vpop.f32.mrb[0].mxu0
  %v2596 = vadd.f32 0.0, %v2595
  %2597 = vdwg.mxu0
  %s2598 = scalar_lea.vmem %s3, 224
  %v2599 = vld [vmem:[%s2598] sm:$0xff]
  %v2600 = vld [vmem:[%s2598 + $0x8] sm:$0xff]
  %v2601 = vld [vmem:[%s2598 + $0x10] sm:$0xff]
  %v2602 = vld [vmem:[%s2598 + $0x18] sm:$0xff]
  %v2603 = vld [vmem:[%s2598 + $0x20] sm:$0xff]
  %v2604 = vld [vmem:[%s2598 + $0x28] sm:$0xff]
  %v2605 = vld [vmem:[%s2598 + $0x30] sm:$0xff]
  %v2606 = vld [vmem:[%s2598 + $0x38] sm:$0xff]
  %v2607 = vld [vmem:[%s2598 + $0x40] sm:$0xff]
  %v2608 = vld [vmem:[%s2598 + $0x48] sm:$0xff]
  %v2609 = vld [vmem:[%s2598 + $0x50] sm:$0xff]
  %v2610 = vld [vmem:[%s2598 + $0x58] sm:$0xff]
  %v2611 = vld [vmem:[%s2598 + $0x60] sm:$0xff]
  %v2612 = vld [vmem:[%s2598 + $0x68] sm:$0xff]
  %v2613 = vld [vmem:[%s2598 + $0x70] sm:$0xff]
  %v2614 = vld [vmem:[%s2598 + $0x78] sm:$0xff]
  %v2615 = vld [vmem:[%s2598 + $0x80] sm:$0xff]
  %v2616 = vld [vmem:[%s2598 + $0x88] sm:$0xff]
  %v2617 = vld [vmem:[%s2598 + $0x90] sm:$0xff]
  %v2618 = vld [vmem:[%s2598 + $0x98] sm:$0xff]
  %v2619 = vld [vmem:[%s2598 + $0xa0] sm:$0xff]
  %v2620 = vld [vmem:[%s2598 + $0xa8] sm:$0xff]
  %v2621 = vld [vmem:[%s2598 + $0xb0] sm:$0xff]
  %v2622 = vld [vmem:[%s2598 + $0xb8] sm:$0xff]
  %v2623 = vld [vmem:[%s2598 + $0xc0] sm:$0xff]
  %v2624 = vld [vmem:[%s2598 + $0xc8] sm:$0xff]
  %v2625 = vld [vmem:[%s2598 + $0xd0] sm:$0xff]
  %v2626 = vld [vmem:[%s2598 + $0xd8] sm:$0xff]
  %v2628 = vsel %vm2399, %v2600, 0
  %v2631 = vsel %vm2399, %v2602, 0
  %v2634 = vsel %vm2399, %v2604, 0
  %v2637 = vsel %vm2399, %v2606, 0
  %v2640 = vsel %vm2399, %v2608, 0
  %v2643 = vsel %vm2399, %v2610, 0
  %v2646 = vsel %vm2399, %v2612, 0
  %v2649 = vsel %vm2399, %v2614, 0
  %v2652 = vsel %vm2399, %v2616, 0
  %v2655 = vsel %vm2399, %v2618, 0
  %v2658 = vsel %vm2399, %v2620, 0
  %v2661 = vsel %vm2399, %v2622, 0
  %v2664 = vsel %vm2399, %v2624, 0
  %v2667 = vsel %vm2399, %v2626, 0
  %2669 = vmatprep.subr.mxu0 %v2308
  %2670 = vmatpush1.msra.mxu0 %v2307
  %2671 = vmatprep.subr.mxu0 %v2310
  %2672 = vmatpush1.msra.mxu0 %v2309
  %2673 = vmatprep.subr.mxu0 %v2312
  %2674 = vmatpush1.msra.mxu0 %v2311
  %2675 = vmatprep.subr.mxu0 %v2314
  %2676 = vmatpush1.msra.mxu0 %v2313
  %2677 = vmatprep.subr.mxu0 %v2316
  %2678 = vmatpush1.msra.mxu0 %v2315
  %2679 = vmatprep.subr.mxu0 %v2318
  %2680 = vmatpush1.msra.mxu0 %v2317
  %2681 = vmatprep.subr.mxu0 %v2320
  %2682 = vmatpush1.msra.mxu0 %v2319
  %2683 = vmatprep.subr.mxu0 %v2322
  %2684 = vmatpush1.msra.mxu0 %v2321
  %2685 = vmatprep.subr.mxu0 %v2324
  %2686 = vmatpush1.msra.mxu0 %v2323
  %2687 = vmatprep.subr.mxu0 %v2326
  %2688 = vmatpush1.msra.mxu0 %v2325
  %2689 = vmatprep.subr.mxu0 %v2328
  %2690 = vmatpush1.msra.mxu0 %v2327
  %2691 = vmatprep.subr.mxu0 %v2330
  %2692 = vmatpush1.msra.mxu0 %v2329
  %2693 = vmatprep.subr.mxu0 %v2332
  %2694 = vmatpush1.msra.mxu0 %v2331
  %2695 = vmatprep.subr.mxu0 %v2334
  %2696 = vmatpush1.msra.mxu0 %v2333
  %2697 = vmatprep.subr.mxu0 %v2336
  %2698 = vmatpush1.msra.mxu0 %v2335
  %2699 = vmatprep.subr.mxu0 %v2338
  %2700 = vmatpush1.msra.mxu0 %v2337
  %2701 = vmatprep.subr.mxu0 %v2340
  %2702 = vmatpush1.msra.mxu0 %v2339
  %2703 = vmatprep.subr.mxu0 %v2342
  %2704 = vmatpush1.msra.mxu0 %v2341
  %2705 = vmatprep.subr.mxu0 %v2344
  %2706 = vmatpush1.msra.mxu0 %v2343
  %2707 = vmatprep.subr.mxu0 %v2346
  %2708 = vmatpush1.msra.mxu0 %v2345
  %2709 = vmatprep.subr.mxu0 %v2348
  %2710 = vmatpush1.msra.mxu0 %v2347
  %2711 = vmatprep.subr.mxu0 %v2350
  %2712 = vmatpush1.msra.mxu0 %v2349
  %2713 = vmatprep.subr.mxu0 %v2352
  %2714 = vmatpush1.msra.mxu0 %v2351
  %2715 = vmatprep.subr.mxu0 %v2354
  %2716 = vmatpush1.msra.mxu0 %v2353
  %2717 = vmatprep.subr.mxu0 %v2356
  %2718 = vmatpush1.msra.mxu0 %v2355
  %2719 = vmatprep.subr.mxu0 %v2358
  %2720 = vmatpush1.msra.mxu0 %v2357
  %2721 = vmatprep.subr.mxu0 %v2360
  %2722 = vmatpush1.msra.mxu0 %v2359
  %2723 = vmatprep.subr.mxu0 %v2362
  %2724 = vmatpush1.msra.mxu0 %v2361
  %2725 = vmatprep.subr.mxu0 %v2364
  %2726 = vmatpush1.msra.mxu0 %v2363
  %2727 = vmatprep.subr.mxu0 %v2366
  %2728 = vmatpush1.msra.mxu0 %v2365
  %2729 = vmatprep.subr.mxu0 %v2368
  %2730 = vmatpush1.msra.mxu0 %v2367
  %2731 = vmatprep.subr.mxu0 %v2447
  %2732 = vmatpush1.msra.mxu0 %v2444
  %2733 = vmatprep.mubr.f32.mxu0 %v2628
  %2734 = vmatmul.mubr.f32.gmra.mrb[0].mxu0 %v2599
  %v2735 = vpop.f32.mrb[0].mxu0
  %v2736 = vadd.f32 0.0, %v2735
  %v2737 = vpop.f32.mrb[0].mxu0
  %v2738 = vadd.f32 0.0, %v2737
  %2739 = vmatprep.mubr.f32.mxu0 %v2631
  %2740 = vmatmul.mubr.f32.gmra.mrb[0].mxu0 %v2601
  %v2741 = vpop.f32.mrb[0].mxu0
  %v2742 = vadd.f32 0.0, %v2741
  %v2743 = vpop.f32.mrb[0].mxu0
  %v2744 = vadd.f32 0.0, %v2743
  %2745 = vmatprep.mubr.f32.mxu0 %v2634
  %2746 = vmatmul.mubr.f32.gmra.mrb[0].mxu0 %v2603
  %v2747 = vpop.f32.mrb[0].mxu0
  %v2748 = vadd.f32 0.0, %v2747
  %v2749 = vpop.f32.mrb[0].mxu0
  %v2750 = vadd.f32 0.0, %v2749
  %2751 = vmatprep.mubr.f32.mxu0 %v2637
  %2752 = vmatmul.mubr.f32.gmra.mrb[0].mxu0 %v2605
  %v2753 = vpop.f32.mrb[0].mxu0
  %v2754 = vadd.f32 0.0, %v2753
  %v2755 = vpop.f32.mrb[0].mxu0
  %v2756 = vadd.f32 0.0, %v2755
  %2757 = vmatprep.mubr.f32.mxu0 %v2640
  %2758 = vmatmul.mubr.f32.gmra.mrb[0].mxu0 %v2607
  %v2759 = vpop.f32.mrb[0].mxu0
  %v2760 = vadd.f32 0.0, %v2759
  %v2761 = vpop.f32.mrb[0].mxu0
  %v2762 = vadd.f32 0.0, %v2761
  %2763 = vmatprep.mubr.f32.mxu0 %v2643
  %2764 = vmatmul.mubr.f32.gmra.mrb[0].mxu0 %v2609
  %v2765 = vpop.f32.mrb[0].mxu0
  %v2766 = vadd.f32 0.0, %v2765
  %v2767 = vpop.f32.mrb[0].mxu0
  %v2768 = vadd.f32 0.0, %v2767
  %2769 = vmatprep.mubr.f32.mxu0 %v2646
  %2770 = vmatmul.mubr.f32.gmra.mrb[0].mxu0 %v2611
  %v2771 = vpop.f32.mrb[0].mxu0
  %v2772 = vadd.f32 0.0, %v2771
  %v2773 = vpop.f32.mrb[0].mxu0
  %v2774 = vadd.f32 0.0, %v2773
  %2775 = vmatprep.mubr.f32.mxu0 %v2649
  %2776 = vmatmul.mubr.f32.gmra.mrb[0].mxu0 %v2613
  %v2777 = vpop.f32.mrb[0].mxu0
  %v2778 = vadd.f32 0.0, %v2777
  %v2779 = vpop.f32.mrb[0].mxu0
  %v2780 = vadd.f32 0.0, %v2779
  %2781 = vmatprep.mubr.f32.mxu0 %v2652
  %2782 = vmatmul.mubr.f32.gmra.mrb[0].mxu0 %v2615
  %v2783 = vpop.f32.mrb[0].mxu0
  %v2784 = vadd.f32 0.0, %v2783
  %v2785 = vpop.f32.mrb[0].mxu0
  %v2786 = vadd.f32 0.0, %v2785
  %2787 = vmatprep.mubr.f32.mxu0 %v2655
  %2788 = vmatmul.mubr.f32.gmra.mrb[0].mxu0 %v2617
  %v2789 = vpop.f32.mrb[0].mxu0
  %v2790 = vadd.f32 0.0, %v2789
  %v2791 = vpop.f32.mrb[0].mxu0
  %v2792 = vadd.f32 0.0, %v2791
  %2793 = vmatprep.mubr.f32.mxu0 %v2658
  %2794 = vmatmul.mubr.f32.gmra.mrb[0].mxu0 %v2619
  %v2795 = vpop.f32.mrb[0].mxu0
  %v2796 = vadd.f32 0.0, %v2795
  %v2797 = vpop.f32.mrb[0].mxu0
  %v2798 = vadd.f32 0.0, %v2797
  %2799 = vmatprep.mubr.f32.mxu0 %v2661
  %2800 = vmatmul.mubr.f32.gmra.mrb[0].mxu0 %v2621
  %v2801 = vpop.f32.mrb[0].mxu0
  %v2802 = vadd.f32 0.0, %v2801
  %v2803 = vpop.f32.mrb[0].mxu0
  %v2804 = vadd.f32 0.0, %v2803
  %2805 = vmatprep.mubr.f32.mxu0 %v2664
  %2806 = vmatmul.mubr.f32.gmra.mrb[0].mxu0 %v2623
  %v2807 = vpop.f32.mrb[0].mxu0
  %v2808 = vadd.f32 0.0, %v2807
  %v2809 = vpop.f32.mrb[0].mxu0
  %v2810 = vadd.f32 0.0, %v2809
  %2811 = vmatprep.mubr.f32.mxu0 %v2667
  %2812 = vmatmul.mubr.f32.gmra.mrb[0].mxu0 %v2625
  %v2813 = vpop.f32.mrb[0].mxu0
  %v2814 = vadd.f32 0.0, %v2813
  %v2815 = vpop.f32.mrb[0].mxu0
  %v2816 = vadd.f32 0.0, %v2815
  %2817 = vdwg.mxu0
  %v2818 = vmax.f32 %v2516, %v2736
  %v2819 = vmax.f32 %v2518, %v2738
  %v2820 = vmax.f32 %v2522, %v2742
  %v2821 = vmax.f32 %v2524, %v2744
  %v2822 = vmax.f32 %v2528, %v2748
  %v2823 = vmax.f32 %v2530, %v2750
  %v2824 = vmax.f32 %v2534, %v2754
  %v2825 = vmax.f32 %v2536, %v2756
  %v2826 = vmax.f32 %v2540, %v2760
  %v2827 = vmax.f32 %v2542, %v2762
  %v2828 = vmax.f32 %v2546, %v2766
  %v2829 = vmax.f32 %v2548, %v2768
  %v2830 = vmax.f32 %v2552, %v2772
  %v2831 = vmax.f32 %v2554, %v2774
  %v2832 = vmax.f32 %v2558, %v2778
  %v2833 = vmax.f32 %v2560, %v2780
  %v2834 = vmax.f32 %v2564, %v2784
  %v2835 = vmax.f32 %v2566, %v2786
  %v2836 = vmax.f32 %v2570, %v2790
  %v2837 = vmax.f32 %v2572, %v2792
  %v2838 = vmax.f32 %v2576, %v2796
  %v2839 = vmax.f32 %v2578, %v2798
  %v2840 = vmax.f32 %v2582, %v2802
  %v2841 = vmax.f32 %v2584, %v2804
  %v2842 = vmax.f32 %v2588, %v2808
  %v2843 = vmax.f32 %v2590, %v2810
  %v2844 = vmax.f32 %v2594, %v2814
  %v2845 = vmax.f32 %v2596, %v2816
  %v2846 = vld [vmem:[%s4] sm:$0xff]
  %v2847 = vld [vmem:[%s4 + $0x8] sm:$0xff]
  %v2848 = vld [vmem:[%s4 + $0x10] sm:$0xff]
  %v2849 = vld [vmem:[%s4 + $0x18] sm:$0xff]
  %v2850 = vld [vmem:[%s4 + $0x20] sm:$0xff]
  %v2851 = vld [vmem:[%s4 + $0x28] sm:$0xff]
  %v2852 = vld [vmem:[%s4 + $0x30] sm:$0xff]
  %v2853 = vld [vmem:[%s4 + $0x38] sm:$0xff]
  %v2854 = vld [vmem:[%s4 + $0x40] sm:$0xff]
  %v2855 = vld [vmem:[%s4 + $0x48] sm:$0xff]
  %v2856 = vld [vmem:[%s4 + $0x50] sm:$0xff]
  %v2857 = vld [vmem:[%s4 + $0x58] sm:$0xff]
  %v2858 = vld [vmem:[%s4 + $0x60] sm:$0xff]
  %v2859 = vld [vmem:[%s4 + $0x68] sm:$0xff]
  %v2860 = vld [vmem:[%s4 + $0x70] sm:$0xff]
  %v2861 = vld [vmem:[%s4 + $0x78] sm:$0xff]
  %v2862 = vld [vmem:[%s4 + $0x80] sm:$0xff]
  %v2863 = vld [vmem:[%s4 + $0x88] sm:$0xff]
  %v2864 = vld [vmem:[%s4 + $0x90] sm:$0xff]
  %v2865 = vld [vmem:[%s4 + $0x98] sm:$0xff]
  %v2866 = vld [vmem:[%s4 + $0xa0] sm:$0xff]
  %vm2867 = vcmask 326656
  %v2869 = vsel %vm2867, %v2819, 0
  %v2872 = vsel %vm2867, %v2821, 0
  %v2875 = vsel %vm2867, %v2823, 0
  %v2878 = vsel %vm2867, %v2825, 0
  %v2881 = vsel %vm2867, %v2827, 0
  %v2884 = vsel %vm2867, %v2829, 0
  %v2887 = vsel %vm2867, %v2831, 0
  %v2890 = vsel %vm2867, %v2833, 0
  %v2893 = vsel %vm2867, %v2835, 0
  %v2896 = vsel %vm2867, %v2837, 0
  %v2899 = vsel %vm2867, %v2839, 0
  %v2902 = vsel %vm2867, %v2841, 0
  %v2905 = vsel %vm2867, %v2843, 0
  %v2908 = vsel %vm2867, %v2845, 0
  %2910 = vmatprep.subr.mxu0 0.0
  %2911 = vmatpush1.msra.mxu0 %v2846
  %2912 = vmatprep.subr.mxu0 0.0
  %2913 = vmatpush1.msra.mxu0 %v2847
  %2914 = vmatprep.subr.mxu0 0.0
  %2915 = vmatpush1.msra.mxu0 %v2848
  %2916 = vmatprep.subr.mxu0 0.0
  %2917 = vmatpush1.msra.mxu0 %v2849
  %2918 = vmatprep.subr.mxu0 0.0
  %2919 = vmatpush1.msra.mxu0 %v2850
  %2920 = vmatprep.subr.mxu0 0.0
  %2921 = vmatpush1.msra.mxu0 %v2851
  %2922 = vmatprep.subr.mxu0 0.0
  %2923 = vmatpush1.msra.mxu0 %v2852
  %2924 = vmatprep.subr.mxu0 0.0
  %2925 = vmatpush1.msra.mxu0 %v2853
  %2926 = vmatprep.subr.mxu0 0.0
  %2927 = vmatpush1.msra.mxu0 %v2854
  %2928 = vmatprep.subr.mxu0 0.0
  %2929 = vmatpush1.msra.mxu0 %v2855
  %2930 = vmatprep.subr.mxu0 0.0
  %2931 = vmatpush1.msra.mxu0 %v2856
  %2932 = vmatprep.subr.mxu0 0.0
  %2933 = vmatpush1.msra.mxu0 %v2857
  %2934 = vmatprep.subr.mxu0 0.0
  %2935 = vmatpush1.msra.mxu0 %v2858
  %2936 = vmatprep.subr.mxu0 0.0
  %2937 = vmatpush1.msra.mxu0 %v2859
  %2938 = vmatprep.subr.mxu0 0.0
  %2939 = vmatpush1.msra.mxu0 %v2860
  %2940 = vmatprep.subr.mxu0 0.0
  %2941 = vmatpush1.msra.mxu0 %v2861
  %2942 = vmatprep.subr.mxu0 0.0
  %2943 = vmatpush1.msra.mxu0 %v2862
  %2944 = vmatprep.subr.mxu0 0.0
  %2945 = vmatpush1.msra.mxu0 %v2863
  %2946 = vmatprep.subr.mxu0 0.0
  %2947 = vmatpush1.msra.mxu0 %v2864
  %2948 = vmatprep.subr.mxu0 0.0
  %2949 = vmatpush1.msra.mxu0 %v2865
  %2950 = vmatprep.subr.mxu0 0.0
  %2951 = vmatpush1.msra.mxu0 %v2866
  %2952 = vmatprep.subr.mxu0 0.0
  %2953 = vmatpush1.msra.mxu0 0.0
  %2954 = vmatprep.subr.mxu0 0.0
  %2955 = vmatpush1.msra.mxu0 0.0
  %2956 = vmatprep.subr.mxu0 0.0
  %2957 = vmatpush1.msra.mxu0 0.0
  %2958 = vmatprep.subr.mxu0 0.0
  %2959 = vmatpush1.msra.mxu0 0.0
  %2960 = vmatprep.subr.mxu0 0.0
  %2961 = vmatpush1.msra.mxu0 0.0
  %2962 = vmatprep.subr.mxu0 0.0
  %2963 = vmatpush1.msra.mxu0 0.0
  %2964 = vmatprep.subr.mxu0 0.0
  %2965 = vmatpush1.msra.mxu0 0.0
  %2966 = vmatprep.subr.mxu0 0.0
  %2967 = vmatpush1.msra.mxu0 0.0
  %2968 = vmatprep.subr.mxu0 0.0
  %2969 = vmatpush1.msra.mxu0 0.0
  %2970 = vmatprep.subr.mxu0 0.0
  %2971 = vmatpush1.msra.mxu0 0.0
  %2972 = vmatprep.subr.mxu0 0.0
  %2973 = vmatpush1.msra.mxu0 0.0
  %2974 = vmatprep.mubr.f32.mxu0 %v2869
  %2975 = vmatmul.mubr.f32.gmra.mrb[0].mxu0 %v2818
  %v2976 = vpop.f32.mrb[0].mxu0
  %v2977 = vadd.f32 0.0, %v2976
  %v2978 = vpop.f32.mrb[0].mxu0
  %2979 = vmatprep.mubr.f32.mxu0 %v2872
  %2980 = vmatmul.mubr.f32.gmra.mrb[0].mxu0 %v2820
  %v2981 = vpop.f32.mrb[0].mxu0
  %v2982 = vadd.f32 0.0, %v2981
  %v2983 = vpop.f32.mrb[0].mxu0
  %2984 = vmatprep.mubr.f32.mxu0 %v2875
  %2985 = vmatmul.mubr.f32.gmra.mrb[0].mxu0 %v2822
  %v2986 = vpop.f32.mrb[0].mxu0
  %v2987 = vadd.f32 0.0, %v2986
  %v2988 = vpop.f32.mrb[0].mxu0
  %2989 = vmatprep.mubr.f32.mxu0 %v2878
  %2990 = vmatmul.mubr.f32.gmra.mrb[0].mxu0 %v2824
  %v2991 = vpop.f32.mrb[0].mxu0
  %v2992 = vadd.f32 0.0, %v2991
  %v2993 = vpop.f32.mrb[0].mxu0
  %2994 = vmatprep.mubr.f32.mxu0 %v2881
  %2995 = vmatmul.mubr.f32.gmra.mrb[0].mxu0 %v2826
  %v2996 = vpop.f32.mrb[0].mxu0
  %v2997 = vadd.f32 0.0, %v2996
  %v2998 = vpop.f32.mrb[0].mxu0
  %2999 = vmatprep.mubr.f32.mxu0 %v2884
  %3000 = vmatmul.mubr.f32.gmra.mrb[0].mxu0 %v2828
  %v3001 = vpop.f32.mrb[0].mxu0
  %v3002 = vadd.f32 0.0, %v3001
  %v3003 = vpop.f32.mrb[0].mxu0
  %3004 = vmatprep.mubr.f32.mxu0 %v2887
  %3005 = vmatmul.mubr.f32.gmra.mrb[0].mxu0 %v2830
  %v3006 = vpop.f32.mrb[0].mxu0
  %v3007 = vadd.f32 0.0, %v3006
  %v3008 = vpop.f32.mrb[0].mxu0
  %3009 = vmatprep.mubr.f32.mxu0 %v2890
  %3010 = vmatmul.mubr.f32.gmra.mrb[0].mxu0 %v2832
  %v3011 = vpop.f32.mrb[0].mxu0
  %v3012 = vadd.f32 0.0, %v3011
  %v3013 = vpop.f32.mrb[0].mxu0
  %3014 = vmatprep.mubr.f32.mxu0 %v2893
  %3015 = vmatmul.mubr.f32.gmra.mrb[0].mxu0 %v2834
  %v3016 = vpop.f32.mrb[0].mxu0
  %v3017 = vadd.f32 0.0, %v3016
  %v3018 = vpop.f32.mrb[0].mxu0
  %3019 = vmatprep.mubr.f32.mxu0 %v2896
  %3020 = vmatmul.mubr.f32.gmra.mrb[0].mxu0 %v2836
  %v3021 = vpop.f32.mrb[0].mxu0
  %v3022 = vadd.f32 0.0, %v3021
  %v3023 = vpop.f32.mrb[0].mxu0
  %3024 = vmatprep.mubr.f32.mxu0 %v2899
  %3025 = vmatmul.mubr.f32.gmra.mrb[0].mxu0 %v2838
  %v3026 = vpop.f32.mrb[0].mxu0
  %v3027 = vadd.f32 0.0, %v3026
  %v3028 = vpop.f32.mrb[0].mxu0
  %3029 = vmatprep.mubr.f32.mxu0 %v2902
  %3030 = vmatmul.mubr.f32.gmra.mrb[0].mxu0 %v2840
  %v3031 = vpop.f32.mrb[0].mxu0
  %v3032 = vadd.f32 0.0, %v3031
  %v3033 = vpop.f32.mrb[0].mxu0
  %3034 = vmatprep.mubr.f32.mxu0 %v2905
  %3035 = vmatmul.mubr.f32.gmra.mrb[0].mxu0 %v2842
  %v3036 = vpop.f32.mrb[0].mxu0
  %v3037 = vadd.f32 0.0, %v3036
  %v3038 = vpop.f32.mrb[0].mxu0
  %3039 = vmatprep.mubr.f32.mxu0 %v2908
  %3040 = vmatmul.mubr.f32.gmra.mrb[0].mxu0 %v2844
  %v3041 = vpop.f32.mrb[0].mxu0
  %v3042 = vadd.f32 0.0, %v3041
  %v3043 = vpop.f32.mrb[0].mxu0
  %3044 = vdwg.mxu0
  %s3045 = scalar_lea.vmem %s4, 168
  %v3046 = vld [vmem:[%s3045] sm:$0xff]
  %v3047 = vld [vmem:[%s3045 + $0x8] sm:$0xff]
  %v3048 = vld [vmem:[%s3045 + $0x10] sm:$0xff]
  %v3049 = vld [vmem:[%s3045 + $0x18] sm:$0xff]
  %v3050 = vld [vmem:[%s3045 + $0x20] sm:$0xff]
  %v3051 = vld [vmem:[%s3045 + $0x28] sm:$0xff]
  %v3052 = vld [vmem:[%s3045 + $0x30] sm:$0xff]
  %v3053 = vld [vmem:[%s3045 + $0x38] sm:$0xff]
  %v3054 = vld [vmem:[%s3045 + $0x40] sm:$0xff]
  %v3055 = vld [vmem:[%s3045 + $0x48] sm:$0xff]
  %v3056 = vld [vmem:[%s3045 + $0x50] sm:$0xff]
  %v3057 = vld [vmem:[%s3045 + $0x58] sm:$0xff]
  %v3058 = vld [vmem:[%s3045 + $0x60] sm:$0xff]
  %v3059 = vld [vmem:[%s3045 + $0x68] sm:$0xff]
  %v3060 = vld [vmem:[%s3045 + $0x70] sm:$0xff]
  %v3061 = vld [vmem:[%s3045 + $0x78] sm:$0xff]
  %v3062 = vld [vmem:[%s3045 + $0x80] sm:$0xff]
  %v3063 = vld [vmem:[%s3045 + $0x88] sm:$0xff]
  %v3064 = vld [vmem:[%s3045 + $0x90] sm:$0xff]
  %v3065 = vld [vmem:[%s3045 + $0x98] sm:$0xff]
  %v3066 = vld [vmem:[%s3045 + $0xa0] sm:$0xff]
  %3067 = vmatprep.subr.mxu0 0.0
  %3068 = vmatpush1.msra.mxu0 %v3046
  %3069 = vmatprep.subr.mxu0 0.0
  %3070 = vmatpush1.msra.mxu0 %v3047
  %3071 = vmatprep.subr.mxu0 0.0
  %3072 = vmatpush1.msra.mxu0 %v3048
  %3073 = vmatprep.subr.mxu0 0.0
  %3074 = vmatpush1.msra.mxu0 %v3049
  %3075 = vmatprep.subr.mxu0 0.0
  %3076 = vmatpush1.msra.mxu0 %v3050
  %3077 = vmatprep.subr.mxu0 0.0
  %3078 = vmatpush1.msra.mxu0 %v3051
  %3079 = vmatprep.subr.mxu0 0.0
  %3080 = vmatpush1.msra.mxu0 %v3052
  %3081 = vmatprep.subr.mxu0 0.0
  %3082 = vmatpush1.msra.mxu0 %v3053
  %3083 = vmatprep.subr.mxu0 0.0
  %3084 = vmatpush1.msra.mxu0 %v3054
  %3085 = vmatprep.subr.mxu0 0.0
  %3086 = vmatpush1.msra.mxu0 %v3055
  %3087 = vmatprep.subr.mxu0 0.0
  %3088 = vmatpush1.msra.mxu0 %v3056
  %3089 = vmatprep.subr.mxu0 0.0
  %3090 = vmatpush1.msra.mxu0 %v3057
  %3091 = vmatprep.subr.mxu0 0.0
  %3092 = vmatpush1.msra.mxu0 %v3058
  %3093 = vmatprep.subr.mxu0 0.0
  %3094 = vmatpush1.msra.mxu0 %v3059
  %3095 = vmatprep.subr.mxu0 0.0
  %3096 = vmatpush1.msra.mxu0 %v3060
  %3097 = vmatprep.subr.mxu0 0.0
  %3098 = vmatpush1.msra.mxu0 %v3061
  %3099 = vmatprep.subr.mxu0 0.0
  %3100 = vmatpush1.msra.mxu0 %v3062
  %3101 = vmatprep.subr.mxu0 0.0
  %3102 = vmatpush1.msra.mxu0 %v3063
  %3103 = vmatprep.subr.mxu0 0.0
  %3104 = vmatpush1.msra.mxu0 %v3064
  %3105 = vmatprep.subr.mxu0 0.0
  %3106 = vmatpush1.msra.mxu0 %v3065
  %3107 = vmatprep.subr.mxu0 0.0
  %3108 = vmatpush1.msra.mxu0 %v3066
  %3109 = vmatprep.subr.mxu0 0.0
  %3110 = vmatpush1.msra.mxu0 0.0
  %3111 = vmatprep.subr.mxu0 0.0
  %3112 = vmatpush1.msra.mxu0 0.0
  %3113 = vmatprep.subr.mxu0 0.0
  %3114 = vmatpush1.msra.mxu0 0.0
  %3115 = vmatprep.subr.mxu0 0.0
  %3116 = vmatpush1.msra.mxu0 0.0
  %3117 = vmatprep.subr.mxu0 0.0
  %3118 = vmatpush1.msra.mxu0 0.0
  %3119 = vmatprep.subr.mxu0 0.0
  %3120 = vmatpush1.msra.mxu0 0.0
  %3121 = vmatprep.subr.mxu0 0.0
  %3122 = vmatpush1.msra.mxu0 0.0
  %3123 = vmatprep.subr.mxu0 0.0
  %3124 = vmatpush1.msra.mxu0 0.0
  %3125 = vmatprep.subr.mxu0 0.0
  %3126 = vmatpush1.msra.mxu0 0.0
  %3127 = vmatprep.subr.mxu0 0.0
  %3128 = vmatpush1.msra.mxu0 0.0
  %3129 = vmatprep.subr.mxu0 0.0
  %3130 = vmatpush1.msra.mxu0 0.0
  %3131 = vmatprep.mubr.f32.mxu0 %v2869
  %3132 = vmatmul.mubr.f32.gmra.mrb[0].mxu0 %v2818
  %v3133 = vpop.f32.mrb[0].mxu0
  %v3134 = vadd.f32 0.0, %v3133
  %v3135 = vpop.f32.mrb[0].mxu0
  %3136 = vmatprep.mubr.f32.mxu0 %v2872
  %3137 = vmatmul.mubr.f32.gmra.mrb[0].mxu0 %v2820
  %v3138 = vpop.f32.mrb[0].mxu0
  %v3139 = vadd.f32 0.0, %v3138
  %v3140 = vpop.f32.mrb[0].mxu0
  %3141 = vmatprep.mubr.f32.mxu0 %v2875
  %3142 = vmatmul.mubr.f32.gmra.mrb[0].mxu0 %v2822
  %v3143 = vpop.f32.mrb[0].mxu0
  %v3144 = vadd.f32 0.0, %v3143
  %v3145 = vpop.f32.mrb[0].mxu0
  %3146 = vmatprep.mubr.f32.mxu0 %v2878
  %3147 = vmatmul.mubr.f32.gmra.mrb[0].mxu0 %v2824
  %v3148 = vpop.f32.mrb[0].mxu0
  %v3149 = vadd.f32 0.0, %v3148
  %v3150 = vpop.f32.mrb[0].mxu0
  %3151 = vmatprep.mubr.f32.mxu0 %v2881
  %3152 = vmatmul.mubr.f32.gmra.mrb[0].mxu0 %v2826
  %v3153 = vpop.f32.mrb[0].mxu0
  %v3154 = vadd.f32 0.0, %v3153
  %v3155 = vpop.f32.mrb[0].mxu0
  %3156 = vmatprep.mubr.f32.mxu0 %v2884
  %3157 = vmatmul.mubr.f32.gmra.mrb[0].mxu0 %v2828
  %v3158 = vpop.f32.mrb[0].mxu0
  %v3159 = vadd.f32 0.0, %v3158
  %v3160 = vpop.f32.mrb[0].mxu0
  %3161 = vmatprep.mubr.f32.mxu0 %v2887
  %3162 = vmatmul.mubr.f32.gmra.mrb[0].mxu0 %v2830
  %v3163 = vpop.f32.mrb[0].mxu0
  %v3164 = vadd.f32 0.0, %v3163
  %v3165 = vpop.f32.mrb[0].mxu0
  %3166 = vmatprep.mubr.f32.mxu0 %v2890
  %3167 = vmatmul.mubr.f32.gmra.mrb[0].mxu0 %v2832
  %v3168 = vpop.f32.mrb[0].mxu0
  %v3169 = vadd.f32 0.0, %v3168
  %v3170 = vpop.f32.mrb[0].mxu0
  %3171 = vmatprep.mubr.f32.mxu0 %v2893
  %3172 = vmatmul.mubr.f32.gmra.mrb[0].mxu0 %v2834
  %v3173 = vpop.f32.mrb[0].mxu0
  %v3174 = vadd.f32 0.0, %v3173
  %v3175 = vpop.f32.mrb[0].mxu0
  %3176 = vmatprep.mubr.f32.mxu0 %v2896
  %3177 = vmatmul.mubr.f32.gmra.mrb[0].mxu0 %v2836
  %v3178 = vpop.f32.mrb[0].mxu0
  %v3179 = vadd.f32 0.0, %v3178
  %v3180 = vpop.f32.mrb[0].mxu0
  %3181 = vmatprep.mubr.f32.mxu0 %v2899
  %3182 = vmatmul.mubr.f32.gmra.mrb[0].mxu0 %v2838
  %v3183 = vpop.f32.mrb[0].mxu0
  %v3184 = vadd.f32 0.0, %v3183
  %v3185 = vpop.f32.mrb[0].mxu0
  %3186 = vmatprep.mubr.f32.mxu0 %v2902
  %3187 = vmatmul.mubr.f32.gmra.mrb[0].mxu0 %v2840
  %v3188 = vpop.f32.mrb[0].mxu0
  %v3189 = vadd.f32 0.0, %v3188
  %v3190 = vpop.f32.mrb[0].mxu0
  %3191 = vmatprep.mubr.f32.mxu0 %v2905
  %3192 = vmatmul.mubr.f32.gmra.mrb[0].mxu0 %v2842
  %v3193 = vpop.f32.mrb[0].mxu0
  %v3194 = vadd.f32 0.0, %v3193
  %v3195 = vpop.f32.mrb[0].mxu0
  %3196 = vmatprep.mubr.f32.mxu0 %v2908
  %3197 = vmatmul.mubr.f32.gmra.mrb[0].mxu0 %v2844
  %v3198 = vpop.f32.mrb[0].mxu0
  %v3199 = vadd.f32 0.0, %v3198
  %v3200 = vpop.f32.mrb[0].mxu0
  %3201 = vdwg.mxu0
  %v3202 = vmax.f32 %v2977, %v3134
  %v3203 = vmax.f32 %v2982, %v3139
  %v3204 = vmax.f32 %v2987, %v3144
  %v3205 = vmax.f32 %v2992, %v3149
  %v3206 = vmax.f32 %v2997, %v3154
  %v3207 = vmax.f32 %v3002, %v3159
  %v3208 = vmax.f32 %v3007, %v3164
  %v3209 = vmax.f32 %v3012, %v3169
  %v3210 = vmax.f32 %v3017, %v3174
  %v3211 = vmax.f32 %v3022, %v3179
  %v3212 = vmax.f32 %v3027, %v3184
  %v3213 = vmax.f32 %v3032, %v3189
  %v3214 = vmax.f32 %v3037, %v3194
  %v3215 = vmax.f32 %v3042, %v3199
  %v3216 = vld [vmem:[%s5] sm:$0xff]
  %v3217 = vld [vmem:[%s5 + $0x8] sm:$0xff]
  %v3218 = vld [vmem:[%s5 + $0x10] sm:$0xff]
  %v3219 = vld [vmem:[%s5 + $0x18] sm:$0xff]
  %v3220 = vld [vmem:[%s5 + $0x20] sm:$0xff]
  %v3221 = vld [vmem:[%s5 + $0x28] sm:$0xff]
  %v3222 = vld [vmem:[%s5 + $0x30] sm:$0xff]
  %v3223 = vld [vmem:[%s5 + $0x38] sm:$0xff]
  %v3224 = vld [vmem:[%s5 + $0x40] sm:$0xff]
  %v3225 = vld [vmem:[%s5 + $0x48] sm:$0xff]
  %v3226 = vld [vmem:[%s5 + $0x50] sm:$0xff]
  %v3227 = vld [vmem:[%s5 + $0x58] sm:$0xff]
  %v3228 = vld [vmem:[%s5 + $0x60] sm:$0xff]
  %v3229 = vld [vmem:[%s5 + $0x68] sm:$0xff]
  %v3230 = vld [vmem:[%s5 + $0x70] sm:$0xff]
  %v3231 = vld [vmem:[%s5 + $0x78] sm:$0xff]
  %v3232 = vld [vmem:[%s5 + $0x80] sm:$0xff]
  %v3233 = vld [vmem:[%s5 + $0x88] sm:$0xff]
  %v3234 = vld [vmem:[%s5 + $0x90] sm:$0xff]
  %v3235 = vld [vmem:[%s5 + $0x98] sm:$0xff]
  %v3236 = vld [vmem:[%s5 + $0xa0] sm:$0xf]
  %v3237 = vld [vmem:[%s5 + $0xa8] sm:$0xf]
  %s3238 = scalar_lea.vmem %s5, 176
  %v3239 = vld [vmem:[%s3238] sm:$0xff]
  %v3240 = vld [vmem:[%s3238 + $0x8] sm:$0xff]
  %v3241 = vld [vmem:[%s3238 + $0x10] sm:$0xff]
  %v3242 = vld [vmem:[%s3238 + $0x18] sm:$0xff]
  %v3243 = vld [vmem:[%s3238 + $0x20] sm:$0xff]
  %v3244 = vld [vmem:[%s3238 + $0x28] sm:$0xff]
  %v3245 = vld [vmem:[%s3238 + $0x30] sm:$0xff]
  %v3246 = vld [vmem:[%s3238 + $0x38] sm:$0xff]
  %v3247 = vld [vmem:[%s3238 + $0x40] sm:$0xff]
  %v3248 = vld [vmem:[%s3238 + $0x48] sm:$0xff]
  %v3249 = vld [vmem:[%s3238 + $0x50] sm:$0xff]
  %v3250 = vld [vmem:[%s3238 + $0x58] sm:$0xff]
  %v3251 = vld [vmem:[%s3238 + $0x60] sm:$0xff]
  %v3252 = vld [vmem:[%s3238 + $0x68] sm:$0xff]
  %v3253 = vld [vmem:[%s3238 + $0x70] sm:$0xff]
  %v3254 = vld [vmem:[%s3238 + $0x78] sm:$0xff]
  %v3255 = vld [vmem:[%s3238 + $0x80] sm:$0xff]
  %v3256 = vld [vmem:[%s3238 + $0x88] sm:$0xff]
  %v3257 = vld [vmem:[%s3238 + $0x90] sm:$0xff]
  %v3258 = vld [vmem:[%s3238 + $0x98] sm:$0xff]
  %v3259 = vld [vmem:[%s3238 + $0xa0] sm:$0xf]
  %v3260 = vld [vmem:[%s3238 + $0xa8] sm:$0xf]
  %s3261 = scalar_lea.vmem %s5, 352
  %v3262 = vld [vmem:[%s3261] sm:$0xff]
  %v3263 = vld [vmem:[%s3261 + $0x8] sm:$0xff]
  %v3264 = vld [vmem:[%s3261 + $0x10] sm:$0xff]
  %v3265 = vld [vmem:[%s3261 + $0x18] sm:$0xff]
  %v3266 = vld [vmem:[%s3261 + $0x20] sm:$0xff]
  %v3267 = vld [vmem:[%s3261 + $0x28] sm:$0xff]
  %v3268 = vld [vmem:[%s3261 + $0x30] sm:$0xff]
  %v3269 = vld [vmem:[%s3261 + $0x38] sm:$0xff]
  %v3270 = vld [vmem:[%s3261 + $0x40] sm:$0xff]
  %v3271 = vld [vmem:[%s3261 + $0x48] sm:$0xff]
  %v3272 = vld [vmem:[%s3261 + $0x50] sm:$0xff]
  %v3273 = vld [vmem:[%s3261 + $0x58] sm:$0xff]
  %v3274 = vld [vmem:[%s3261 + $0x60] sm:$0xff]
  %v3275 = vld [vmem:[%s3261 + $0x68] sm:$0xff]
  %v3276 = vld [vmem:[%s3261 + $0x70] sm:$0xff]
  %v3277 = vld [vmem:[%s3261 + $0x78] sm:$0xff]
  %v3278 = vld [vmem:[%s3261 + $0x80] sm:$0xff]
  %v3279 = vld [vmem:[%s3261 + $0x88] sm:$0xff]
  %v3280 = vld [vmem:[%s3261 + $0x90] sm:$0xff]
  %v3281 = vld [vmem:[%s3261 + $0x98] sm:$0xff]
  %v3282 = vld [vmem:[%s3261 + $0xa0] sm:$0xf]
  %v3283 = vld [vmem:[%s3261 + $0xa8] sm:$0xf]
  %vm3298 = vcmask 1045504
  %v3299 = vrot.slane %v3202, 2
  %v3300 = vrot.slane %v3203, 2
  %v3301 = vsel %vm3298, %v3299, %v3300
  %v3302 = vrot.slane %v3204, 2
  %v3303 = vsel %vm3298, %v3300, %v3302
  %v3304 = vrot.slane %v3205, 2
  %v3305 = vsel %vm3298, %v3302, %v3304
  %v3306 = vrot.slane %v3206, 2
  %v3307 = vsel %vm3298, %v3304, %v3306
  %v3308 = vrot.slane %v3207, 2
  %v3309 = vsel %vm3298, %v3306, %v3308
  %v3310 = vrot.slane %v3208, 2
  %v3311 = vsel %vm3298, %v3308, %v3310
  %v3312 = vrot.slane %v3209, 2
  %v3313 = vsel %vm3298, %v3310, %v3312
  %v3314 = vrot.slane %v3210, 2
  %v3315 = vsel %vm3298, %v3312, %v3314
  %v3316 = vrot.slane %v3211, 2
  %v3317 = vsel %vm3298, %v3314, %v3316
  %v3318 = vrot.slane %v3212, 2
  %v3319 = vsel %vm3298, %v3316, %v3318
  %v3320 = vrot.slane %v3213, 2
  %v3321 = vsel %vm3298, %v3318, %v3320
  %v3322 = vrot.slane %v3214, 2
  %v3323 = vsel %vm3298, %v3320, %v3322
  %v3324 = vrot.slane %v3215, 2
  %v3325 = vsel %vm3298, %v3322, %v3324
  %vm3326 = vcmask 687104
  %v3327 = vsel %vm3326, %v3301, 0
  %v3329 = vsel %vm3326, %v3303, 0
  %v3331 = vsel %vm3326, %v3305, 0
  %v3333 = vsel %vm3326, %v3307, 0
  %v3335 = vsel %vm3326, %v3309, 0
  %v3337 = vsel %vm3326, %v3311, 0
  %v3339 = vsel %vm3326, %v3313, 0
  %v3341 = vsel %vm3326, %v3315, 0
  %v3343 = vsel %vm3326, %v3317, 0
  %v3345 = vsel %vm3326, %v3319, 0
  %v3347 = vsel %vm3326, %v3321, 0
  %v3349 = vsel %vm3326, %v3323, 0
  %v3351 = vsel %vm3326, %v3325, 0
  %v3353 = vsel %vm3326, %v3324, 0
  %v3356 = vsel %vm2442, %v3282, 0
  %v3359 = vsel %vm2442, %v3283, 0
  %3361 = vmatprep.subr.mxu0 %v3263
  %3362 = vmatpush1.msra.mxu0 %v3262
  %3363 = vmatprep.subr.mxu0 %v3265
  %3364 = vmatpush1.msra.mxu0 %v3264
  %3365 = vmatprep.subr.mxu0 %v3267
  %3366 = vmatpush1.msra.mxu0 %v3266
  %3367 = vmatprep.subr.mxu0 %v3269
  %3368 = vmatpush1.msra.mxu0 %v3268
  %3369 = vmatprep.subr.mxu0 %v3271
  %3370 = vmatpush1.msra.mxu0 %v3270
  %3371 = vmatprep.subr.mxu0 %v3273
  %3372 = vmatpush1.msra.mxu0 %v3272
  %3373 = vmatprep.subr.mxu0 %v3275
  %3374 = vmatpush1.msra.mxu0 %v3274
  %3375 = vmatprep.subr.mxu0 %v3277
  %3376 = vmatpush1.msra.mxu0 %v3276
  %3377 = vmatprep.subr.mxu0 %v3279
  %3378 = vmatpush1.msra.mxu0 %v3278
  %3379 = vmatprep.subr.mxu0 %v3281
  %3380 = vmatpush1.msra.mxu0 %v3280
  %3381 = vmatprep.subr.mxu0 %v3359
  %3382 = vmatpush1.msra.mxu0 %v3356
  %3383 = vmatprep.subr.mxu0 0.0
  %3384 = vmatpush1.msra.mxu0 0.0
  %3385 = vmatprep.subr.mxu0 0.0
  %3386 = vmatpush1.msra.mxu0 0.0
  %3387 = vmatprep.subr.mxu0 0.0
  %3388 = vmatpush1.msra.mxu0 0.0
  %3389 = vmatprep.subr.mxu0 0.0
  %3390 = vmatpush1.msra.mxu0 0.0
  %3391 = vmatprep.subr.mxu0 0.0
  %3392 = vmatpush1.msra.mxu0 0.0
  %3393 = vmatprep.subr.mxu0 0.0
  %3394 = vmatpush1.msra.mxu0 0.0
  %3395 = vmatprep.subr.mxu0 0.0
  %3396 = vmatpush1.msra.mxu0 0.0
  %3397 = vmatprep.subr.mxu0 0.0
  %3398 = vmatpush1.msra.mxu0 0.0
  %3399 = vmatprep.subr.mxu0 0.0
  %3400 = vmatpush1.msra.mxu0 0.0
  %3401 = vmatprep.subr.mxu0 0.0
  %3402 = vmatpush1.msra.mxu0 0.0
  %3403 = vmatprep.subr.mxu0 0.0
  %3404 = vmatpush1.msra.mxu0 0.0
  %3405 = vmatprep.subr.mxu0 0.0
  %3406 = vmatpush1.msra.mxu0 0.0
  %3407 = vmatprep.subr.mxu0 0.0
  %3408 = vmatpush1.msra.mxu0 0.0
  %3409 = vmatprep.subr.mxu0 0.0
  %3410 = vmatpush1.msra.mxu0 0.0
  %3411 = vmatprep.subr.mxu0 0.0
  %3412 = vmatpush1.msra.mxu0 0.0
  %3413 = vmatprep.subr.mxu0 0.0
  %3414 = vmatpush1.msra.mxu0 0.0
  %3415 = vmatprep.subr.mxu0 0.0
  %3416 = vmatpush1.msra.mxu0 0.0
  %3417 = vmatprep.subr.mxu0 0.0
  %3418 = vmatpush1.msra.mxu0 0.0
  %3419 = vmatprep.subr.mxu0 0.0
  %3420 = vmatpush1.msra.mxu0 0.0
  %3421 = vmatprep.subr.mxu0 0.0
  %3422 = vmatpush1.msra.mxu0 0.0
  %3423 = vmatprep.subr.mxu0 0.0
  %3424 = vmatpush1.msra.mxu0 0.0
  %3425 = vmatprep.mubr.f32.mxu0 0.0
  %3426 = vmatmul.mubr.f32.gmra.mrb[0].mxu0 %v3327
  %v3427 = vpop.f32.mrb[0].mxu0
  %v3428 = vadd.f32 0.0, %v3427
  %v3429 = vpop.f32.mrb[0].mxu0
  %v3430 = vadd.f32 0.0, %v3429
  %3431 = vmatprep.mubr.f32.mxu0 0.0
  %3432 = vmatmul.mubr.f32.gmra.mrb[0].mxu0 %v3329
  %v3433 = vpop.f32.mrb[0].mxu0
  %v3434 = vadd.f32 0.0, %v3433
  %v3435 = vpop.f32.mrb[0].mxu0
  %v3436 = vadd.f32 0.0, %v3435
  %3437 = vmatprep.mubr.f32.mxu0 0.0
  %3438 = vmatmul.mubr.f32.gmra.mrb[0].mxu0 %v3331
  %v3439 = vpop.f32.mrb[0].mxu0
  %v3440 = vadd.f32 0.0, %v3439
  %v3441 = vpop.f32.mrb[0].mxu0
  %v3442 = vadd.f32 0.0, %v3441
  %3443 = vmatprep.mubr.f32.mxu0 0.0
  %3444 = vmatmul.mubr.f32.gmra.mrb[0].mxu0 %v3333
  %v3445 = vpop.f32.mrb[0].mxu0
  %v3446 = vadd.f32 0.0, %v3445
  %v3447 = vpop.f32.mrb[0].mxu0
  %v3448 = vadd.f32 0.0, %v3447
  %3449 = vmatprep.mubr.f32.mxu0 0.0
  %3450 = vmatmul.mubr.f32.gmra.mrb[0].mxu0 %v3335
  %v3451 = vpop.f32.mrb[0].mxu0
  %v3452 = vadd.f32 0.0, %v3451
  %v3453 = vpop.f32.mrb[0].mxu0
  %v3454 = vadd.f32 0.0, %v3453
  %3455 = vmatprep.mubr.f32.mxu0 0.0
  %3456 = vmatmul.mubr.f32.gmra.mrb[0].mxu0 %v3337
  %v3457 = vpop.f32.mrb[0].mxu0
  %v3458 = vadd.f32 0.0, %v3457
  %v3459 = vpop.f32.mrb[0].mxu0
  %v3460 = vadd.f32 0.0, %v3459
  %3461 = vmatprep.mubr.f32.mxu0 0.0
  %3462 = vmatmul.mubr.f32.gmra.mrb[0].mxu0 %v3339
  %v3463 = vpop.f32.mrb[0].mxu0
  %v3464 = vadd.f32 0.0, %v3463
  %v3465 = vpop.f32.mrb[0].mxu0
  %v3466 = vadd.f32 0.0, %v3465
  %3467 = vmatprep.mubr.f32.mxu0 0.0
  %3468 = vmatmul.mubr.f32.gmra.mrb[0].mxu0 %v3341
  %v3469 = vpop.f32.mrb[0].mxu0
  %v3470 = vadd.f32 0.0, %v3469
  %v3471 = vpop.f32.mrb[0].mxu0
  %v3472 = vadd.f32 0.0, %v3471
  %3473 = vmatprep.mubr.f32.mxu0 0.0
  %3474 = vmatmul.mubr.f32.gmra.mrb[0].mxu0 %v3343
  %v3475 = vpop.f32.mrb[0].mxu0
  %v3476 = vadd.f32 0.0, %v3475
  %v3477 = vpop.f32.mrb[0].mxu0
  %v3478 = vadd.f32 0.0, %v3477
  %3479 = vmatprep.mubr.f32.mxu0 0.0
  %3480 = vmatmul.mubr.f32.gmra.mrb[0].mxu0 %v3345
  %v3481 = vpop.f32.mrb[0].mxu0
  %v3482 = vadd.f32 0.0, %v3481
  %v3483 = vpop.f32.mrb[0].mxu0
  %v3484 = vadd.f32 0.0, %v3483
  %3485 = vmatprep.mubr.f32.mxu0 0.0
  %3486 = vmatmul.mubr.f32.gmra.mrb[0].mxu0 %v3347
  %v3487 = vpop.f32.mrb[0].mxu0
  %v3488 = vadd.f32 0.0, %v3487
  %v3489 = vpop.f32.mrb[0].mxu0
  %v3490 = vadd.f32 0.0, %v3489
  %3491 = vmatprep.mubr.f32.mxu0 0.0
  %3492 = vmatmul.mubr.f32.gmra.mrb[0].mxu0 %v3349
  %v3493 = vpop.f32.mrb[0].mxu0
  %v3494 = vadd.f32 0.0, %v3493
  %v3495 = vpop.f32.mrb[0].mxu0
  %v3496 = vadd.f32 0.0, %v3495
  %3497 = vmatprep.mubr.f32.mxu0 0.0
  %3498 = vmatmul.mubr.f32.gmra.mrb[0].mxu0 %v3351
  %v3499 = vpop.f32.mrb[0].mxu0
  %v3500 = vadd.f32 0.0, %v3499
  %v3501 = vpop.f32.mrb[0].mxu0
  %v3502 = vadd.f32 0.0, %v3501
  %3503 = vmatprep.mubr.f32.mxu0 0.0
  %3504 = vmatmul.mubr.f32.gmra.mrb[0].mxu0 %v3353
  %v3505 = vpop.f32.mrb[0].mxu0
  %v3506 = vadd.f32 0.0, %v3505
  %v3507 = vpop.f32.mrb[0].mxu0
  %v3508 = vadd.f32 0.0, %v3507
  %3509 = vdwg.mxu0
  %v3510 = vsel %vm3326, %v3202, 0
  %v3512 = vsel %vm3326, %v3203, 0
  %v3514 = vsel %vm3326, %v3204, 0
  %v3516 = vsel %vm3326, %v3205, 0
  %v3518 = vsel %vm3326, %v3206, 0
  %v3520 = vsel %vm3326, %v3207, 0
  %v3522 = vsel %vm3326, %v3208, 0
  %v3524 = vsel %vm3326, %v3209, 0
  %v3526 = vsel %vm3326, %v3210, 0
  %v3528 = vsel %vm3326, %v3211, 0
  %v3530 = vsel %vm3326, %v3212, 0
  %v3532 = vsel %vm3326, %v3213, 0
  %v3534 = vsel %vm3326, %v3214, 0
  %v3536 = vsel %vm3326, %v3215, 0
  %v3539 = vsel %vm2442, %v3236, 0
  %v3542 = vsel %vm2442, %v3237, 0
  %3544 = vmatprep.subr.mxu0 %v3217
  %3545 = vmatpush1.msra.mxu0 %v3216
  %3546 = vmatprep.subr.mxu0 %v3219
  %3547 = vmatpush1.msra.mxu0 %v3218
  %3548 = vmatprep.subr.mxu0 %v3221
  %3549 = vmatpush1.msra.mxu0 %v3220
  %3550 = vmatprep.subr.mxu0 %v3223
  %3551 = vmatpush1.msra.mxu0 %v3222
  %3552 = vmatprep.subr.mxu0 %v3225
  %3553 = vmatpush1.msra.mxu0 %v3224
  %3554 = vmatprep.subr.mxu0 %v3227
  %3555 = vmatpush1.msra.mxu0 %v3226
  %3556 = vmatprep.subr.mxu0 %v3229
  %3557 = vmatpush1.msra.mxu0 %v3228
  %3558 = vmatprep.subr.mxu0 %v3231
  %3559 = vmatpush1.msra.mxu0 %v3230
  %3560 = vmatprep.subr.mxu0 %v3233
  %3561 = vmatpush1.msra.mxu0 %v3232
  %3562 = vmatprep.subr.mxu0 %v3235
  %3563 = vmatpush1.msra.mxu0 %v3234
  %3564 = vmatprep.subr.mxu0 %v3542
  %3565 = vmatpush1.msra.mxu0 %v3539
  %3566 = vmatprep.subr.mxu0 0.0
  %3567 = vmatpush1.msra.mxu0 0.0
  %3568 = vmatprep.subr.mxu0 0.0
  %3569 = vmatpush1.msra.mxu0 0.0
  %3570 = vmatprep.subr.mxu0 0.0
  %3571 = vmatpush1.msra.mxu0 0.0
  %3572 = vmatprep.subr.mxu0 0.0
  %3573 = vmatpush1.msra.mxu0 0.0
  %3574 = vmatprep.subr.mxu0 0.0
  %3575 = vmatpush1.msra.mxu0 0.0
  %3576 = vmatprep.subr.mxu0 0.0
  %3577 = vmatpush1.msra.mxu0 0.0
  %3578 = vmatprep.subr.mxu0 0.0
  %3579 = vmatpush1.msra.mxu0 0.0
  %3580 = vmatprep.subr.mxu0 0.0
  %3581 = vmatpush1.msra.mxu0 0.0
  %3582 = vmatprep.subr.mxu0 0.0
  %3583 = vmatpush1.msra.mxu0 0.0
  %3584 = vmatprep.subr.mxu0 0.0
  %3585 = vmatpush1.msra.mxu0 0.0
  %3586 = vmatprep.subr.mxu0 0.0
  %3587 = vmatpush1.msra.mxu0 0.0
  %3588 = vmatprep.subr.mxu0 0.0
  %3589 = vmatpush1.msra.mxu0 0.0
  %3590 = vmatprep.subr.mxu0 0.0
  %3591 = vmatpush1.msra.mxu0 0.0
  %3592 = vmatprep.subr.mxu0 0.0
  %3593 = vmatpush1.msra.mxu0 0.0
  %3594 = vmatprep.subr.mxu0 0.0
  %3595 = vmatpush1.msra.mxu0 0.0
  %3596 = vmatprep.subr.mxu0 0.0
  %3597 = vmatpush1.msra.mxu0 0.0
  %3598 = vmatprep.subr.mxu0 0.0
  %3599 = vmatpush1.msra.mxu0 0.0
  %3600 = vmatprep.subr.mxu0 0.0
  %3601 = vmatpush1.msra.mxu0 0.0
  %3602 = vmatprep.subr.mxu0 0.0
  %3603 = vmatpush1.msra.mxu0 0.0
  %3604 = vmatprep.subr.mxu0 0.0
  %3605 = vmatpush1.msra.mxu0 0.0
  %3606 = vmatprep.subr.mxu0 0.0
  %3607 = vmatpush1.msra.mxu0 0.0
  %3608 = vmatprep.mubr.f32.mxu0 0.0
  %3609 = vmatmul.mubr.f32.gmra.mrb[0].mxu0 %v3510
  %v3610 = vpop.f32.mrb[0].mxu0
  %v3611 = vadd.f32 %v3428, %v3610
  %v3612 = vpop.f32.mrb[0].mxu0
  %v3613 = vadd.f32 %v3430, %v3612
  %3614 = vmatprep.mubr.f32.mxu0 0.0
  %3615 = vmatmul.mubr.f32.gmra.mrb[0].mxu0 %v3512
  %v3616 = vpop.f32.mrb[0].mxu0
  %v3617 = vadd.f32 %v3434, %v3616
  %v3618 = vpop.f32.mrb[0].mxu0
  %v3619 = vadd.f32 %v3436, %v3618
  %3620 = vmatprep.mubr.f32.mxu0 0.0
  %3621 = vmatmul.mubr.f32.gmra.mrb[0].mxu0 %v3514
  %v3622 = vpop.f32.mrb[0].mxu0
  %v3623 = vadd.f32 %v3440, %v3622
  %v3624 = vpop.f32.mrb[0].mxu0
  %v3625 = vadd.f32 %v3442, %v3624
  %3626 = vmatprep.mubr.f32.mxu0 0.0
  %3627 = vmatmul.mubr.f32.gmra.mrb[0].mxu0 %v3516
  %v3628 = vpop.f32.mrb[0].mxu0
  %v3629 = vadd.f32 %v3446, %v3628
  %v3630 = vpop.f32.mrb[0].mxu0
  %v3631 = vadd.f32 %v3448, %v3630
  %3632 = vmatprep.mubr.f32.mxu0 0.0
  %3633 = vmatmul.mubr.f32.gmra.mrb[0].mxu0 %v3518
  %v3634 = vpop.f32.mrb[0].mxu0
  %v3635 = vadd.f32 %v3452, %v3634
  %v3636 = vpop.f32.mrb[0].mxu0
  %v3637 = vadd.f32 %v3454, %v3636
  %3638 = vmatprep.mubr.f32.mxu0 0.0
  %3639 = vmatmul.mubr.f32.gmra.mrb[0].mxu0 %v3520
  %v3640 = vpop.f32.mrb[0].mxu0
  %v3641 = vadd.f32 %v3458, %v3640
  %v3642 = vpop.f32.mrb[0].mxu0
  %v3643 = vadd.f32 %v3460, %v3642
  %3644 = vmatprep.mubr.f32.mxu0 0.0
  %3645 = vmatmul.mubr.f32.gmra.mrb[0].mxu0 %v3522
  %v3646 = vpop.f32.mrb[0].mxu0
  %v3647 = vadd.f32 %v3464, %v3646
  %v3648 = vpop.f32.mrb[0].mxu0
  %v3649 = vadd.f32 %v3466, %v3648
  %3650 = vmatprep.mubr.f32.mxu0 0.0
  %3651 = vmatmul.mubr.f32.gmra.mrb[0].mxu0 %v3524
  %v3652 = vpop.f32.mrb[0].mxu0
  %v3653 = vadd.f32 %v3470, %v3652
  %v3654 = vpop.f32.mrb[0].mxu0
  %v3655 = vadd.f32 %v3472, %v3654
  %3656 = vmatprep.mubr.f32.mxu0 0.0
  %3657 = vmatmul.mubr.f32.gmra.mrb[0].mxu0 %v3526
  %v3658 = vpop.f32.mrb[0].mxu0
  %v3659 = vadd.f32 %v3476, %v3658
  %v3660 = vpop.f32.mrb[0].mxu0
  %v3661 = vadd.f32 %v3478, %v3660
  %3662 = vmatprep.mubr.f32.mxu0 0.0
  %3663 = vmatmul.mubr.f32.gmra.mrb[0].mxu0 %v3528
  %v3664 = vpop.f32.mrb[0].mxu0
  %v3665 = vadd.f32 %v3482, %v3664
  %v3666 = vpop.f32.mrb[0].mxu0
  %v3667 = vadd.f32 %v3484, %v3666
  %3668 = vmatprep.mubr.f32.mxu0 0.0
  %3669 = vmatmul.mubr.f32.gmra.mrb[0].mxu0 %v3530
  %v3670 = vpop.f32.mrb[0].mxu0
  %v3671 = vadd.f32 %v3488, %v3670
  %v3672 = vpop.f32.mrb[0].mxu0
  %v3673 = vadd.f32 %v3490, %v3672
  %3674 = vmatprep.mubr.f32.mxu0 0.0
  %3675 = vmatmul.mubr.f32.gmra.mrb[0].mxu0 %v3532
  %v3676 = vpop.f32.mrb[0].mxu0
  %v3677 = vadd.f32 %v3494, %v3676
  %v3678 = vpop.f32.mrb[0].mxu0
  %v3679 = vadd.f32 %v3496, %v3678
  %3680 = vmatprep.mubr.f32.mxu0 0.0
  %3681 = vmatmul.mubr.f32.gmra.mrb[0].mxu0 %v3534
  %v3682 = vpop.f32.mrb[0].mxu0
  %v3683 = vadd.f32 %v3500, %v3682
  %v3684 = vpop.f32.mrb[0].mxu0
  %v3685 = vadd.f32 %v3502, %v3684
  %3686 = vmatprep.mubr.f32.mxu0 0.0
  %3687 = vmatmul.mubr.f32.gmra.mrb[0].mxu0 %v3536
  %v3688 = vpop.f32.mrb[0].mxu0
  %v3689 = vadd.f32 %v3506, %v3688
  %v3690 = vpop.f32.mrb[0].mxu0
  %v3691 = vadd.f32 %v3508, %v3690
  %3692 = vdwg.mxu0
  %s3693 = scalar_lea.vmem %s5, 528
  %v3694 = vld [vmem:[%s3693] sm:$0xff]
  %v3695 = vld [vmem:[%s3693 + $0x8] sm:$0xff]
  %v3696 = vld [vmem:[%s3693 + $0x10] sm:$0xff]
  %v3697 = vld [vmem:[%s3693 + $0x18] sm:$0xff]
  %v3698 = vld [vmem:[%s3693 + $0x20] sm:$0xff]
  %v3699 = vld [vmem:[%s3693 + $0x28] sm:$0xff]
  %v3700 = vld [vmem:[%s3693 + $0x30] sm:$0xff]
  %v3701 = vld [vmem:[%s3693 + $0x38] sm:$0xff]
  %v3702 = vld [vmem:[%s3693 + $0x40] sm:$0xff]
  %v3703 = vld [vmem:[%s3693 + $0x48] sm:$0xff]
  %v3704 = vld [vmem:[%s3693 + $0x50] sm:$0xff]
  %v3705 = vld [vmem:[%s3693 + $0x58] sm:$0xff]
  %v3706 = vld [vmem:[%s3693 + $0x60] sm:$0xff]
  %v3707 = vld [vmem:[%s3693 + $0x68] sm:$0xff]
  %v3708 = vld [vmem:[%s3693 + $0x70] sm:$0xff]
  %v3709 = vld [vmem:[%s3693 + $0x78] sm:$0xff]
  %v3710 = vld [vmem:[%s3693 + $0x80] sm:$0xff]
  %v3711 = vld [vmem:[%s3693 + $0x88] sm:$0xff]
  %v3712 = vld [vmem:[%s3693 + $0x90] sm:$0xff]
  %v3713 = vld [vmem:[%s3693 + $0x98] sm:$0xff]
  %v3714 = vld [vmem:[%s3693 + $0xa0] sm:$0xf]
  %v3715 = vld [vmem:[%s3693 + $0xa8] sm:$0xf]
  %vm3716 = vcmask 1044480
  %v3717 = vrot.slane %v3202, 3
  %v3718 = vrot.slane %v3203, 3
  %v3719 = vsel %vm3716, %v3717, %v3718
  %v3720 = vrot.slane %v3204, 3
  %v3721 = vsel %vm3716, %v3718, %v3720
  %v3722 = vrot.slane %v3205, 3
  %v3723 = vsel %vm3716, %v3720, %v3722
  %v3724 = vrot.slane %v3206, 3
  %v3725 = vsel %vm3716, %v3722, %v3724
  %v3726 = vrot.slane %v3207, 3
  %v3727 = vsel %vm3716, %v3724, %v3726
  %v3728 = vrot.slane %v3208, 3
  %v3729 = vsel %vm3716, %v3726, %v3728
  %v3730 = vrot.slane %v3209, 3
  %v3731 = vsel %vm3716, %v3728, %v3730
  %v3732 = vrot.slane %v3210, 3
  %v3733 = vsel %vm3716, %v3730, %v3732
  %v3734 = vrot.slane %v3211, 3
  %v3735 = vsel %vm3716, %v3732, %v3734
  %v3736 = vrot.slane %v3212, 3
  %v3737 = vsel %vm3716, %v3734, %v3736
  %v3738 = vrot.slane %v3213, 3
  %v3739 = vsel %vm3716, %v3736, %v3738
  %v3740 = vrot.slane %v3214, 3
  %v3741 = vsel %vm3716, %v3738, %v3740
  %v3742 = vrot.slane %v3215, 3
  %v3743 = vsel %vm3716, %v3740, %v3742
  %v3744 = vsel %vm3326, %v3719, 0
  %v3746 = vsel %vm3326, %v3721, 0
  %v3748 = vsel %vm3326, %v3723, 0
  %v3750 = vsel %vm3326, %v3725, 0
  %v3752 = vsel %vm3326, %v3727, 0
  %v3754 = vsel %vm3326, %v3729, 0
  %v3756 = vsel %vm3326, %v3731, 0
  %v3758 = vsel %vm3326, %v3733, 0
  %v3760 = vsel %vm3326, %v3735, 0
  %v3762 = vsel %vm3326, %v3737, 0
  %v3764 = vsel %vm3326, %v3739, 0
  %v3766 = vsel %vm3326, %v3741, 0
  %v3768 = vsel %vm3326, %v3743, 0
  %v3770 = vsel %vm3326, %v3742, 0
  %v3773 = vsel %vm2442, %v3714, 0
  %v3776 = vsel %vm2442, %v3715, 0
  %3778 = vmatprep.subr.mxu0 %v3695
  %3779 = vmatpush1.msra.mxu0 %v3694
  %3780 = vmatprep.subr.mxu0 %v3697
  %3781 = vmatpush1.msra.mxu0 %v3696
  %3782 = vmatprep.subr.mxu0 %v3699
  %3783 = vmatpush1.msra.mxu0 %v3698
  %3784 = vmatprep.subr.mxu0 %v3701
  %3785 = vmatpush1.msra.mxu0 %v3700
  %3786 = vmatprep.subr.mxu0 %v3703
  %3787 = vmatpush1.msra.mxu0 %v3702
  %3788 = vmatprep.subr.mxu0 %v3705
  %3789 = vmatpush1.msra.mxu0 %v3704
  %3790 = vmatprep.subr.mxu0 %v3707
  %3791 = vmatpush1.msra.mxu0 %v3706
  %3792 = vmatprep.subr.mxu0 %v3709
  %3793 = vmatpush1.msra.mxu0 %v3708
  %3794 = vmatprep.subr.mxu0 %v3711
  %3795 = vmatpush1.msra.mxu0 %v3710
  %3796 = vmatprep.subr.mxu0 %v3713
  %3797 = vmatpush1.msra.mxu0 %v3712
  %3798 = vmatprep.subr.mxu0 %v3776
  %3799 = vmatpush1.msra.mxu0 %v3773
  %3800 = vmatprep.subr.mxu0 0.0
  %3801 = vmatpush1.msra.mxu0 0.0
  %3802 = vmatprep.subr.mxu0 0.0
  %3803 = vmatpush1.msra.mxu0 0.0
  %3804 = vmatprep.subr.mxu0 0.0
  %3805 = vmatpush1.msra.mxu0 0.0
  %3806 = vmatprep.subr.mxu0 0.0
  %3807 = vmatpush1.msra.mxu0 0.0
  %3808 = vmatprep.subr.mxu0 0.0
  %3809 = vmatpush1.msra.mxu0 0.0
  %3810 = vmatprep.subr.mxu0 0.0
  %3811 = vmatpush1.msra.mxu0 0.0
  %3812 = vmatprep.subr.mxu0 0.0
  %3813 = vmatpush1.msra.mxu0 0.0
  %3814 = vmatprep.subr.mxu0 0.0
  %3815 = vmatpush1.msra.mxu0 0.0
  %3816 = vmatprep.subr.mxu0 0.0
  %3817 = vmatpush1.msra.mxu0 0.0
  %3818 = vmatprep.subr.mxu0 0.0
  %3819 = vmatpush1.msra.mxu0 0.0
  %3820 = vmatprep.subr.mxu0 0.0
  %3821 = vmatpush1.msra.mxu0 0.0
  %3822 = vmatprep.subr.mxu0 0.0
  %3823 = vmatpush1.msra.mxu0 0.0
  %3824 = vmatprep.subr.mxu0 0.0
  %3825 = vmatpush1.msra.mxu0 0.0
  %3826 = vmatprep.subr.mxu0 0.0
  %3827 = vmatpush1.msra.mxu0 0.0
  %3828 = vmatprep.subr.mxu0 0.0
  %3829 = vmatpush1.msra.mxu0 0.0
  %3830 = vmatprep.subr.mxu0 0.0
  %3831 = vmatpush1.msra.mxu0 0.0
  %3832 = vmatprep.subr.mxu0 0.0
  %3833 = vmatpush1.msra.mxu0 0.0
  %3834 = vmatprep.subr.mxu0 0.0
  %3835 = vmatpush1.msra.mxu0 0.0
  %3836 = vmatprep.subr.mxu0 0.0
  %3837 = vmatpush1.msra.mxu0 0.0
  %3838 = vmatprep.subr.mxu0 0.0
  %3839 = vmatpush1.msra.mxu0 0.0
  %3840 = vmatprep.subr.mxu0 0.0
  %3841 = vmatpush1.msra.mxu0 0.0
  %3842 = vmatprep.mubr.f32.mxu0 0.0
  %3843 = vmatmul.mubr.f32.gmra.mrb[0].mxu0 %v3744
  %v3844 = vpop.f32.mrb[0].mxu0
  %v3845 = vadd.f32 0.0, %v3844
  %v3846 = vpop.f32.mrb[0].mxu0
  %v3847 = vadd.f32 0.0, %v3846
  %3848 = vmatprep.mubr.f32.mxu0 0.0
  %3849 = vmatmul.mubr.f32.gmra.mrb[0].mxu0 %v3746
  %v3850 = vpop.f32.mrb[0].mxu0
  %v3851 = vadd.f32 0.0, %v3850
  %v3852 = vpop.f32.mrb[0].mxu0
  %v3853 = vadd.f32 0.0, %v3852
  %3854 = vmatprep.mubr.f32.mxu0 0.0
  %3855 = vmatmul.mubr.f32.gmra.mrb[0].mxu0 %v3748
  %v3856 = vpop.f32.mrb[0].mxu0
  %v3857 = vadd.f32 0.0, %v3856
  %v3858 = vpop.f32.mrb[0].mxu0
  %v3859 = vadd.f32 0.0, %v3858
  %3860 = vmatprep.mubr.f32.mxu0 0.0
  %3861 = vmatmul.mubr.f32.gmra.mrb[0].mxu0 %v3750
  %v3862 = vpop.f32.mrb[0].mxu0
  %v3863 = vadd.f32 0.0, %v3862
  %v3864 = vpop.f32.mrb[0].mxu0
  %v3865 = vadd.f32 0.0, %v3864
  %3866 = vmatprep.mubr.f32.mxu0 0.0
  %3867 = vmatmul.mubr.f32.gmra.mrb[0].mxu0 %v3752
  %v3868 = vpop.f32.mrb[0].mxu0
  %v3869 = vadd.f32 0.0, %v3868
  %v3870 = vpop.f32.mrb[0].mxu0
  %v3871 = vadd.f32 0.0, %v3870
  %3872 = vmatprep.mubr.f32.mxu0 0.0
  %3873 = vmatmul.mubr.f32.gmra.mrb[0].mxu0 %v3754
  %v3874 = vpop.f32.mrb[0].mxu0
  %v3875 = vadd.f32 0.0, %v3874
  %v3876 = vpop.f32.mrb[0].mxu0
  %v3877 = vadd.f32 0.0, %v3876
  %3878 = vmatprep.mubr.f32.mxu0 0.0
  %3879 = vmatmul.mubr.f32.gmra.mrb[0].mxu0 %v3756
  %v3880 = vpop.f32.mrb[0].mxu0
  %v3881 = vadd.f32 0.0, %v3880
  %v3882 = vpop.f32.mrb[0].mxu0
  %v3883 = vadd.f32 0.0, %v3882
  %3884 = vmatprep.mubr.f32.mxu0 0.0
  %3885 = vmatmul.mubr.f32.gmra.mrb[0].mxu0 %v3758
  %v3886 = vpop.f32.mrb[0].mxu0
  %v3887 = vadd.f32 0.0, %v3886
  %v3888 = vpop.f32.mrb[0].mxu0
  %v3889 = vadd.f32 0.0, %v3888
  %3890 = vmatprep.mubr.f32.mxu0 0.0
  %3891 = vmatmul.mubr.f32.gmra.mrb[0].mxu0 %v3760
  %v3892 = vpop.f32.mrb[0].mxu0
  %v3893 = vadd.f32 0.0, %v3892
  %v3894 = vpop.f32.mrb[0].mxu0
  %v3895 = vadd.f32 0.0, %v3894
  %3896 = vmatprep.mubr.f32.mxu0 0.0
  %3897 = vmatmul.mubr.f32.gmra.mrb[0].mxu0 %v3762
  %v3898 = vpop.f32.mrb[0].mxu0
  %v3899 = vadd.f32 0.0, %v3898
  %v3900 = vpop.f32.mrb[0].mxu0
  %v3901 = vadd.f32 0.0, %v3900
  %3902 = vmatprep.mubr.f32.mxu0 0.0
  %3903 = vmatmul.mubr.f32.gmra.mrb[0].mxu0 %v3764
  %v3904 = vpop.f32.mrb[0].mxu0
  %v3905 = vadd.f32 0.0, %v3904
  %v3906 = vpop.f32.mrb[0].mxu0
  %v3907 = vadd.f32 0.0, %v3906
  %3908 = vmatprep.mubr.f32.mxu0 0.0
  %3909 = vmatmul.mubr.f32.gmra.mrb[0].mxu0 %v3766
  %v3910 = vpop.f32.mrb[0].mxu0
  %v3911 = vadd.f32 0.0, %v3910
  %v3912 = vpop.f32.mrb[0].mxu0
  %v3913 = vadd.f32 0.0, %v3912
  %3914 = vmatprep.mubr.f32.mxu0 0.0
  %3915 = vmatmul.mubr.f32.gmra.mrb[0].mxu0 %v3768
  %v3916 = vpop.f32.mrb[0].mxu0
  %v3917 = vadd.f32 0.0, %v3916
  %v3918 = vpop.f32.mrb[0].mxu0
  %v3919 = vadd.f32 0.0, %v3918
  %3920 = vmatprep.mubr.f32.mxu0 0.0
  %3921 = vmatmul.mubr.f32.gmra.mrb[0].mxu0 %v3770
  %v3922 = vpop.f32.mrb[0].mxu0
  %v3923 = vadd.f32 0.0, %v3922
  %v3924 = vpop.f32.mrb[0].mxu0
  %v3925 = vadd.f32 0.0, %v3924
  %3926 = vdwg.mxu0
  %vm3927 = vcmask 1046528
  %v3928 = vrot.slane %v3202, 1
  %v3929 = vrot.slane %v3203, 1
  %v3930 = vsel %vm3927, %v3928, %v3929
  %v3931 = vrot.slane %v3204, 1
  %v3932 = vsel %vm3927, %v3929, %v3931
  %v3933 = vrot.slane %v3205, 1
  %v3934 = vsel %vm3927, %v3931, %v3933
  %v3935 = vrot.slane %v3206, 1
  %v3936 = vsel %vm3927, %v3933, %v3935
  %v3937 = vrot.slane %v3207, 1
  %v3938 = vsel %vm3927, %v3935, %v3937
  %v3939 = vrot.slane %v3208, 1
  %v3940 = vsel %vm3927, %v3937, %v3939
  %v3941 = vrot.slane %v3209, 1
  %v3942 = vsel %vm3927, %v3939, %v3941
  %v3943 = vrot.slane %v3210, 1
  %v3944 = vsel %vm3927, %v3941, %v3943
  %v3945 = vrot.slane %v3211, 1
  %v3946 = vsel %vm3927, %v3943, %v3945
  %v3947 = vrot.slane %v3212, 1
  %v3948 = vsel %vm3927, %v3945, %v3947
  %v3949 = vrot.slane %v3213, 1
  %v3950 = vsel %vm3927, %v3947, %v3949
  %v3951 = vrot.slane %v3214, 1
  %v3952 = vsel %vm3927, %v3949, %v3951
  %v3953 = vrot.slane %v3215, 1
  %v3954 = vsel %vm3927, %v3951, %v3953
  %v3955 = vsel %vm3326, %v3930, 0
  %v3957 = vsel %vm3326, %v3932, 0
  %v3959 = vsel %vm3326, %v3934, 0
  %v3961 = vsel %vm3326, %v3936, 0
  %v3963 = vsel %vm3326, %v3938, 0
  %v3965 = vsel %vm3326, %v3940, 0
  %v3967 = vsel %vm3326, %v3942, 0
  %v3969 = vsel %vm3326, %v3944, 0
  %v3971 = vsel %vm3326, %v3946, 0
  %v3973 = vsel %vm3326, %v3948, 0
  %v3975 = vsel %vm3326, %v3950, 0
  %v3977 = vsel %vm3326, %v3952, 0
  %v3979 = vsel %vm3326, %v3954, 0
  %v3981 = vsel %vm3326, %v3953, 0
  %v3984 = vsel %vm2442, %v3259, 0
  %v3987 = vsel %vm2442, %v3260, 0
  %3989 = vmatprep.subr.mxu0 %v3240
  %3990 = vmatpush1.msra.mxu0 %v3239
  %3991 = vmatprep.subr.mxu0 %v3242
  %3992 = vmatpush1.msra.mxu0 %v3241
  %3993 = vmatprep.subr.mxu0 %v3244
  %3994 = vmatpush1.msra.mxu0 %v3243
  %3995 = vmatprep.subr.mxu0 %v3246
  %3996 = vmatpush1.msra.mxu0 %v3245
  %3997 = vmatprep.subr.mxu0 %v3248
  %3998 = vmatpush1.msra.mxu0 %v3247
  %3999 = vmatprep.subr.mxu0 %v3250
  %4000 = vmatpush1.msra.mxu0 %v3249
  %4001 = vmatprep.subr.mxu0 %v3252
  %4002 = vmatpush1.msra.mxu0 %v3251
  %4003 = vmatprep.subr.mxu0 %v3254
  %4004 = vmatpush1.msra.mxu0 %v3253
  %4005 = vmatprep.subr.mxu0 %v3256
  %4006 = vmatpush1.msra.mxu0 %v3255
  %4007 = vmatprep.subr.mxu0 %v3258
  %4008 = vmatpush1.msra.mxu0 %v3257
  %4009 = vmatprep.subr.mxu0 %v3987
  %4010 = vmatpush1.msra.mxu0 %v3984
  %4011 = vmatprep.subr.mxu0 0.0
  %4012 = vmatpush1.msra.mxu0 0.0
  %4013 = vmatprep.subr.mxu0 0.0
  %4014 = vmatpush1.msra.mxu0 0.0
  %4015 = vmatprep.subr.mxu0 0.0
  %4016 = vmatpush1.msra.mxu0 0.0
  %4017 = vmatprep.subr.mxu0 0.0
  %4018 = vmatpush1.msra.mxu0 0.0
  %4019 = vmatprep.subr.mxu0 0.0
  %4020 = vmatpush1.msra.mxu0 0.0
  %4021 = vmatprep.subr.mxu0 0.0
  %4022 = vmatpush1.msra.mxu0 0.0
  %4023 = vmatprep.subr.mxu0 0.0
  %4024 = vmatpush1.msra.mxu0 0.0
  %4025 = vmatprep.subr.mxu0 0.0
  %4026 = vmatpush1.msra.mxu0 0.0
  %4027 = vmatprep.subr.mxu0 0.0
  %4028 = vmatpush1.msra.mxu0 0.0
  %4029 = vmatprep.subr.mxu0 0.0
  %4030 = vmatpush1.msra.mxu0 0.0
  %4031 = vmatprep.subr.mxu0 0.0
  %4032 = vmatpush1.msra.mxu0 0.0
  %4033 = vmatprep.subr.mxu0 0.0
  %4034 = vmatpush1.msra.mxu0 0.0
  %4035 = vmatprep.subr.mxu0 0.0
  %4036 = vmatpush1.msra.mxu0 0.0
  %4037 = vmatprep.subr.mxu0 0.0
  %4038 = vmatpush1.msra.mxu0 0.0
  %4039 = vmatprep.subr.mxu0 0.0
  %4040 = vmatpush1.msra.mxu0 0.0
  %4041 = vmatprep.subr.mxu0 0.0
  %4042 = vmatpush1.msra.mxu0 0.0
  %4043 = vmatprep.subr.mxu0 0.0
  %4044 = vmatpush1.msra.mxu0 0.0
  %4045 = vmatprep.subr.mxu0 0.0
  %4046 = vmatpush1.msra.mxu0 0.0
  %4047 = vmatprep.subr.mxu0 0.0
  %4048 = vmatpush1.msra.mxu0 0.0
  %4049 = vmatprep.subr.mxu0 0.0
  %4050 = vmatpush1.msra.mxu0 0.0
  %4051 = vmatprep.subr.mxu0 0.0
  %4052 = vmatpush1.msra.mxu0 0.0
  %4053 = vmatprep.mubr.f32.mxu0 0.0
  %4054 = vmatmul.mubr.f32.gmra.mrb[0].mxu0 %v3955
  %v4055 = vpop.f32.mrb[0].mxu0
  %v4056 = vadd.f32 %v3845, %v4055
  %v4057 = vpop.f32.mrb[0].mxu0
  %v4058 = vadd.f32 %v3847, %v4057
  %4059 = vmatprep.mubr.f32.mxu0 0.0
  %4060 = vmatmul.mubr.f32.gmra.mrb[0].mxu0 %v3957
  %v4061 = vpop.f32.mrb[0].mxu0
  %v4062 = vadd.f32 %v3851, %v4061
  %v4063 = vpop.f32.mrb[0].mxu0
  %v4064 = vadd.f32 %v3853, %v4063
  %4065 = vmatprep.mubr.f32.mxu0 0.0
  %4066 = vmatmul.mubr.f32.gmra.mrb[0].mxu0 %v3959
  %v4067 = vpop.f32.mrb[0].mxu0
  %v4068 = vadd.f32 %v3857, %v4067
  %v4069 = vpop.f32.mrb[0].mxu0
  %v4070 = vadd.f32 %v3859, %v4069
  %4071 = vmatprep.mubr.f32.mxu0 0.0
  %4072 = vmatmul.mubr.f32.gmra.mrb[0].mxu0 %v3961
  %v4073 = vpop.f32.mrb[0].mxu0
  %v4074 = vadd.f32 %v3863, %v4073
  %v4075 = vpop.f32.mrb[0].mxu0
  %v4076 = vadd.f32 %v3865, %v4075
  %4077 = vmatprep.mubr.f32.mxu0 0.0
  %4078 = vmatmul.mubr.f32.gmra.mrb[0].mxu0 %v3963
  %v4079 = vpop.f32.mrb[0].mxu0
  %v4080 = vadd.f32 %v3869, %v4079
  %v4081 = vpop.f32.mrb[0].mxu0
  %v4082 = vadd.f32 %v3871, %v4081
  %4083 = vmatprep.mubr.f32.mxu0 0.0
  %4084 = vmatmul.mubr.f32.gmra.mrb[0].mxu0 %v3965
  %v4085 = vpop.f32.mrb[0].mxu0
  %v4086 = vadd.f32 %v3875, %v4085
  %v4087 = vpop.f32.mrb[0].mxu0
  %v4088 = vadd.f32 %v3877, %v4087
  %4089 = vmatprep.mubr.f32.mxu0 0.0
  %4090 = vmatmul.mubr.f32.gmra.mrb[0].mxu0 %v3967
  %v4091 = vpop.f32.mrb[0].mxu0
  %v4092 = vadd.f32 %v3881, %v4091
  %v4093 = vpop.f32.mrb[0].mxu0
  %v4094 = vadd.f32 %v3883, %v4093
  %4095 = vmatprep.mubr.f32.mxu0 0.0
  %4096 = vmatmul.mubr.f32.gmra.mrb[0].mxu0 %v3969
  %v4097 = vpop.f32.mrb[0].mxu0
  %v4098 = vadd.f32 %v3887, %v4097
  %v4099 = vpop.f32.mrb[0].mxu0
  %v4100 = vadd.f32 %v3889, %v4099
  %4101 = vmatprep.mubr.f32.mxu0 0.0
  %4102 = vmatmul.mubr.f32.gmra.mrb[0].mxu0 %v3971
  %v4103 = vpop.f32.mrb[0].mxu0
  %v4104 = vadd.f32 %v3893, %v4103
  %v4105 = vpop.f32.mrb[0].mxu0
  %v4106 = vadd.f32 %v3895, %v4105
  %4107 = vmatprep.mubr.f32.mxu0 0.0
  %4108 = vmatmul.mubr.f32.gmra.mrb[0].mxu0 %v3973
  %v4109 = vpop.f32.mrb[0].mxu0
  %v4110 = vadd.f32 %v3899, %v4109
  %v4111 = vpop.f32.mrb[0].mxu0
  %v4112 = vadd.f32 %v3901, %v4111
  %4113 = vmatprep.mubr.f32.mxu0 0.0
  %4114 = vmatmul.mubr.f32.gmra.mrb[0].mxu0 %v3975
  %v4115 = vpop.f32.mrb[0].mxu0
  %v4116 = vadd.f32 %v3905, %v4115
  %v4117 = vpop.f32.mrb[0].mxu0
  %v4118 = vadd.f32 %v3907, %v4117
  %4119 = vmatprep.mubr.f32.mxu0 0.0
  %4120 = vmatmul.mubr.f32.gmra.mrb[0].mxu0 %v3977
  %v4121 = vpop.f32.mrb[0].mxu0
  %v4122 = vadd.f32 %v3911, %v4121
  %v4123 = vpop.f32.mrb[0].mxu0
  %v4124 = vadd.f32 %v3913, %v4123
  %4125 = vmatprep.mubr.f32.mxu0 0.0
  %4126 = vmatmul.mubr.f32.gmra.mrb[0].mxu0 %v3979
  %v4127 = vpop.f32.mrb[0].mxu0
  %v4128 = vadd.f32 %v3917, %v4127
  %v4129 = vpop.f32.mrb[0].mxu0
  %v4130 = vadd.f32 %v3919, %v4129
  %4131 = vmatprep.mubr.f32.mxu0 0.0
  %4132 = vmatmul.mubr.f32.gmra.mrb[0].mxu0 %v3981
  %v4133 = vpop.f32.mrb[0].mxu0
  %v4134 = vadd.f32 %v3923, %v4133
  %v4135 = vpop.f32.mrb[0].mxu0
  %v4136 = vadd.f32 %v3925, %v4135
  %4137 = vdwg.mxu0
  %s4138 = scalar_lea.vmem %s5, 704
  %v4139 = vld [vmem:[%s4138] sm:$0xff]
  %v4140 = vld [vmem:[%s4138 + $0x8] sm:$0xff]
  %v4141 = vld [vmem:[%s4138 + $0x10] sm:$0xff]
  %v4142 = vld [vmem:[%s4138 + $0x18] sm:$0xff]
  %v4143 = vld [vmem:[%s4138 + $0x20] sm:$0xff]
  %v4144 = vld [vmem:[%s4138 + $0x28] sm:$0xff]
  %v4145 = vld [vmem:[%s4138 + $0x30] sm:$0xff]
  %v4146 = vld [vmem:[%s4138 + $0x38] sm:$0xff]
  %v4147 = vld [vmem:[%s4138 + $0x40] sm:$0xff]
  %v4148 = vld [vmem:[%s4138 + $0x48] sm:$0xff]
  %v4149 = vld [vmem:[%s4138 + $0x50] sm:$0xff]
  %v4150 = vld [vmem:[%s4138 + $0x58] sm:$0xff]
  %v4151 = vld [vmem:[%s4138 + $0x60] sm:$0xff]
  %v4152 = vld [vmem:[%s4138 + $0x68] sm:$0xff]
  %v4153 = vld [vmem:[%s4138 + $0x70] sm:$0xff]
  %v4154 = vld [vmem:[%s4138 + $0x78] sm:$0xff]
  %v4155 = vld [vmem:[%s4138 + $0x80] sm:$0xff]
  %v4156 = vld [vmem:[%s4138 + $0x88] sm:$0xff]
  %v4157 = vld [vmem:[%s4138 + $0x90] sm:$0xff]
  %v4158 = vld [vmem:[%s4138 + $0x98] sm:$0xff]
  %v4159 = vld [vmem:[%s4138 + $0xa0] sm:$0xf]
  %v4160 = vld [vmem:[%s4138 + $0xa8] sm:$0xf]
  %v4161 = vrot.slane %v3202, 4
  %v4162 = vrot.slane %v3203, 4
  %v4163 = vsel %vm2442, %v4161, %v4162
  %v4164 = vrot.slane %v3204, 4
  %v4165 = vsel %vm2442, %v4162, %v4164
  %v4166 = vrot.slane %v3205, 4
  %v4167 = vsel %vm2442, %v4164, %v4166
  %v4168 = vrot.slane %v3206, 4
  %v4169 = vsel %vm2442, %v4166, %v4168
  %v4170 = vrot.slane %v3207, 4
  %v4171 = vsel %vm2442, %v4168, %v4170
  %v4172 = vrot.slane %v3208, 4
  %v4173 = vsel %vm2442, %v4170, %v4172
  %v4174 = vrot.slane %v3209, 4
  %v4175 = vsel %vm2442, %v4172, %v4174
  %v4176 = vrot.slane %v3210, 4
  %v4177 = vsel %vm2442, %v4174, %v4176
  %v4178 = vrot.slane %v3211, 4
  %v4179 = vsel %vm2442, %v4176, %v4178
  %v4180 = vrot.slane %v3212, 4
  %v4181 = vsel %vm2442, %v4178, %v4180
  %v4182 = vrot.slane %v3213, 4
  %v4183 = vsel %vm2442, %v4180, %v4182
  %v4184 = vrot.slane %v3214, 4
  %v4185 = vsel %vm2442, %v4182, %v4184
  %v4186 = vrot.slane %v3215, 4
  %v4187 = vsel %vm2442, %v4184, %v4186
  %v4188 = vsel %vm3326, %v4163, 0
  %v4190 = vsel %vm3326, %v4165, 0
  %v4192 = vsel %vm3326, %v4167, 0
  %v4194 = vsel %vm3326, %v4169, 0
  %v4196 = vsel %vm3326, %v4171, 0
  %v4198 = vsel %vm3326, %v4173, 0
  %v4200 = vsel %vm3326, %v4175, 0
  %v4202 = vsel %vm3326, %v4177, 0
  %v4204 = vsel %vm3326, %v4179, 0
  %v4206 = vsel %vm3326, %v4181, 0
  %v4208 = vsel %vm3326, %v4183, 0
  %v4210 = vsel %vm3326, %v4185, 0
  %v4212 = vsel %vm3326, %v4187, 0
  %v4214 = vsel %vm3326, %v4186, 0
  %v4217 = vsel %vm2442, %v4159, 0
  %v4220 = vsel %vm2442, %v4160, 0
  %4222 = vmatprep.subr.mxu0 %v4140
  %4223 = vmatpush1.msra.mxu0 %v4139
  %4224 = vmatprep.subr.mxu0 %v4142
  %4225 = vmatpush1.msra.mxu0 %v4141
  %4226 = vmatprep.subr.mxu0 %v4144
  %4227 = vmatpush1.msra.mxu0 %v4143
  %4228 = vmatprep.subr.mxu0 %v4146
  %4229 = vmatpush1.msra.mxu0 %v4145
  %4230 = vmatprep.subr.mxu0 %v4148
  %4231 = vmatpush1.msra.mxu0 %v4147
  %4232 = vmatprep.subr.mxu0 %v4150
  %4233 = vmatpush1.msra.mxu0 %v4149
  %4234 = vmatprep.subr.mxu0 %v4152
  %4235 = vmatpush1.msra.mxu0 %v4151
  %4236 = vmatprep.subr.mxu0 %v4154
  %4237 = vmatpush1.msra.mxu0 %v4153
  %4238 = vmatprep.subr.mxu0 %v4156
  %4239 = vmatpush1.msra.mxu0 %v4155
  %4240 = vmatprep.subr.mxu0 %v4158
  %4241 = vmatpush1.msra.mxu0 %v4157
  %4242 = vmatprep.subr.mxu0 %v4220
  %4243 = vmatpush1.msra.mxu0 %v4217
  %4244 = vmatprep.subr.mxu0 0.0
  %4245 = vmatpush1.msra.mxu0 0.0
  %4246 = vmatprep.subr.mxu0 0.0
  %4247 = vmatpush1.msra.mxu0 0.0
  %4248 = vmatprep.subr.mxu0 0.0
  %4249 = vmatpush1.msra.mxu0 0.0
  %4250 = vmatprep.subr.mxu0 0.0
  %4251 = vmatpush1.msra.mxu0 0.0
  %4252 = vmatprep.subr.mxu0 0.0
  %4253 = vmatpush1.msra.mxu0 0.0
  %4254 = vmatprep.subr.mxu0 0.0
  %4255 = vmatpush1.msra.mxu0 0.0
  %4256 = vmatprep.subr.mxu0 0.0
  %4257 = vmatpush1.msra.mxu0 0.0
  %4258 = vmatprep.subr.mxu0 0.0
  %4259 = vmatpush1.msra.mxu0 0.0
  %4260 = vmatprep.subr.mxu0 0.0
  %4261 = vmatpush1.msra.mxu0 0.0
  %4262 = vmatprep.subr.mxu0 0.0
  %4263 = vmatpush1.msra.mxu0 0.0
  %4264 = vmatprep.subr.mxu0 0.0
  %4265 = vmatpush1.msra.mxu0 0.0
  %4266 = vmatprep.subr.mxu0 0.0
  %4267 = vmatpush1.msra.mxu0 0.0
  %4268 = vmatprep.subr.mxu0 0.0
  %4269 = vmatpush1.msra.mxu0 0.0
  %4270 = vmatprep.subr.mxu0 0.0
  %4271 = vmatpush1.msra.mxu0 0.0
  %4272 = vmatprep.subr.mxu0 0.0
  %4273 = vmatpush1.msra.mxu0 0.0
  %4274 = vmatprep.subr.mxu0 0.0
  %4275 = vmatpush1.msra.mxu0 0.0
  %4276 = vmatprep.subr.mxu0 0.0
  %4277 = vmatpush1.msra.mxu0 0.0
  %4278 = vmatprep.subr.mxu0 0.0
  %4279 = vmatpush1.msra.mxu0 0.0
  %4280 = vmatprep.subr.mxu0 0.0
  %4281 = vmatpush1.msra.mxu0 0.0
  %4282 = vmatprep.subr.mxu0 0.0
  %4283 = vmatpush1.msra.mxu0 0.0
  %4284 = vmatprep.subr.mxu0 0.0
  %4285 = vmatpush1.msra.mxu0 0.0
  %4286 = vmatprep.mubr.f32.mxu0 0.0
  %4287 = vmatmul.mubr.f32.gmra.mrb[0].mxu0 %v4188
  %v4288 = vpop.f32.mrb[0].mxu0
  %v4289 = vadd.f32 0.0, %v4288
  %v4290 = vpop.f32.mrb[0].mxu0
  %v4291 = vadd.f32 0.0, %v4290
  %4292 = vmatprep.mubr.f32.mxu0 0.0
  %4293 = vmatmul.mubr.f32.gmra.mrb[0].mxu0 %v4190
  %v4294 = vpop.f32.mrb[0].mxu0
  %v4295 = vadd.f32 0.0, %v4294
  %v4296 = vpop.f32.mrb[0].mxu0
  %v4297 = vadd.f32 0.0, %v4296
  %4298 = vmatprep.mubr.f32.mxu0 0.0
  %4299 = vmatmul.mubr.f32.gmra.mrb[0].mxu0 %v4192
  %v4300 = vpop.f32.mrb[0].mxu0
  %v4301 = vadd.f32 0.0, %v4300
  %v4302 = vpop.f32.mrb[0].mxu0
  %v4303 = vadd.f32 0.0, %v4302
  %4304 = vmatprep.mubr.f32.mxu0 0.0
  %4305 = vmatmul.mubr.f32.gmra.mrb[0].mxu0 %v4194
  %v4306 = vpop.f32.mrb[0].mxu0
  %v4307 = vadd.f32 0.0, %v4306
  %v4308 = vpop.f32.mrb[0].mxu0
  %v4309 = vadd.f32 0.0, %v4308
  %4310 = vmatprep.mubr.f32.mxu0 0.0
  %4311 = vmatmul.mubr.f32.gmra.mrb[0].mxu0 %v4196
  %v4312 = vpop.f32.mrb[0].mxu0
  %v4313 = vadd.f32 0.0, %v4312
  %v4314 = vpop.f32.mrb[0].mxu0
  %v4315 = vadd.f32 0.0, %v4314
  %4316 = vmatprep.mubr.f32.mxu0 0.0
  %4317 = vmatmul.mubr.f32.gmra.mrb[0].mxu0 %v4198
  %v4318 = vpop.f32.mrb[0].mxu0
  %v4319 = vadd.f32 0.0, %v4318
  %v4320 = vpop.f32.mrb[0].mxu0
  %v4321 = vadd.f32 0.0, %v4320
  %4322 = vmatprep.mubr.f32.mxu0 0.0
  %4323 = vmatmul.mubr.f32.gmra.mrb[0].mxu0 %v4200
  %v4324 = vpop.f32.mrb[0].mxu0
  %v4325 = vadd.f32 0.0, %v4324
  %v4326 = vpop.f32.mrb[0].mxu0
  %v4327 = vadd.f32 0.0, %v4326
  %4328 = vmatprep.mubr.f32.mxu0 0.0
  %4329 = vmatmul.mubr.f32.gmra.mrb[0].mxu0 %v4202
  %v4330 = vpop.f32.mrb[0].mxu0
  %v4331 = vadd.f32 0.0, %v4330
  %v4332 = vpop.f32.mrb[0].mxu0
  %v4333 = vadd.f32 0.0, %v4332
  %4334 = vmatprep.mubr.f32.mxu0 0.0
  %4335 = vmatmul.mubr.f32.gmra.mrb[0].mxu0 %v4204
  %v4336 = vpop.f32.mrb[0].mxu0
  %v4337 = vadd.f32 0.0, %v4336
  %v4338 = vpop.f32.mrb[0].mxu0
  %v4339 = vadd.f32 0.0, %v4338
  %4340 = vmatprep.mubr.f32.mxu0 0.0
  %4341 = vmatmul.mubr.f32.gmra.mrb[0].mxu0 %v4206
  %v4342 = vpop.f32.mrb[0].mxu0
  %v4343 = vadd.f32 0.0, %v4342
  %v4344 = vpop.f32.mrb[0].mxu0
  %v4345 = vadd.f32 0.0, %v4344
  %4346 = vmatprep.mubr.f32.mxu0 0.0
  %4347 = vmatmul.mubr.f32.gmra.mrb[0].mxu0 %v4208
  %v4348 = vpop.f32.mrb[0].mxu0
  %v4349 = vadd.f32 0.0, %v4348
  %v4350 = vpop.f32.mrb[0].mxu0
  %v4351 = vadd.f32 0.0, %v4350
  %4352 = vmatprep.mubr.f32.mxu0 0.0
  %4353 = vmatmul.mubr.f32.gmra.mrb[0].mxu0 %v4210
  %v4354 = vpop.f32.mrb[0].mxu0
  %v4355 = vadd.f32 0.0, %v4354
  %v4356 = vpop.f32.mrb[0].mxu0
  %v4357 = vadd.f32 0.0, %v4356
  %4358 = vmatprep.mubr.f32.mxu0 0.0
  %4359 = vmatmul.mubr.f32.gmra.mrb[0].mxu0 %v4212
  %v4360 = vpop.f32.mrb[0].mxu0
  %v4361 = vadd.f32 0.0, %v4360
  %v4362 = vpop.f32.mrb[0].mxu0
  %v4363 = vadd.f32 0.0, %v4362
  %4364 = vmatprep.mubr.f32.mxu0 0.0
  %4365 = vmatmul.mubr.f32.gmra.mrb[0].mxu0 %v4214
  %v4366 = vpop.f32.mrb[0].mxu0
  %v4367 = vadd.f32 0.0, %v4366
  %v4368 = vpop.f32.mrb[0].mxu0
  %v4369 = vadd.f32 0.0, %v4368
  %4370 = vdwg.mxu0
  %v4371 = vadd.f32 %v3611, %v4289
  %v4372 = vadd.f32 %v3613, %v4291
  %v4373 = vadd.f32 %v3617, %v4295
  %v4374 = vadd.f32 %v3619, %v4297
  %v4375 = vadd.f32 %v3623, %v4301
  %v4376 = vadd.f32 %v3625, %v4303
  %v4377 = vadd.f32 %v3629, %v4307
  %v4378 = vadd.f32 %v3631, %v4309
  %v4379 = vadd.f32 %v3635, %v4313
  %v4380 = vadd.f32 %v3637, %v4315
  %v4381 = vadd.f32 %v3641, %v4319
  %v4382 = vadd.f32 %v3643, %v4321
  %v4383 = vadd.f32 %v3647, %v4325
  %v4384 = vadd.f32 %v3649, %v4327
  %v4385 = vadd.f32 %v3653, %v4331
  %v4386 = vadd.f32 %v3655, %v4333
  %v4387 = vadd.f32 %v3659, %v4337
  %v4388 = vadd.f32 %v3661, %v4339
  %v4389 = vadd.f32 %v3665, %v4343
  %v4390 = vadd.f32 %v3667, %v4345
  %v4391 = vadd.f32 %v3671, %v4349
  %v4392 = vadd.f32 %v3673, %v4351
  %v4393 = vadd.f32 %v3677, %v4355
  %v4394 = vadd.f32 %v3679, %v4357
  %v4395 = vadd.f32 %v3683, %v4361
  %v4396 = vadd.f32 %v3685, %v4363
  %v4397 = vadd.f32 %v3689, %v4367
  %v4398 = vadd.f32 %v3691, %v4369
  %v4399 = vadd.f32 %v4371, %v4056
  %v4400 = vadd.f32 %v4372, %v4058
  %v4401 = vadd.f32 %v4373, %v4062
  %v4402 = vadd.f32 %v4374, %v4064
  %v4403 = vadd.f32 %v4375, %v4068
  %v4404 = vadd.f32 %v4376, %v4070
  %v4405 = vadd.f32 %v4377, %v4074
  %v4406 = vadd.f32 %v4378, %v4076
  %v4407 = vadd.f32 %v4379, %v4080
  %v4408 = vadd.f32 %v4380, %v4082
  %v4409 = vadd.f32 %v4381, %v4086
  %v4410 = vadd.f32 %v4382, %v4088
  %v4411 = vadd.f32 %v4383, %v4092
  %v4412 = vadd.f32 %v4384, %v4094
  %v4413 = vadd.f32 %v4385, %v4098
  %v4414 = vadd.f32 %v4386, %v4100
  %v4415 = vadd.f32 %v4387, %v4104
  %v4416 = vadd.f32 %v4388, %v4106
  %v4417 = vadd.f32 %v4389, %v4110
  %v4418 = vadd.f32 %v4390, %v4112
  %v4419 = vadd.f32 %v4391, %v4116
  %v4420 = vadd.f32 %v4392, %v4118
  %v4421 = vadd.f32 %v4393, %v4122
  %v4422 = vadd.f32 %v4394, %v4124
  %v4423 = vadd.f32 %v4395, %v4128
  %v4424 = vadd.f32 %v4396, %v4130
  %v4425 = vadd.f32 %v4397, %v4134
  %v4426 = vadd.f32 %v4398, %v4136
  %v4427 = vld [vmem:[%s6] sm:$0x3]
  %v4429 = vlaneseq
  %v4430 = vshrl.u32 %v4429, 7
  %v4431 = vsub.s32 0, %v4430
  %v4432 = vrot.slane %v4427, %v4431
  %v4433 = vlaneseq
  %v4434 = vshrl.u32 %v4433, 7
  %v4435 = vsub.s32 1, %v4434
  %v4436 = vrot.slane %v4427, %v4435
  %v4439 = vadd.f32 %v4399, %v4432
  %v4440 = vadd.f32 %v4400, %v4436
  %v4441 = vadd.f32 %v4401, %v4432
  %v4442 = vadd.f32 %v4402, %v4436
  %v4443 = vadd.f32 %v4403, %v4432
  %v4444 = vadd.f32 %v4404, %v4436
  %v4445 = vadd.f32 %v4405, %v4432
  %v4446 = vadd.f32 %v4406, %v4436
  %v4447 = vadd.f32 %v4407, %v4432
  %v4448 = vadd.f32 %v4408, %v4436
  %v4449 = vadd.f32 %v4409, %v4432
  %v4450 = vadd.f32 %v4410, %v4436
  %v4451 = vadd.f32 %v4411, %v4432
  %v4452 = vadd.f32 %v4412, %v4436
  %v4453 = vadd.f32 %v4413, %v4432
  %v4454 = vadd.f32 %v4414, %v4436
  %v4455 = vadd.f32 %v4415, %v4432
  %v4456 = vadd.f32 %v4416, %v4436
  %v4457 = vadd.f32 %v4417, %v4432
  %v4458 = vadd.f32 %v4418, %v4436
  %v4459 = vadd.f32 %v4419, %v4432
  %v4460 = vadd.f32 %v4420, %v4436
  %v4461 = vadd.f32 %v4421, %v4432
  %v4462 = vadd.f32 %v4422, %v4436
  %v4463 = vadd.f32 %v4423, %v4432
  %v4464 = vadd.f32 %v4424, %v4436
  %v4465 = vadd.f32 %v4425, %v4432
  %v4466 = vadd.f32 %v4426, %v4436
  %v4467 = vmax.f32 %v4439, 0.0
  %v4468 = vmax.f32 %v4440, 0.0
  %v4469 = vmax.f32 %v4441, 0.0
  %v4470 = vmax.f32 %v4442, 0.0
  %v4471 = vmax.f32 %v4443, 0.0
  %v4472 = vmax.f32 %v4444, 0.0
  %v4473 = vmax.f32 %v4445, 0.0
  %v4474 = vmax.f32 %v4446, 0.0
  %v4475 = vmax.f32 %v4447, 0.0
  %v4476 = vmax.f32 %v4448, 0.0
  %v4477 = vmax.f32 %v4449, 0.0
  %v4478 = vmax.f32 %v4450, 0.0
  %v4479 = vmax.f32 %v4451, 0.0
  %v4480 = vmax.f32 %v4452, 0.0
  %v4481 = vmax.f32 %v4453, 0.0
  %v4482 = vmax.f32 %v4454, 0.0
  %v4483 = vmax.f32 %v4455, 0.0
  %v4484 = vmax.f32 %v4456, 0.0
  %v4485 = vmax.f32 %v4457, 0.0
  %v4486 = vmax.f32 %v4458, 0.0
  %v4487 = vmax.f32 %v4459, 0.0
  %v4488 = vmax.f32 %v4460, 0.0
  %v4489 = vmax.f32 %v4461, 0.0
  %v4490 = vmax.f32 %v4462, 0.0
  %v4491 = vmax.f32 %v4463, 0.0
  %v4492 = vmax.f32 %v4464, 0.0
  %v4493 = vmax.f32 %v4465, 0.0
  %v4494 = vmax.f32 %v4466, 0.0
  %v4495 = vld [vmem:[%s7] sm:$0xff]
  %v4496 = vld [vmem:[%s7 + $0x8] sm:$0xff]
  %v4497 = vld [vmem:[%s7 + $0x10] sm:$0xff]
  %v4498 = vld [vmem:[%s7 + $0x18] sm:$0xff]
  %v4499 = vld [vmem:[%s7 + $0x20] sm:$0xff]
  %vm4500 = vcmask 883712
  %v4502 = vsel %vm4500, %v4495, 0
  %v4505 = vsel %vm4500, %v4496, 0
  %v4508 = vsel %vm4500, %v4497, 0
  %v4511 = vsel %vm4500, %v4498, 0
  %v4514 = vsel %vm4500, %v4499, 0
  %v4517 = vsel %vm2442, %v4493, 0
  %v4520 = vsel %vm2442, %v4494, 0
  %4522 = vmatprep.subr.mxu0 %v4468
  %4523 = vmatpush1.msra.mxu0 %v4467
  %4524 = vmatprep.subr.mxu0 %v4470
  %4525 = vmatpush1.msra.mxu0 %v4469
  %4526 = vmatprep.subr.mxu0 %v4472
  %4527 = vmatpush1.msra.mxu0 %v4471
  %4528 = vmatprep.subr.mxu0 %v4474
  %4529 = vmatpush1.msra.mxu0 %v4473
  %4530 = vmatprep.subr.mxu0 %v4476
  %4531 = vmatpush1.msra.mxu0 %v4475
  %4532 = vmatprep.subr.mxu0 %v4478
  %4533 = vmatpush1.msra.mxu0 %v4477
  %4534 = vmatprep.subr.mxu0 %v4480
  %4535 = vmatpush1.msra.mxu0 %v4479
  %4536 = vmatprep.subr.mxu0 %v4482
  %4537 = vmatpush1.msra.mxu0 %v4481
  %4538 = vmatprep.subr.mxu0 %v4484
  %4539 = vmatpush1.msra.mxu0 %v4483
  %4540 = vmatprep.subr.mxu0 %v4486
  %4541 = vmatpush1.msra.mxu0 %v4485
  %4542 = vmatprep.subr.mxu0 %v4488
  %4543 = vmatpush1.msra.mxu0 %v4487
  %4544 = vmatprep.subr.mxu0 %v4490
  %4545 = vmatpush1.msra.mxu0 %v4489
  %4546 = vmatprep.subr.mxu0 %v4492
  %4547 = vmatpush1.msra.mxu0 %v4491
  %4548 = vmatprep.subr.mxu0 %v4520
  %4549 = vmatpush1.msra.mxu0 %v4517
  %4550 = vmatprep.subr.mxu0 0.0
  %4551 = vmatpush1.msra.mxu0 0.0
  %4552 = vmatprep.subr.mxu0 0.0
  %4553 = vmatpush1.msra.mxu0 0.0
  %4554 = vmatprep.subr.mxu0 0.0
  %4555 = vmatpush1.msra.mxu0 0.0
  %4556 = vmatprep.subr.mxu0 0.0
  %4557 = vmatpush1.msra.mxu0 0.0
  %4558 = vmatprep.subr.mxu0 0.0
  %4559 = vmatpush1.msra.mxu0 0.0
  %4560 = vmatprep.subr.mxu0 0.0
  %4561 = vmatpush1.msra.mxu0 0.0
  %4562 = vmatprep.subr.mxu0 0.0
  %4563 = vmatpush1.msra.mxu0 0.0
  %4564 = vmatprep.subr.mxu0 0.0
  %4565 = vmatpush1.msra.mxu0 0.0
  %4566 = vmatprep.subr.mxu0 0.0
  %4567 = vmatpush1.msra.mxu0 0.0
  %4568 = vmatprep.subr.mxu0 0.0
  %4569 = vmatpush1.msra.mxu0 0.0
  %4570 = vmatprep.subr.mxu0 0.0
  %4571 = vmatpush1.msra.mxu0 0.0
  %4572 = vmatprep.subr.mxu0 0.0
  %4573 = vmatpush1.msra.mxu0 0.0
  %4574 = vmatprep.subr.mxu0 0.0
  %4575 = vmatpush1.msra.mxu0 0.0
  %4576 = vmatprep.subr.mxu0 0.0
  %4577 = vmatpush1.msra.mxu0 0.0
  %4578 = vmatprep.subr.mxu0 0.0
  %4579 = vmatpush1.msra.mxu0 0.0
  %4580 = vmatprep.subr.mxu0 0.0
  %4581 = vmatpush1.msra.mxu0 0.0
  %4582 = vmatprep.subr.mxu0 0.0
  %4583 = vmatpush1.msra.mxu0 0.0
  %4584 = vmatprep.subr.mxu0 0.0
  %4585 = vmatpush1.msra.mxu0 0.0
  %4586 = vmatprep.mubr.f32.mxu0 0.0
  %4587 = vmatmul.mubr.f32.gmra.mrb[0].mxu0 %v4502
  %v4588 = vpop.f32.mrb[0].mxu0
  %v4589 = vadd.f32 0.0, %v4588
  %v4590 = vpop.f32.mrb[0].mxu0
  %v4591 = vadd.f32 0.0, %v4590
  %4592 = vmatprep.mubr.f32.mxu0 0.0
  %4593 = vmatmul.mubr.f32.gmra.mrb[0].mxu0 %v4505
  %v4594 = vpop.f32.mrb[0].mxu0
  %v4595 = vadd.f32 0.0, %v4594
  %v4596 = vpop.f32.mrb[0].mxu0
  %v4597 = vadd.f32 0.0, %v4596
  %4598 = vmatprep.mubr.f32.mxu0 0.0
  %4599 = vmatmul.mubr.f32.gmra.mrb[0].mxu0 %v4508
  %v4600 = vpop.f32.mrb[0].mxu0
  %v4601 = vadd.f32 0.0, %v4600
  %v4602 = vpop.f32.mrb[0].mxu0
  %v4603 = vadd.f32 0.0, %v4602
  %4604 = vmatprep.mubr.f32.mxu0 0.0
  %4605 = vmatmul.mubr.f32.gmra.mrb[0].mxu0 %v4511
  %v4606 = vpop.f32.mrb[0].mxu0
  %v4607 = vadd.f32 0.0, %v4606
  %v4608 = vpop.f32.mrb[0].mxu0
  %v4609 = vadd.f32 0.0, %v4608
  %4610 = vmatprep.mubr.f32.mxu0 0.0
  %4611 = vmatmul.mubr.f32.gmra.mrb[0].mxu0 %v4514
  %v4612 = vpop.f32.mrb[0].mxu0
  %v4613 = vadd.f32 0.0, %v4612
  %v4614 = vpop.f32.mrb[0].mxu0
  %v4615 = vadd.f32 0.0, %v4614
  %4616 = vdwg.mxu0
  %s4617 = scalar_lea.vmem %s7, 40
  %v4618 = vld [vmem:[%s4617] sm:$0xff]
  %v4619 = vld [vmem:[%s4617 + $0x8] sm:$0xff]
  %v4620 = vld [vmem:[%s4617 + $0x10] sm:$0xff]
  %v4621 = vld [vmem:[%s4617 + $0x18] sm:$0xff]
  %v4622 = vld [vmem:[%s4617 + $0x20] sm:$0xff]
  %v4624 = vsel %vm4500, %v4618, 0
  %v4627 = vsel %vm4500, %v4619, 0
  %v4630 = vsel %vm4500, %v4620, 0
  %v4633 = vsel %vm4500, %v4621, 0
  %v4636 = vsel %vm4500, %v4622, 0
  %4638 = vmatprep.subr.mxu0 %v4468
  %4639 = vmatpush1.msra.mxu0 %v4467
  %4640 = vmatprep.subr.mxu0 %v4470
  %4641 = vmatpush1.msra.mxu0 %v4469
  %4642 = vmatprep.subr.mxu0 %v4472
  %4643 = vmatpush1.msra.mxu0 %v4471
  %4644 = vmatprep.subr.mxu0 %v4474
  %4645 = vmatpush1.msra.mxu0 %v4473
  %4646 = vmatprep.subr.mxu0 %v4476
  %4647 = vmatpush1.msra.mxu0 %v4475
  %4648 = vmatprep.subr.mxu0 %v4478
  %4649 = vmatpush1.msra.mxu0 %v4477
  %4650 = vmatprep.subr.mxu0 %v4480
  %4651 = vmatpush1.msra.mxu0 %v4479
  %4652 = vmatprep.subr.mxu0 %v4482
  %4653 = vmatpush1.msra.mxu0 %v4481
  %4654 = vmatprep.subr.mxu0 %v4484
  %4655 = vmatpush1.msra.mxu0 %v4483
  %4656 = vmatprep.subr.mxu0 %v4486
  %4657 = vmatpush1.msra.mxu0 %v4485
  %4658 = vmatprep.subr.mxu0 %v4488
  %4659 = vmatpush1.msra.mxu0 %v4487
  %4660 = vmatprep.subr.mxu0 %v4490
  %4661 = vmatpush1.msra.mxu0 %v4489
  %4662 = vmatprep.subr.mxu0 %v4492
  %4663 = vmatpush1.msra.mxu0 %v4491
  %4664 = vmatprep.subr.mxu0 %v4520
  %4665 = vmatpush1.msra.mxu0 %v4517
  %4666 = vmatprep.subr.mxu0 0.0
  %4667 = vmatpush1.msra.mxu0 0.0
  %4668 = vmatprep.subr.mxu0 0.0
  %4669 = vmatpush1.msra.mxu0 0.0
  %4670 = vmatprep.subr.mxu0 0.0
  %4671 = vmatpush1.msra.mxu0 0.0
  %4672 = vmatprep.subr.mxu0 0.0
  %4673 = vmatpush1.msra.mxu0 0.0
  %4674 = vmatprep.subr.mxu0 0.0
  %4675 = vmatpush1.msra.mxu0 0.0
  %4676 = vmatprep.subr.mxu0 0.0
  %4677 = vmatpush1.msra.mxu0 0.0
  %4678 = vmatprep.subr.mxu0 0.0
  %4679 = vmatpush1.msra.mxu0 0.0
  %4680 = vmatprep.subr.mxu0 0.0
  %4681 = vmatpush1.msra.mxu0 0.0
  %4682 = vmatprep.subr.mxu0 0.0
  %4683 = vmatpush1.msra.mxu0 0.0
  %4684 = vmatprep.subr.mxu0 0.0
  %4685 = vmatpush1.msra.mxu0 0.0
  %4686 = vmatprep.subr.mxu0 0.0
  %4687 = vmatpush1.msra.mxu0 0.0
  %4688 = vmatprep.subr.mxu0 0.0
  %4689 = vmatpush1.msra.mxu0 0.0
  %4690 = vmatprep.subr.mxu0 0.0
  %4691 = vmatpush1.msra.mxu0 0.0
  %4692 = vmatprep.subr.mxu0 0.0
  %4693 = vmatpush1.msra.mxu0 0.0
  %4694 = vmatprep.subr.mxu0 0.0
  %4695 = vmatpush1.msra.mxu0 0.0
  %4696 = vmatprep.subr.mxu0 0.0
  %4697 = vmatpush1.msra.mxu0 0.0
  %4698 = vmatprep.subr.mxu0 0.0
  %4699 = vmatpush1.msra.mxu0 0.0
  %4700 = vmatprep.subr.mxu0 0.0
  %4701 = vmatpush1.msra.mxu0 0.0
  %4702 = vmatprep.mubr.f32.mxu0 0.0
  %4703 = vmatmul.mubr.f32.gmra.mrb[0].mxu0 %v4624
  %v4704 = vpop.f32.mrb[0].mxu0
  %v4705 = vadd.f32 0.0, %v4704
  %v4706 = vpop.f32.mrb[0].mxu0
  %v4707 = vadd.f32 0.0, %v4706
  %4708 = vmatprep.mubr.f32.mxu0 0.0
  %4709 = vmatmul.mubr.f32.gmra.mrb[0].mxu0 %v4627
  %v4710 = vpop.f32.mrb[0].mxu0
  %v4711 = vadd.f32 0.0, %v4710
  %v4712 = vpop.f32.mrb[0].mxu0
  %v4713 = vadd.f32 0.0, %v4712
  %4714 = vmatprep.mubr.f32.mxu0 0.0
  %4715 = vmatmul.mubr.f32.gmra.mrb[0].mxu0 %v4630
  %v4716 = vpop.f32.mrb[0].mxu0
  %v4717 = vadd.f32 0.0, %v4716
  %v4718 = vpop.f32.mrb[0].mxu0
  %v4719 = vadd.f32 0.0, %v4718
  %4720 = vmatprep.mubr.f32.mxu0 0.0
  %4721 = vmatmul.mubr.f32.gmra.mrb[0].mxu0 %v4633
  %v4722 = vpop.f32.mrb[0].mxu0
  %v4723 = vadd.f32 0.0, %v4722
  %v4724 = vpop.f32.mrb[0].mxu0
  %v4725 = vadd.f32 0.0, %v4724
  %4726 = vmatprep.mubr.f32.mxu0 0.0
  %4727 = vmatmul.mubr.f32.gmra.mrb[0].mxu0 %v4636
  %v4728 = vpop.f32.mrb[0].mxu0
  %v4729 = vadd.f32 0.0, %v4728
  %v4730 = vpop.f32.mrb[0].mxu0
  %v4731 = vadd.f32 0.0, %v4730
  %4732 = vdwg.mxu0
  %v4733 = vmax.f32 %v4589, %v4705
  %v4734 = vmax.f32 %v4591, %v4707
  %v4735 = vmax.f32 %v4595, %v4711
  %v4736 = vmax.f32 %v4597, %v4713
  %v4737 = vmax.f32 %v4601, %v4717
  %v4738 = vmax.f32 %v4603, %v4719
  %v4739 = vmax.f32 %v4607, %v4723
  %v4740 = vmax.f32 %v4609, %v4725
  %v4741 = vmax.f32 %v4613, %v4729
  %v4742 = vmax.f32 %v4615, %v4731
  %v4743 = vld [vmem:[%s8] sm:$0xff]
  %v4744 = vld [vmem:[%s8 + $0x8] sm:$0xff]
  %v4745 = vld [vmem:[%s8 + $0x10] sm:$0xff]
  %v4746 = vld [vmem:[%s8 + $0x18] sm:$0xff]
  %v4747 = vld [vmem:[%s8 + $0x20] sm:$0xff]
  %v4748 = vld [vmem:[%s8 + $0x28] sm:$0xff]
  %v4749 = vld [vmem:[%s8 + $0x30] sm:$0xff]
  %v4750 = vld [vmem:[%s8 + $0x38] sm:$0xff]
  %v4751 = vld [vmem:[%s8 + $0x40] sm:$0xff]
  %v4752 = vld [vmem:[%s8 + $0x48] sm:$0xff]
  %v4753 = vld [vmem:[%s8 + $0x50] sm:$0xff]
  %v4754 = vld [vmem:[%s8 + $0x58] sm:$0xff]
  %v4755 = vld [vmem:[%s8 + $0x60] sm:$0xff]
  %v4756 = vld [vmem:[%s8 + $0x68] sm:$0xff]
  %v4757 = vld [vmem:[%s8 + $0x70] sm:$0xff]
  %v4758 = vld [vmem:[%s8 + $0x78] sm:$0xff]
  %v4759 = vld [vmem:[%s8 + $0x80] sm:$0xff]
  %v4760 = vld [vmem:[%s8 + $0x88] sm:$0xff]
  %v4761 = vld [vmem:[%s8 + $0x90] sm:$0xff]
  %v4762 = vld [vmem:[%s8 + $0x98] sm:$0xff]
  %vm4763 = vcmask 261120
  %v4765 = vsel %vm4763, %v4734, 0
  %v4768 = vsel %vm4763, %v4736, 0
  %v4771 = vsel %vm4763, %v4738, 0
  %v4774 = vsel %vm4763, %v4740, 0
  %v4777 = vsel %vm4763, %v4742, 0
  %4779 = vmatprep.subr.mxu0 0.0
  %4780 = vmatpush1.msra.mxu0 %v4743
  %4781 = vmatprep.subr.mxu0 0.0
  %4782 = vmatpush1.msra.mxu0 %v4744
  %4783 = vmatprep.subr.mxu0 0.0
  %4784 = vmatpush1.msra.mxu0 %v4745
  %4785 = vmatprep.subr.mxu0 0.0
  %4786 = vmatpush1.msra.mxu0 %v4746
  %4787 = vmatprep.subr.mxu0 0.0
  %4788 = vmatpush1.msra.mxu0 %v4747
  %4789 = vmatprep.subr.mxu0 0.0
  %4790 = vmatpush1.msra.mxu0 %v4748
  %4791 = vmatprep.subr.mxu0 0.0
  %4792 = vmatpush1.msra.mxu0 %v4749
  %4793 = vmatprep.subr.mxu0 0.0
  %4794 = vmatpush1.msra.mxu0 %v4750
  %4795 = vmatprep.subr.mxu0 0.0
  %4796 = vmatpush1.msra.mxu0 %v4751
  %4797 = vmatprep.subr.mxu0 0.0
  %4798 = vmatpush1.msra.mxu0 %v4752
  %4799 = vmatprep.subr.mxu0 0.0
  %4800 = vmatpush1.msra.mxu0 %v4753
  %4801 = vmatprep.subr.mxu0 0.0
  %4802 = vmatpush1.msra.mxu0 %v4754
  %4803 = vmatprep.subr.mxu0 0.0
  %4804 = vmatpush1.msra.mxu0 %v4755
  %4805 = vmatprep.subr.mxu0 0.0
  %4806 = vmatpush1.msra.mxu0 %v4756
  %4807 = vmatprep.subr.mxu0 0.0
  %4808 = vmatpush1.msra.mxu0 %v4757
  %4809 = vmatprep.subr.mxu0 0.0
  %4810 = vmatpush1.msra.mxu0 %v4758
  %4811 = vmatprep.subr.mxu0 0.0
  %4812 = vmatpush1.msra.mxu0 %v4759
  %4813 = vmatprep.subr.mxu0 0.0
  %4814 = vmatpush1.msra.mxu0 %v4760
  %4815 = vmatprep.subr.mxu0 0.0
  %4816 = vmatpush1.msra.mxu0 %v4761
  %4817 = vmatprep.subr.mxu0 0.0
  %4818 = vmatpush1.msra.mxu0 %v4762
  %4819 = vmatprep.subr.mxu0 0.0
  %4820 = vmatpush1.msra.mxu0 0.0
  %4821 = vmatprep.subr.mxu0 0.0
  %4822 = vmatpush1.msra.mxu0 0.0
  %4823 = vmatprep.subr.mxu0 0.0
  %4824 = vmatpush1.msra.mxu0 0.0
  %4825 = vmatprep.subr.mxu0 0.0
  %4826 = vmatpush1.msra.mxu0 0.0
  %4827 = vmatprep.subr.mxu0 0.0
  %4828 = vmatpush1.msra.mxu0 0.0
  %4829 = vmatprep.subr.mxu0 0.0
  %4830 = vmatpush1.msra.mxu0 0.0
  %4831 = vmatprep.subr.mxu0 0.0
  %4832 = vmatpush1.msra.mxu0 0.0
  %4833 = vmatprep.subr.mxu0 0.0
  %4834 = vmatpush1.msra.mxu0 0.0
  %4835 = vmatprep.subr.mxu0 0.0
  %4836 = vmatpush1.msra.mxu0 0.0
  %4837 = vmatprep.subr.mxu0 0.0
  %4838 = vmatpush1.msra.mxu0 0.0
  %4839 = vmatprep.subr.mxu0 0.0
  %4840 = vmatpush1.msra.mxu0 0.0
  %4841 = vmatprep.subr.mxu0 0.0
  %4842 = vmatpush1.msra.mxu0 0.0
  %4843 = vmatprep.mubr.f32.mxu0 %v4765
  %4844 = vmatmul.mubr.f32.gmra.mrb[0].mxu0 %v4733
  %v4845 = vpop.f32.mrb[0].mxu0
  %v4846 = vadd.f32 0.0, %v4845
  %v4847 = vpop.f32.mrb[0].mxu0
  %4848 = vmatprep.mubr.f32.mxu0 %v4768
  %4849 = vmatmul.mubr.f32.gmra.mrb[0].mxu0 %v4735
  %v4850 = vpop.f32.mrb[0].mxu0
  %v4851 = vadd.f32 0.0, %v4850
  %v4852 = vpop.f32.mrb[0].mxu0
  %4853 = vmatprep.mubr.f32.mxu0 %v4771
  %4854 = vmatmul.mubr.f32.gmra.mrb[0].mxu0 %v4737
  %v4855 = vpop.f32.mrb[0].mxu0
  %v4856 = vadd.f32 0.0, %v4855
  %v4857 = vpop.f32.mrb[0].mxu0
  %4858 = vmatprep.mubr.f32.mxu0 %v4774
  %4859 = vmatmul.mubr.f32.gmra.mrb[0].mxu0 %v4739
  %v4860 = vpop.f32.mrb[0].mxu0
  %v4861 = vadd.f32 0.0, %v4860
  %v4862 = vpop.f32.mrb[0].mxu0
  %4863 = vmatprep.mubr.f32.mxu0 %v4777
  %4864 = vmatmul.mubr.f32.gmra.mrb[0].mxu0 %v4741
  %v4865 = vpop.f32.mrb[0].mxu0
  %v4866 = vadd.f32 0.0, %v4865
  %v4867 = vpop.f32.mrb[0].mxu0
  %4868 = vdwg.mxu0
  %s4869 = scalar_lea.vmem %s8, 160
  %v4870 = vld [vmem:[%s4869] sm:$0xff]
  %v4871 = vld [vmem:[%s4869 + $0x8] sm:$0xff]
  %v4872 = vld [vmem:[%s4869 + $0x10] sm:$0xff]
  %v4873 = vld [vmem:[%s4869 + $0x18] sm:$0xff]
  %v4874 = vld [vmem:[%s4869 + $0x20] sm:$0xff]
  %v4875 = vld [vmem:[%s4869 + $0x28] sm:$0xff]
  %v4876 = vld [vmem:[%s4869 + $0x30] sm:$0xff]
  %v4877 = vld [vmem:[%s4869 + $0x38] sm:$0xff]
  %v4878 = vld [vmem:[%s4869 + $0x40] sm:$0xff]
  %v4879 = vld [vmem:[%s4869 + $0x48] sm:$0xff]
  %v4880 = vld [vmem:[%s4869 + $0x50] sm:$0xff]
  %v4881 = vld [vmem:[%s4869 + $0x58] sm:$0xff]
  %v4882 = vld [vmem:[%s4869 + $0x60] sm:$0xff]
  %v4883 = vld [vmem:[%s4869 + $0x68] sm:$0xff]
  %v4884 = vld [vmem:[%s4869 + $0x70] sm:$0xff]
  %v4885 = vld [vmem:[%s4869 + $0x78] sm:$0xff]
  %v4886 = vld [vmem:[%s4869 + $0x80] sm:$0xff]
  %v4887 = vld [vmem:[%s4869 + $0x88] sm:$0xff]
  %v4888 = vld [vmem:[%s4869 + $0x90] sm:$0xff]
  %v4889 = vld [vmem:[%s4869 + $0x98] sm:$0xff]
  %4890 = vmatprep.subr.mxu0 0.0
  %4891 = vmatpush1.msra.mxu0 %v4870
  %4892 = vmatprep.subr.mxu0 0.0
  %4893 = vmatpush1.msra.mxu0 %v4871
  %4894 = vmatprep.subr.mxu0 0.0
  %4895 = vmatpush1.msra.mxu0 %v4872
  %4896 = vmatprep.subr.mxu0 0.0
  %4897 = vmatpush1.msra.mxu0 %v4873
  %4898 = vmatprep.subr.mxu0 0.0
  %4899 = vmatpush1.msra.mxu0 %v4874
  %4900 = vmatprep.subr.mxu0 0.0
  %4901 = vmatpush1.msra.mxu0 %v4875
  %4902 = vmatprep.subr.mxu0 0.0
  %4903 = vmatpush1.msra.mxu0 %v4876
  %4904 = vmatprep.subr.mxu0 0.0
  %4905 = vmatpush1.msra.mxu0 %v4877
  %4906 = vmatprep.subr.mxu0 0.0
  %4907 = vmatpush1.msra.mxu0 %v4878
  %4908 = vmatprep.subr.mxu0 0.0
  %4909 = vmatpush1.msra.mxu0 %v4879
  %4910 = vmatprep.subr.mxu0 0.0
  %4911 = vmatpush1.msra.mxu0 %v4880
  %4912 = vmatprep.subr.mxu0 0.0
  %4913 = vmatpush1.msra.mxu0 %v4881
  %4914 = vmatprep.subr.mxu0 0.0
  %4915 = vmatpush1.msra.mxu0 %v4882
  %4916 = vmatprep.subr.mxu0 0.0
  %4917 = vmatpush1.msra.mxu0 %v4883
  %4918 = vmatprep.subr.mxu0 0.0
  %4919 = vmatpush1.msra.mxu0 %v4884
  %4920 = vmatprep.subr.mxu0 0.0
  %4921 = vmatpush1.msra.mxu0 %v4885
  %4922 = vmatprep.subr.mxu0 0.0
  %4923 = vmatpush1.msra.mxu0 %v4886
  %4924 = vmatprep.subr.mxu0 0.0
  %4925 = vmatpush1.msra.mxu0 %v4887
  %4926 = vmatprep.subr.mxu0 0.0
  %4927 = vmatpush1.msra.mxu0 %v4888
  %4928 = vmatprep.subr.mxu0 0.0
  %4929 = vmatpush1.msra.mxu0 %v4889
  %4930 = vmatprep.subr.mxu0 0.0
  %4931 = vmatpush1.msra.mxu0 0.0
  %4932 = vmatprep.subr.mxu0 0.0
  %4933 = vmatpush1.msra.mxu0 0.0
  %4934 = vmatprep.subr.mxu0 0.0
  %4935 = vmatpush1.msra.mxu0 0.0
  %4936 = vmatprep.subr.mxu0 0.0
  %4937 = vmatpush1.msra.mxu0 0.0
  %4938 = vmatprep.subr.mxu0 0.0
  %4939 = vmatpush1.msra.mxu0 0.0
  %4940 = vmatprep.subr.mxu0 0.0
  %4941 = vmatpush1.msra.mxu0 0.0
  %4942 = vmatprep.subr.mxu0 0.0
  %4943 = vmatpush1.msra.mxu0 0.0
  %4944 = vmatprep.subr.mxu0 0.0
  %4945 = vmatpush1.msra.mxu0 0.0
  %4946 = vmatprep.subr.mxu0 0.0
  %4947 = vmatpush1.msra.mxu0 0.0
  %4948 = vmatprep.subr.mxu0 0.0
  %4949 = vmatpush1.msra.mxu0 0.0
  %4950 = vmatprep.subr.mxu0 0.0
  %4951 = vmatpush1.msra.mxu0 0.0
  %4952 = vmatprep.subr.mxu0 0.0
  %4953 = vmatpush1.msra.mxu0 0.0
  %4954 = vmatprep.mubr.f32.mxu0 %v4765
  %4955 = vmatmul.mubr.f32.gmra.mrb[0].mxu0 %v4733
  %v4956 = vpop.f32.mrb[0].mxu0
  %v4957 = vadd.f32 0.0, %v4956
  %v4958 = vpop.f32.mrb[0].mxu0
  %4959 = vmatprep.mubr.f32.mxu0 %v4768
  %4960 = vmatmul.mubr.f32.gmra.mrb[0].mxu0 %v4735
  %v4961 = vpop.f32.mrb[0].mxu0
  %v4962 = vadd.f32 0.0, %v4961
  %v4963 = vpop.f32.mrb[0].mxu0
  %4964 = vmatprep.mubr.f32.mxu0 %v4771
  %4965 = vmatmul.mubr.f32.gmra.mrb[0].mxu0 %v4737
  %v4966 = vpop.f32.mrb[0].mxu0
  %v4967 = vadd.f32 0.0, %v4966
  %v4968 = vpop.f32.mrb[0].mxu0
  %4969 = vmatprep.mubr.f32.mxu0 %v4774
  %4970 = vmatmul.mubr.f32.gmra.mrb[0].mxu0 %v4739
  %v4971 = vpop.f32.mrb[0].mxu0
  %v4972 = vadd.f32 0.0, %v4971
  %v4973 = vpop.f32.mrb[0].mxu0
  %4974 = vmatprep.mubr.f32.mxu0 %v4777
  %4975 = vmatmul.mubr.f32.gmra.mrb[0].mxu0 %v4741
  %v4976 = vpop.f32.mrb[0].mxu0
  %v4977 = vadd.f32 0.0, %v4976
  %v4978 = vpop.f32.mrb[0].mxu0
  %4979 = vdwg.mxu0
  %v4980 = vmax.f32 %v4846, %v4957
  %v4981 = vmax.f32 %v4851, %v4962
  %v4982 = vmax.f32 %v4856, %v4967
  %v4983 = vmax.f32 %v4861, %v4972
  %v4984 = vmax.f32 %v4866, %v4977
  %v4985 = vld [vmem:[%s9] sm:$0xff]
  %v4986 = vld [vmem:[%s9 + $0x8] sm:$0xff]
  %v4987 = vld [vmem:[%s9 + $0x10] sm:$0xff]
  %v4988 = vld [vmem:[%s9 + $0x18] sm:$0xff]
  %v4989 = vld [vmem:[%s9 + $0x20] sm:$0xff]
  %v4991 = vsel %vm2867, %v4985, 0
  %v4994 = vsel %vm2867, %v4986, 0
  %v4997 = vsel %vm2867, %v4987, 0
  %v5000 = vsel %vm2867, %v4988, 0
  %v5003 = vsel %vm2867, %v4989, 0
  %5005 = vmatprep.subr.mxu0 0.0
  %5006 = vmatpush1.msra.mxu0 %v4980
  %5007 = vmatprep.subr.mxu0 0.0
  %5008 = vmatpush1.msra.mxu0 %v4981
  %5009 = vmatprep.subr.mxu0 0.0
  %5010 = vmatpush1.msra.mxu0 %v4982
  %5011 = vmatprep.subr.mxu0 0.0
  %5012 = vmatpush1.msra.mxu0 %v4983
  %5013 = vmatprep.subr.mxu0 0.0
  %5014 = vmatpush1.msra.mxu0 %v4984
  %5015 = vmatprep.subr.mxu0 0.0
  %5016 = vmatpush1.msra.mxu0 0.0
  %5017 = vmatprep.subr.mxu0 0.0
  %5018 = vmatpush1.msra.mxu0 0.0
  %5019 = vmatprep.subr.mxu0 0.0
  %5020 = vmatpush1.msra.mxu0 0.0
  %5021 = vmatprep.subr.mxu0 0.0
  %5022 = vmatpush1.msra.mxu0 0.0
  %5023 = vmatprep.subr.mxu0 0.0
  %5024 = vmatpush1.msra.mxu0 0.0
  %5025 = vmatprep.subr.mxu0 0.0
  %5026 = vmatpush1.msra.mxu0 0.0
  %5027 = vmatprep.subr.mxu0 0.0
  %5028 = vmatpush1.msra.mxu0 0.0
  %5029 = vmatprep.subr.mxu0 0.0
  %5030 = vmatpush1.msra.mxu0 0.0
  %5031 = vmatprep.subr.mxu0 0.0
  %5032 = vmatpush1.msra.mxu0 0.0
  %5033 = vmatprep.subr.mxu0 0.0
  %5034 = vmatpush1.msra.mxu0 0.0
  %5035 = vmatprep.subr.mxu0 0.0
  %5036 = vmatpush1.msra.mxu0 0.0
  %5037 = vmatprep.subr.mxu0 0.0
  %5038 = vmatpush1.msra.mxu0 0.0
  %5039 = vmatprep.subr.mxu0 0.0
  %5040 = vmatpush1.msra.mxu0 0.0
  %5041 = vmatprep.subr.mxu0 0.0
  %5042 = vmatpush1.msra.mxu0 0.0
  %5043 = vmatprep.subr.mxu0 0.0
  %5044 = vmatpush1.msra.mxu0 0.0
  %5045 = vmatprep.subr.mxu0 0.0
  %5046 = vmatpush1.msra.mxu0 0.0
  %5047 = vmatprep.subr.mxu0 0.0
  %5048 = vmatpush1.msra.mxu0 0.0
  %5049 = vmatprep.subr.mxu0 0.0
  %5050 = vmatpush1.msra.mxu0 0.0
  %5051 = vmatprep.subr.mxu0 0.0
  %5052 = vmatpush1.msra.mxu0 0.0
  %5053 = vmatprep.subr.mxu0 0.0
  %5054 = vmatpush1.msra.mxu0 0.0
  %5055 = vmatprep.subr.mxu0 0.0
  %5056 = vmatpush1.msra.mxu0 0.0
  %5057 = vmatprep.subr.mxu0 0.0
  %5058 = vmatpush1.msra.mxu0 0.0
  %5059 = vmatprep.subr.mxu0 0.0
  %5060 = vmatpush1.msra.mxu0 0.0
  %5061 = vmatprep.subr.mxu0 0.0
  %5062 = vmatpush1.msra.mxu0 0.0
  %5063 = vmatprep.subr.mxu0 0.0
  %5064 = vmatpush1.msra.mxu0 0.0
  %5065 = vmatprep.subr.mxu0 0.0
  %5066 = vmatpush1.msra.mxu0 0.0
  %5067 = vmatprep.subr.mxu0 0.0
  %5068 = vmatpush1.msra.mxu0 0.0
  %5069 = vmatprep.mubr.f32.mxu0 0.0
  %5070 = vmatmul.mubr.f32.gmra.mrb[0].mxu0 %v4991
  %v5071 = vpop.f32.mrb[0].mxu0
  %v5072 = vadd.f32 0.0, %v5071
  %v5073 = vpop.f32.mrb[0].mxu0
  %5074 = vmatprep.mubr.f32.mxu0 0.0
  %5075 = vmatmul.mubr.f32.gmra.mrb[0].mxu0 %v4994
  %v5076 = vpop.f32.mrb[0].mxu0
  %v5077 = vadd.f32 0.0, %v5076
  %v5078 = vpop.f32.mrb[0].mxu0
  %5079 = vmatprep.mubr.f32.mxu0 0.0
  %5080 = vmatmul.mubr.f32.gmra.mrb[0].mxu0 %v4997
  %v5081 = vpop.f32.mrb[0].mxu0
  %v5082 = vadd.f32 0.0, %v5081
  %v5083 = vpop.f32.mrb[0].mxu0
  %5084 = vmatprep.mubr.f32.mxu0 0.0
  %5085 = vmatmul.mubr.f32.gmra.mrb[0].mxu0 %v5000
  %v5086 = vpop.f32.mrb[0].mxu0
  %v5087 = vadd.f32 0.0, %v5086
  %v5088 = vpop.f32.mrb[0].mxu0
  %5089 = vmatprep.mubr.f32.mxu0 0.0
  %5090 = vmatmul.mubr.f32.gmra.mrb[0].mxu0 %v5003
  %v5091 = vpop.f32.mrb[0].mxu0
  %v5092 = vadd.f32 0.0, %v5091
  %v5093 = vpop.f32.mrb[0].mxu0
  %5094 = vdwg.mxu0
  %v5095 = vld [vmem:[%s10] sm:$0xff]
  %v5096 = vld [vmem:[%s10 + $0x8] sm:$0xff]
  %v5097 = vld [vmem:[%s10 + $0x10] sm:$0xff]
  %v5098 = vld [vmem:[%s10 + $0x18] sm:$0xff]
  %v5099 = vld [vmem:[%s10 + $0x20] sm:$0xff]
  %v5100 = vld [vmem:[%s10 + $0x28] sm:$0xff]
  %v5101 = vld [vmem:[%s10 + $0x30] sm:$0xff]
  %v5102 = vld [vmem:[%s10 + $0x38] sm:$0xff]
  %v5103 = vld [vmem:[%s10 + $0x40] sm:$0xff]
  %v5104 = vld [vmem:[%s10 + $0x48] sm:$0xff]
  %s5105 = scalar_lea.vmem %s10, 80
  %v5106 = vld [vmem:[%s5105] sm:$0xff]
  %v5107 = vld [vmem:[%s5105 + $0x8] sm:$0xff]
  %v5108 = vld [vmem:[%s5105 + $0x10] sm:$0xff]
  %v5109 = vld [vmem:[%s5105 + $0x18] sm:$0xff]
  %v5110 = vld [vmem:[%s5105 + $0x20] sm:$0xff]
  %v5111 = vld [vmem:[%s5105 + $0x28] sm:$0xff]
  %v5112 = vld [vmem:[%s5105 + $0x30] sm:$0xff]
  %v5113 = vld [vmem:[%s5105 + $0x38] sm:$0xff]
  %v5114 = vld [vmem:[%s5105 + $0x40] sm:$0xff]
  %v5115 = vld [vmem:[%s5105 + $0x48] sm:$0xff]
  %s5116 = scalar_lea.vmem %s10, 160
  %v5117 = vld [vmem:[%s5116] sm:$0xff]
  %v5118 = vld [vmem:[%s5116 + $0x8] sm:$0xff]
  %v5119 = vld [vmem:[%s5116 + $0x10] sm:$0xff]
  %v5120 = vld [vmem:[%s5116 + $0x18] sm:$0xff]
  %v5121 = vld [vmem:[%s5116 + $0x20] sm:$0xff]
  %v5122 = vld [vmem:[%s5116 + $0x28] sm:$0xff]
  %v5123 = vld [vmem:[%s5116 + $0x30] sm:$0xff]
  %v5124 = vld [vmem:[%s5116 + $0x38] sm:$0xff]
  %v5125 = vld [vmem:[%s5116 + $0x40] sm:$0xff]
  %v5126 = vld [vmem:[%s5116 + $0x48] sm:$0xff]
  %vm5127 = vcmask 654336
  %v5129 = vsel %vm5127, %v5082, 0
  %5131 = vmatprep.subr.mxu0 0.0
  %5132 = vmatpush1.msra.mxu0 %v5117
  %5133 = vmatprep.subr.mxu0 0.0
  %5134 = vmatpush1.msra.mxu0 %v5118
  %5135 = vmatprep.subr.mxu0 0.0
  %5136 = vmatpush1.msra.mxu0 %v5119
  %5137 = vmatprep.subr.mxu0 0.0
  %5138 = vmatpush1.msra.mxu0 %v5120
  %5139 = vmatprep.subr.mxu0 0.0
  %5140 = vmatpush1.msra.mxu0 %v5121
  %5141 = vmatprep.subr.mxu0 0.0
  %5142 = vmatpush1.msra.mxu0 %v5122
  %5143 = vmatprep.subr.mxu0 0.0
  %5144 = vmatpush1.msra.mxu0 %v5123
  %5145 = vmatprep.subr.mxu0 0.0
  %5146 = vmatpush1.msra.mxu0 %v5124
  %5147 = vmatprep.subr.mxu0 0.0
  %5148 = vmatpush1.msra.mxu0 %v5125
  %5149 = vmatprep.subr.mxu0 0.0
  %5150 = vmatpush1.msra.mxu0 %v5126
  %5151 = vmatprep.subr.mxu0 0.0
  %5152 = vmatpush1.msra.mxu0 0.0
  %5153 = vmatprep.subr.mxu0 0.0
  %5154 = vmatpush1.msra.mxu0 0.0
  %5155 = vmatprep.subr.mxu0 0.0
  %5156 = vmatpush1.msra.mxu0 0.0
  %5157 = vmatprep.subr.mxu0 0.0
  %5158 = vmatpush1.msra.mxu0 0.0
  %5159 = vmatprep.subr.mxu0 0.0
  %5160 = vmatpush1.msra.mxu0 0.0
  %5161 = vmatprep.subr.mxu0 0.0
  %5162 = vmatpush1.msra.mxu0 0.0
  %5163 = vmatprep.subr.mxu0 0.0
  %5164 = vmatpush1.msra.mxu0 0.0
  %5165 = vmatprep.subr.mxu0 0.0
  %5166 = vmatpush1.msra.mxu0 0.0
  %5167 = vmatprep.subr.mxu0 0.0
  %5168 = vmatpush1.msra.mxu0 0.0
  %5169 = vmatprep.subr.mxu0 0.0
  %5170 = vmatpush1.msra.mxu0 0.0
  %5171 = vmatprep.subr.mxu0 0.0
  %5172 = vmatpush1.msra.mxu0 0.0
  %5173 = vmatprep.subr.mxu0 0.0
  %5174 = vmatpush1.msra.mxu0 0.0
  %5175 = vmatprep.subr.mxu0 0.0
  %5176 = vmatpush1.msra.mxu0 0.0
  %5177 = vmatprep.subr.mxu0 0.0
  %5178 = vmatpush1.msra.mxu0 0.0
  %5179 = vmatprep.subr.mxu0 0.0
  %5180 = vmatpush1.msra.mxu0 0.0
  %5181 = vmatprep.subr.mxu0 0.0
  %5182 = vmatpush1.msra.mxu0 0.0
  %5183 = vmatprep.subr.mxu0 0.0
  %5184 = vmatpush1.msra.mxu0 0.0
  %5185 = vmatprep.subr.mxu0 0.0
  %5186 = vmatpush1.msra.mxu0 0.0
  %5187 = vmatprep.subr.mxu0 0.0
  %5188 = vmatpush1.msra.mxu0 0.0
  %5189 = vmatprep.subr.mxu0 0.0
  %5190 = vmatpush1.msra.mxu0 0.0
  %5191 = vmatprep.subr.mxu0 0.0
  %5192 = vmatpush1.msra.mxu0 0.0
  %5193 = vmatprep.subr.mxu0 0.0
  %5194 = vmatpush1.msra.mxu0 0.0
  %5195 = vmatprep.mubr.f32.mxu0 0.0
  %5196 = vmatmul.mubr.f32.gmra.mrb[0].mxu0 %v5129
  %v5197 = vpop.f32.mrb[0].mxu0
  %v5198 = vadd.f32 0.0, %v5197
  %v5199 = vpop.f32.mrb[0].mxu0
  %5200 = vdwg.mxu0
  %v5202 = vsel %vm5127, %v5072, 0
  %5204 = vmatprep.subr.mxu0 0.0
  %5205 = vmatpush1.msra.mxu0 %v5095
  %5206 = vmatprep.subr.mxu0 0.0
  %5207 = vmatpush1.msra.mxu0 %v5096
  %5208 = vmatprep.subr.mxu0 0.0
  %5209 = vmatpush1.msra.mxu0 %v5097
  %5210 = vmatprep.subr.mxu0 0.0
  %5211 = vmatpush1.msra.mxu0 %v5098
  %5212 = vmatprep.subr.mxu0 0.0
  %5213 = vmatpush1.msra.mxu0 %v5099
  %5214 = vmatprep.subr.mxu0 0.0
  %5215 = vmatpush1.msra.mxu0 %v5100
  %5216 = vmatprep.subr.mxu0 0.0
  %5217 = vmatpush1.msra.mxu0 %v5101
  %5218 = vmatprep.subr.mxu0 0.0
  %5219 = vmatpush1.msra.mxu0 %v5102
  %5220 = vmatprep.subr.mxu0 0.0
  %5221 = vmatpush1.msra.mxu0 %v5103
  %5222 = vmatprep.subr.mxu0 0.0
  %5223 = vmatpush1.msra.mxu0 %v5104
  %5224 = vmatprep.subr.mxu0 0.0
  %5225 = vmatpush1.msra.mxu0 0.0
  %5226 = vmatprep.subr.mxu0 0.0
  %5227 = vmatpush1.msra.mxu0 0.0
  %5228 = vmatprep.subr.mxu0 0.0
  %5229 = vmatpush1.msra.mxu0 0.0
  %5230 = vmatprep.subr.mxu0 0.0
  %5231 = vmatpush1.msra.mxu0 0.0
  %5232 = vmatprep.subr.mxu0 0.0
  %5233 = vmatpush1.msra.mxu0 0.0
  %5234 = vmatprep.subr.mxu0 0.0
  %5235 = vmatpush1.msra.mxu0 0.0
  %5236 = vmatprep.subr.mxu0 0.0
  %5237 = vmatpush1.msra.mxu0 0.0
  %5238 = vmatprep.subr.mxu0 0.0
  %5239 = vmatpush1.msra.mxu0 0.0
  %5240 = vmatprep.subr.mxu0 0.0
  %5241 = vmatpush1.msra.mxu0 0.0
  %5242 = vmatprep.subr.mxu0 0.0
  %5243 = vmatpush1.msra.mxu0 0.0
  %5244 = vmatprep.subr.mxu0 0.0
  %5245 = vmatpush1.msra.mxu0 0.0
  %5246 = vmatprep.subr.mxu0 0.0
  %5247 = vmatpush1.msra.mxu0 0.0
  %5248 = vmatprep.subr.mxu0 0.0
  %5249 = vmatpush1.msra.mxu0 0.0
  %5250 = vmatprep.subr.mxu0 0.0
  %5251 = vmatpush1.msra.mxu0 0.0
  %5252 = vmatprep.subr.mxu0 0.0
  %5253 = vmatpush1.msra.mxu0 0.0
  %5254 = vmatprep.subr.mxu0 0.0
  %5255 = vmatpush1.msra.mxu0 0.0
  %5256 = vmatprep.subr.mxu0 0.0
  %5257 = vmatpush1.msra.mxu0 0.0
  %5258 = vmatprep.subr.mxu0 0.0
  %5259 = vmatpush1.msra.mxu0 0.0
  %5260 = vmatprep.subr.mxu0 0.0
  %5261 = vmatpush1.msra.mxu0 0.0
  %5262 = vmatprep.subr.mxu0 0.0
  %5263 = vmatpush1.msra.mxu0 0.0
  %5264 = vmatprep.subr.mxu0 0.0
  %5265 = vmatpush1.msra.mxu0 0.0
  %5266 = vmatprep.subr.mxu0 0.0
  %5267 = vmatpush1.msra.mxu0 0.0
  %5268 = vmatprep.mubr.f32.mxu0 0.0
  %5269 = vmatmul.mubr.f32.gmra.mrb[0].mxu0 %v5202
  %v5270 = vpop.f32.mrb[0].mxu0
  %v5271 = vadd.f32 %v5198, %v5270
  %v5272 = vpop.f32.mrb[0].mxu0
  %5273 = vdwg.mxu0
  %s5274 = scalar_lea.vmem %s10, 240
  %v5275 = vld [vmem:[%s5274] sm:$0xff]
  %v5276 = vld [vmem:[%s5274 + $0x8] sm:$0xff]
  %v5277 = vld [vmem:[%s5274 + $0x10] sm:$0xff]
  %v5278 = vld [vmem:[%s5274 + $0x18] sm:$0xff]
  %v5279 = vld [vmem:[%s5274 + $0x20] sm:$0xff]
  %v5280 = vld [vmem:[%s5274 + $0x28] sm:$0xff]
  %v5281 = vld [vmem:[%s5274 + $0x30] sm:$0xff]
  %v5282 = vld [vmem:[%s5274 + $0x38] sm:$0xff]
  %v5283 = vld [vmem:[%s5274 + $0x40] sm:$0xff]
  %v5284 = vld [vmem:[%s5274 + $0x48] sm:$0xff]
  %v5286 = vsel %vm5127, %v5087, 0
  %5288 = vmatprep.subr.mxu0 0.0
  %5289 = vmatpush1.msra.mxu0 %v5275
  %5290 = vmatprep.subr.mxu0 0.0
  %5291 = vmatpush1.msra.mxu0 %v5276
  %5292 = vmatprep.subr.mxu0 0.0
  %5293 = vmatpush1.msra.mxu0 %v5277
  %5294 = vmatprep.subr.mxu0 0.0
  %5295 = vmatpush1.msra.mxu0 %v5278
  %5296 = vmatprep.subr.mxu0 0.0
  %5297 = vmatpush1.msra.mxu0 %v5279
  %5298 = vmatprep.subr.mxu0 0.0
  %5299 = vmatpush1.msra.mxu0 %v5280
  %5300 = vmatprep.subr.mxu0 0.0
  %5301 = vmatpush1.msra.mxu0 %v5281
  %5302 = vmatprep.subr.mxu0 0.0
  %5303 = vmatpush1.msra.mxu0 %v5282
  %5304 = vmatprep.subr.mxu0 0.0
  %5305 = vmatpush1.msra.mxu0 %v5283
  %5306 = vmatprep.subr.mxu0 0.0
  %5307 = vmatpush1.msra.mxu0 %v5284
  %5308 = vmatprep.subr.mxu0 0.0
  %5309 = vmatpush1.msra.mxu0 0.0
  %5310 = vmatprep.subr.mxu0 0.0
  %5311 = vmatpush1.msra.mxu0 0.0
  %5312 = vmatprep.subr.mxu0 0.0
  %5313 = vmatpush1.msra.mxu0 0.0
  %5314 = vmatprep.subr.mxu0 0.0
  %5315 = vmatpush1.msra.mxu0 0.0
  %5316 = vmatprep.subr.mxu0 0.0
  %5317 = vmatpush1.msra.mxu0 0.0
  %5318 = vmatprep.subr.mxu0 0.0
  %5319 = vmatpush1.msra.mxu0 0.0
  %5320 = vmatprep.subr.mxu0 0.0
  %5321 = vmatpush1.msra.mxu0 0.0
  %5322 = vmatprep.subr.mxu0 0.0
  %5323 = vmatpush1.msra.mxu0 0.0
  %5324 = vmatprep.subr.mxu0 0.0
  %5325 = vmatpush1.msra.mxu0 0.0
  %5326 = vmatprep.subr.mxu0 0.0
  %5327 = vmatpush1.msra.mxu0 0.0
  %5328 = vmatprep.subr.mxu0 0.0
  %5329 = vmatpush1.msra.mxu0 0.0
  %5330 = vmatprep.subr.mxu0 0.0
  %5331 = vmatpush1.msra.mxu0 0.0
  %5332 = vmatprep.subr.mxu0 0.0
  %5333 = vmatpush1.msra.mxu0 0.0
  %5334 = vmatprep.subr.mxu0 0.0
  %5335 = vmatpush1.msra.mxu0 0.0
  %5336 = vmatprep.subr.mxu0 0.0
  %5337 = vmatpush1.msra.mxu0 0.0
  %5338 = vmatprep.subr.mxu0 0.0
  %5339 = vmatpush1.msra.mxu0 0.0
  %5340 = vmatprep.subr.mxu0 0.0
  %5341 = vmatpush1.msra.mxu0 0.0
  %5342 = vmatprep.subr.mxu0 0.0
  %5343 = vmatpush1.msra.mxu0 0.0
  %5344 = vmatprep.subr.mxu0 0.0
  %5345 = vmatpush1.msra.mxu0 0.0
  %5346 = vmatprep.subr.mxu0 0.0
  %5347 = vmatpush1.msra.mxu0 0.0
  %5348 = vmatprep.subr.mxu0 0.0
  %5349 = vmatpush1.msra.mxu0 0.0
  %5350 = vmatprep.subr.mxu0 0.0
  %5351 = vmatpush1.msra.mxu0 0.0
  %5352 = vmatprep.mubr.f32.mxu0 0.0
  %5353 = vmatmul.mubr.f32.gmra.mrb[0].mxu0 %v5286
  %v5354 = vpop.f32.mrb[0].mxu0
  %v5355 = vadd.f32 0.0, %v5354
  %v5356 = vpop.f32.mrb[0].mxu0
  %5357 = vdwg.mxu0
  %v5359 = vsel %vm5127, %v5077, 0
  %5361 = vmatprep.subr.mxu0 0.0
  %5362 = vmatpush1.msra.mxu0 %v5106
  %5363 = vmatprep.subr.mxu0 0.0
  %5364 = vmatpush1.msra.mxu0 %v5107
  %5365 = vmatprep.subr.mxu0 0.0
  %5366 = vmatpush1.msra.mxu0 %v5108
  %5367 = vmatprep.subr.mxu0 0.0
  %5368 = vmatpush1.msra.mxu0 %v5109
  %5369 = vmatprep.subr.mxu0 0.0
  %5370 = vmatpush1.msra.mxu0 %v5110
  %5371 = vmatprep.subr.mxu0 0.0
  %5372 = vmatpush1.msra.mxu0 %v5111
  %5373 = vmatprep.subr.mxu0 0.0
  %5374 = vmatpush1.msra.mxu0 %v5112
  %5375 = vmatprep.subr.mxu0 0.0
  %5376 = vmatpush1.msra.mxu0 %v5113
  %5377 = vmatprep.subr.mxu0 0.0
  %5378 = vmatpush1.msra.mxu0 %v5114
  %5379 = vmatprep.subr.mxu0 0.0
  %5380 = vmatpush1.msra.mxu0 %v5115
  %5381 = vmatprep.subr.mxu0 0.0
  %5382 = vmatpush1.msra.mxu0 0.0
  %5383 = vmatprep.subr.mxu0 0.0
  %5384 = vmatpush1.msra.mxu0 0.0
  %5385 = vmatprep.subr.mxu0 0.0
  %5386 = vmatpush1.msra.mxu0 0.0
  %5387 = vmatprep.subr.mxu0 0.0
  %5388 = vmatpush1.msra.mxu0 0.0
  %5389 = vmatprep.subr.mxu0 0.0
  %5390 = vmatpush1.msra.mxu0 0.0
  %5391 = vmatprep.subr.mxu0 0.0
  %5392 = vmatpush1.msra.mxu0 0.0
  %5393 = vmatprep.subr.mxu0 0.0
  %5394 = vmatpush1.msra.mxu0 0.0
  %5395 = vmatprep.subr.mxu0 0.0
  %5396 = vmatpush1.msra.mxu0 0.0
  %5397 = vmatprep.subr.mxu0 0.0
  %5398 = vmatpush1.msra.mxu0 0.0
  %5399 = vmatprep.subr.mxu0 0.0
  %5400 = vmatpush1.msra.mxu0 0.0
  %5401 = vmatprep.subr.mxu0 0.0
  %5402 = vmatpush1.msra.mxu0 0.0
  %5403 = vmatprep.subr.mxu0 0.0
  %5404 = vmatpush1.msra.mxu0 0.0
  %5405 = vmatprep.subr.mxu0 0.0
  %5406 = vmatpush1.msra.mxu0 0.0
  %5407 = vmatprep.subr.mxu0 0.0
  %5408 = vmatpush1.msra.mxu0 0.0
  %5409 = vmatprep.subr.mxu0 0.0
  %5410 = vmatpush1.msra.mxu0 0.0
  %5411 = vmatprep.subr.mxu0 0.0
  %5412 = vmatpush1.msra.mxu0 0.0
  %5413 = vmatprep.subr.mxu0 0.0
  %5414 = vmatpush1.msra.mxu0 0.0
  %5415 = vmatprep.subr.mxu0 0.0
  %5416 = vmatpush1.msra.mxu0 0.0
  %5417 = vmatprep.subr.mxu0 0.0
  %5418 = vmatpush1.msra.mxu0 0.0
  %5419 = vmatprep.subr.mxu0 0.0
  %5420 = vmatpush1.msra.mxu0 0.0
  %5421 = vmatprep.subr.mxu0 0.0
  %5422 = vmatpush1.msra.mxu0 0.0
  %5423 = vmatprep.subr.mxu0 0.0
  %5424 = vmatpush1.msra.mxu0 0.0
  %5425 = vmatprep.mubr.f32.mxu0 0.0
  %5426 = vmatmul.mubr.f32.gmra.mrb[0].mxu0 %v5359
  %v5427 = vpop.f32.mrb[0].mxu0
  %v5428 = vadd.f32 %v5355, %v5427
  %v5429 = vpop.f32.mrb[0].mxu0
  %5430 = vdwg.mxu0
  %s5431 = scalar_lea.vmem %s10, 320
  %v5432 = vld [vmem:[%s5431] sm:$0xff]
  %v5433 = vld [vmem:[%s5431 + $0x8] sm:$0xff]
  %v5434 = vld [vmem:[%s5431 + $0x10] sm:$0xff]
  %v5435 = vld [vmem:[%s5431 + $0x18] sm:$0xff]
  %v5436 = vld [vmem:[%s5431 + $0x20] sm:$0xff]
  %v5437 = vld [vmem:[%s5431 + $0x28] sm:$0xff]
  %v5438 = vld [vmem:[%s5431 + $0x30] sm:$0xff]
  %v5439 = vld [vmem:[%s5431 + $0x38] sm:$0xff]
  %v5440 = vld [vmem:[%s5431 + $0x40] sm:$0xff]
  %v5441 = vld [vmem:[%s5431 + $0x48] sm:$0xff]
  %v5443 = vsel %vm5127, %v5092, 0
  %5445 = vmatprep.subr.mxu0 0.0
  %5446 = vmatpush1.msra.mxu0 %v5432
  %5447 = vmatprep.subr.mxu0 0.0
  %5448 = vmatpush1.msra.mxu0 %v5433
  %5449 = vmatprep.subr.mxu0 0.0
  %5450 = vmatpush1.msra.mxu0 %v5434
  %5451 = vmatprep.subr.mxu0 0.0
  %5452 = vmatpush1.msra.mxu0 %v5435
  %5453 = vmatprep.subr.mxu0 0.0
  %5454 = vmatpush1.msra.mxu0 %v5436
  %5455 = vmatprep.subr.mxu0 0.0
  %5456 = vmatpush1.msra.mxu0 %v5437
  %5457 = vmatprep.subr.mxu0 0.0
  %5458 = vmatpush1.msra.mxu0 %v5438
  %5459 = vmatprep.subr.mxu0 0.0
  %5460 = vmatpush1.msra.mxu0 %v5439
  %5461 = vmatprep.subr.mxu0 0.0
  %5462 = vmatpush1.msra.mxu0 %v5440
  %5463 = vmatprep.subr.mxu0 0.0
  %5464 = vmatpush1.msra.mxu0 %v5441
  %5465 = vmatprep.subr.mxu0 0.0
  %5466 = vmatpush1.msra.mxu0 0.0
  %5467 = vmatprep.subr.mxu0 0.0
  %5468 = vmatpush1.msra.mxu0 0.0
  %5469 = vmatprep.subr.mxu0 0.0
  %5470 = vmatpush1.msra.mxu0 0.0
  %5471 = vmatprep.subr.mxu0 0.0
  %5472 = vmatpush1.msra.mxu0 0.0
  %5473 = vmatprep.subr.mxu0 0.0
  %5474 = vmatpush1.msra.mxu0 0.0
  %5475 = vmatprep.subr.mxu0 0.0
  %5476 = vmatpush1.msra.mxu0 0.0
  %5477 = vmatprep.subr.mxu0 0.0
  %5478 = vmatpush1.msra.mxu0 0.0
  %5479 = vmatprep.subr.mxu0 0.0
  %5480 = vmatpush1.msra.mxu0 0.0
  %5481 = vmatprep.subr.mxu0 0.0
  %5482 = vmatpush1.msra.mxu0 0.0
  %5483 = vmatprep.subr.mxu0 0.0
  %5484 = vmatpush1.msra.mxu0 0.0
  %5485 = vmatprep.subr.mxu0 0.0
  %5486 = vmatpush1.msra.mxu0 0.0
  %5487 = vmatprep.subr.mxu0 0.0
  %5488 = vmatpush1.msra.mxu0 0.0
  %5489 = vmatprep.subr.mxu0 0.0
  %5490 = vmatpush1.msra.mxu0 0.0
  %5491 = vmatprep.subr.mxu0 0.0
  %5492 = vmatpush1.msra.mxu0 0.0
  %5493 = vmatprep.subr.mxu0 0.0
  %5494 = vmatpush1.msra.mxu0 0.0
  %5495 = vmatprep.subr.mxu0 0.0
  %5496 = vmatpush1.msra.mxu0 0.0
  %5497 = vmatprep.subr.mxu0 0.0
  %5498 = vmatpush1.msra.mxu0 0.0
  %5499 = vmatprep.subr.mxu0 0.0
  %5500 = vmatpush1.msra.mxu0 0.0
  %5501 = vmatprep.subr.mxu0 0.0
  %5502 = vmatpush1.msra.mxu0 0.0
  %5503 = vmatprep.subr.mxu0 0.0
  %5504 = vmatpush1.msra.mxu0 0.0
  %5505 = vmatprep.subr.mxu0 0.0
  %5506 = vmatpush1.msra.mxu0 0.0
  %5507 = vmatprep.subr.mxu0 0.0
  %5508 = vmatpush1.msra.mxu0 0.0
  %5509 = vmatprep.mubr.f32.mxu0 0.0
  %5510 = vmatmul.mubr.f32.gmra.mrb[0].mxu0 %v5443
  %v5511 = vpop.f32.mrb[0].mxu0
  %v5512 = vadd.f32 0.0, %v5511
  %v5513 = vpop.f32.mrb[0].mxu0
  %5514 = vdwg.mxu0
  %v5515 = vadd.f32 %v5271, %v5512
  %v5516 = vadd.f32 %v5515, %v5428
  %v5517 = vld [vmem:[%s11] sm:$0x1]
  %v5519 = vlaneseq
  %v5520 = vshrl.u32 %v5519, 7
  %v5521 = vsub.s32 0, %v5520
  %v5522 = vrot.slane %v5517, %v5521
  %v5524 = vadd.f32 %v5516, %v5522
  %v5525 = vmax.f32 %v5524, 0.0
  %v5526 = vld [vmem:[%s12] sm:$0xff]
  %v5527 = vld [vmem:[%s12 + $0x8] sm:$0xff]
  %v5528 = vld [vmem:[%s12 + $0x10] sm:$0xff]
  %v5529 = vld [vmem:[%s12 + $0x18] sm:$0xff]
  %v5530 = vld [vmem:[%s12 + $0x20] sm:$0xff]
  %v5531 = vld [vmem:[%s12 + $0x28] sm:$0xff]
  %v5532 = vld [vmem:[%s12 + $0x30] sm:$0xff]
  %v5533 = vld [vmem:[%s12 + $0x38] sm:$0xff]
  %v5534 = vld [vmem:[%s12 + $0x40] sm:$0xff]
  %v5535 = vld [vmem:[%s12 + $0x48] sm:$0xff]
  %v5536 = vld [vmem:[%s12 + $0x50] sm:$0xff]
  %v5537 = vld [vmem:[%s12 + $0x58] sm:$0xff]
  %v5538 = vld [vmem:[%s12 + $0x60] sm:$0xff]
  %v5539 = vld [vmem:[%s12 + $0x68] sm:$0xff]
  %v5540 = vld [vmem:[%s12 + $0x70] sm:$0xff]
  %v5541 = vld [vmem:[%s12 + $0x78] sm:$0xff]
  %v5542 = vld [vmem:[%s13] sm:$0x1]
  %v5544 = vlaneseq
  %v5545 = vshrl.u32 %v5544, 7
  %v5546 = vsub.s32 0, %v5545
  %v5547 = vrot.slane %v5542, %v5546
  %5549 = vmatprep.subr.mxu0 0.0
  %5550 = vmatpush1.msra.mxu0 %v5526
  %5551 = vmatprep.subr.mxu0 0.0
  %5552 = vmatpush1.msra.mxu0 %v5527
  %5553 = vmatprep.subr.mxu0 0.0
  %5554 = vmatpush1.msra.mxu0 %v5528
  %5555 = vmatprep.subr.mxu0 0.0
  %5556 = vmatpush1.msra.mxu0 %v5529
  %5557 = vmatprep.subr.mxu0 0.0
  %5558 = vmatpush1.msra.mxu0 %v5530
  %5559 = vmatprep.subr.mxu0 0.0
  %5560 = vmatpush1.msra.mxu0 %v5531
  %5561 = vmatprep.subr.mxu0 0.0
  %5562 = vmatpush1.msra.mxu0 %v5532
  %5563 = vmatprep.subr.mxu0 0.0
  %5564 = vmatpush1.msra.mxu0 %v5533
  %5565 = vmatprep.subr.mxu0 0.0
  %5566 = vmatpush1.msra.mxu0 %v5534
  %5567 = vmatprep.subr.mxu0 0.0
  %5568 = vmatpush1.msra.mxu0 %v5535
  %5569 = vmatprep.subr.mxu0 0.0
  %5570 = vmatpush1.msra.mxu0 %v5536
  %5571 = vmatprep.subr.mxu0 0.0
  %5572 = vmatpush1.msra.mxu0 %v5537
  %5573 = vmatprep.subr.mxu0 0.0
  %5574 = vmatpush1.msra.mxu0 %v5538
  %5575 = vmatprep.subr.mxu0 0.0
  %5576 = vmatpush1.msra.mxu0 %v5539
  %5577 = vmatprep.subr.mxu0 0.0
  %5578 = vmatpush1.msra.mxu0 %v5540
  %5579 = vmatprep.subr.mxu0 0.0
  %5580 = vmatpush1.msra.mxu0 %v5541
  %5581 = vmatprep.subr.mxu0 0.0
  %5582 = vmatpush1.msra.mxu0 0.0
  %5583 = vmatprep.subr.mxu0 0.0
  %5584 = vmatpush1.msra.mxu0 0.0
  %5585 = vmatprep.subr.mxu0 0.0
  %5586 = vmatpush1.msra.mxu0 0.0
  %5587 = vmatprep.subr.mxu0 0.0
  %5588 = vmatpush1.msra.mxu0 0.0
  %5589 = vmatprep.subr.mxu0 0.0
  %5590 = vmatpush1.msra.mxu0 0.0
  %5591 = vmatprep.subr.mxu0 0.0
  %5592 = vmatpush1.msra.mxu0 0.0
  %5593 = vmatprep.subr.mxu0 0.0
  %5594 = vmatpush1.msra.mxu0 0.0
  %5595 = vmatprep.subr.mxu0 0.0
  %5596 = vmatpush1.msra.mxu0 0.0
  %5597 = vmatprep.subr.mxu0 0.0
  %5598 = vmatpush1.msra.mxu0 0.0
  %5599 = vmatprep.subr.mxu0 0.0
  %5600 = vmatpush1.msra.mxu0 0.0
  %5601 = vmatprep.subr.mxu0 0.0
  %5602 = vmatpush1.msra.mxu0 0.0
  %5603 = vmatprep.subr.mxu0 0.0
  %5604 = vmatpush1.msra.mxu0 0.0
  %5605 = vmatprep.subr.mxu0 0.0
  %5606 = vmatpush1.msra.mxu0 0.0
  %5607 = vmatprep.subr.mxu0 0.0
  %5608 = vmatpush1.msra.mxu0 0.0
  %5609 = vmatprep.subr.mxu0 0.0
  %5610 = vmatpush1.msra.mxu0 0.0
  %5611 = vmatprep.subr.mxu0 0.0
  %5612 = vmatpush1.msra.mxu0 0.0
  %5613 = vmatprep.mubr.f32.mxu0 0.0
  %5614 = vmatmul.mubr.f32.gmra.mrb[0].mxu0 %v5525
  %v5615 = vpop.f32.mrb[0].mxu0
  %v5616 = vadd.f32 %v5547, %v5615
  %v5617 = vpop.f32.mrb[0].mxu0
  %5618 = vdwg.mxu0
  %v5619 = vmax.f32 %v5616, 0.0
  %v5620 = vld [vmem:[%s14] sm:$0xff]
  %v5621 = vld [vmem:[%s14 + $0x8] sm:$0xff]
  %v5622 = vld [vmem:[%s14 + $0x10] sm:$0xff]
  %v5623 = vld [vmem:[%s14 + $0x18] sm:$0xff]
  %v5624 = vld [vmem:[%s14 + $0x20] sm:$0xff]
  %v5625 = vld [vmem:[%s14 + $0x28] sm:$0xff]
  %v5626 = vld [vmem:[%s14 + $0x30] sm:$0xff]
  %v5627 = vld [vmem:[%s14 + $0x38] sm:$0xff]
  %v5628 = vld [vmem:[%s14 + $0x40] sm:$0xff]
  %v5629 = vld [vmem:[%s14 + $0x48] sm:$0xff]
  %v5630 = vld [vmem:[%s14 + $0x50] sm:$0xff]
  %v5631 = vld [vmem:[%s14 + $0x58] sm:$0xff]
  %v5632 = vld [vmem:[%s14 + $0x60] sm:$0xff]
  %v5633 = vld [vmem:[%s14 + $0x68] sm:$0xff]
  %v5634 = vld [vmem:[%s14 + $0x70] sm:$0xff]
  %v5635 = vld [vmem:[%s14 + $0x78] sm:$0xff]
  %v5636 = vld [vmem:[%s15] sm:$0x1]
  %v5638 = vlaneseq
  %v5639 = vshrl.u32 %v5638, 7
  %v5640 = vsub.s32 0, %v5639
  %v5641 = vrot.slane %v5636, %v5640
  %5643 = vmatprep.subr.mxu0 0.0
  %5644 = vmatpush1.msra.mxu0 %v5620
  %5645 = vmatprep.subr.mxu0 0.0
  %5646 = vmatpush1.msra.mxu0 %v5621
  %5647 = vmatprep.subr.mxu0 0.0
  %5648 = vmatpush1.msra.mxu0 %v5622
  %5649 = vmatprep.subr.mxu0 0.0
  %5650 = vmatpush1.msra.mxu0 %v5623
  %5651 = vmatprep.subr.mxu0 0.0
  %5652 = vmatpush1.msra.mxu0 %v5624
  %5653 = vmatprep.subr.mxu0 0.0
  %5654 = vmatpush1.msra.mxu0 %v5625
  %5655 = vmatprep.subr.mxu0 0.0
  %5656 = vmatpush1.msra.mxu0 %v5626
  %5657 = vmatprep.subr.mxu0 0.0
  %5658 = vmatpush1.msra.mxu0 %v5627
  %5659 = vmatprep.subr.mxu0 0.0
  %5660 = vmatpush1.msra.mxu0 %v5628
  %5661 = vmatprep.subr.mxu0 0.0
  %5662 = vmatpush1.msra.mxu0 %v5629
  %5663 = vmatprep.subr.mxu0 0.0
  %5664 = vmatpush1.msra.mxu0 %v5630
  %5665 = vmatprep.subr.mxu0 0.0
  %5666 = vmatpush1.msra.mxu0 %v5631
  %5667 = vmatprep.subr.mxu0 0.0
  %5668 = vmatpush1.msra.mxu0 %v5632
  %5669 = vmatprep.subr.mxu0 0.0
  %5670 = vmatpush1.msra.mxu0 %v5633
  %5671 = vmatprep.subr.mxu0 0.0
  %5672 = vmatpush1.msra.mxu0 %v5634
  %5673 = vmatprep.subr.mxu0 0.0
  %5674 = vmatpush1.msra.mxu0 %v5635
  %5675 = vmatprep.subr.mxu0 0.0
  %5676 = vmatpush1.msra.mxu0 0.0
  %5677 = vmatprep.subr.mxu0 0.0
  %5678 = vmatpush1.msra.mxu0 0.0
  %5679 = vmatprep.subr.mxu0 0.0
  %5680 = vmatpush1.msra.mxu0 0.0
  %5681 = vmatprep.subr.mxu0 0.0
  %5682 = vmatpush1.msra.mxu0 0.0
  %5683 = vmatprep.subr.mxu0 0.0
  %5684 = vmatpush1.msra.mxu0 0.0
  %5685 = vmatprep.subr.mxu0 0.0
  %5686 = vmatpush1.msra.mxu0 0.0
  %5687 = vmatprep.subr.mxu0 0.0
  %5688 = vmatpush1.msra.mxu0 0.0
  %5689 = vmatprep.subr.mxu0 0.0
  %5690 = vmatpush1.msra.mxu0 0.0
  %5691 = vmatprep.subr.mxu0 0.0
  %5692 = vmatpush1.msra.mxu0 0.0
  %5693 = vmatprep.subr.mxu0 0.0
  %5694 = vmatpush1.msra.mxu0 0.0
  %5695 = vmatprep.subr.mxu0 0.0
  %5696 = vmatpush1.msra.mxu0 0.0
  %5697 = vmatprep.subr.mxu0 0.0
  %5698 = vmatpush1.msra.mxu0 0.0
  %5699 = vmatprep.subr.mxu0 0.0
  %5700 = vmatpush1.msra.mxu0 0.0
  %5701 = vmatprep.subr.mxu0 0.0
  %5702 = vmatpush1.msra.mxu0 0.0
  %5703 = vmatprep.subr.mxu0 0.0
  %5704 = vmatpush1.msra.mxu0 0.0
  %5705 = vmatprep.subr.mxu0 0.0
  %5706 = vmatpush1.msra.mxu0 0.0
  %5707 = vmatprep.mubr.f32.mxu0 0.0
  %5708 = vmatmul.mubr.f32.gmra.mrb[0].mxu0 %v5619
  %v5709 = vpop.f32.mrb[0].mxu0
  %v5710 = vadd.f32 %v5641, %v5709
  %v5711 = vpop.f32.mrb[0].mxu0
  %5712 = vdwg.mxu0
  %v5713 = vmax.f32 %v5710, 0.0
  %5714 = vst [vmem:[%s16] sm:$0xff] %v5713
  // Predicated region
  $region66: #{net_forward.1} parent=0 // pred_check
    _
  $region67: #{net_forward.1} parent=0 // pred_check_branch
    %5716 = sbr.rel (0) target = $region69
  $region68: #{net_forward.1} parent=0 // pred_region
    _
  $region69: #{net_forward.1} parent=0 // pred_fallthru
    _
  // Predicated region
  $region70: #{net_forward.1} parent=0 // pred_check
    _
  $region71: #{net_forward.1} parent=0 // pred_check_branch
    %5718 = sbr.rel (0) target = $region73
  $region72: #{net_forward.1} parent=0 // pred_region
    _
  $region73: #{net_forward.1} parent=0 // pred_fallthru
    _

</llo_original>
